<compile_context>
chip_gen: v7x
topology: tpu7x:2x2x1
jax: 0.10.0
libtpu: 0.0.40
codegen_flags: <defaults>
</compile_context>

<pallas_src>
import math

import jax
import jax.numpy as jnp
from jax.experimental import pallas as pl
from jax.experimental.pallas import tpu as pltpu


# ---------------------------------------------------------------------------
# Single fused Pallas kernel: conv stack + FC + policy/value heads
# ---------------------------------------------------------------------------
def _net_kernel(x_ref, w1_ref, b1_ref, w2_ref, b2_ref, w3_ref, b3_ref,
                wfc_ref, bfc_ref, wpv_ref, bpv_ref, whd_ref, bhd_ref, o_ref):
    f32, bf16 = jnp.float32, jnp.bfloat16

    # ----- conv1 -----------------------------------------------------------
    # Wrapper space-to-depth (block 4) makes conv1 a k=2, s=1 conv here, so
    # in-VMEM im2col is just 4 static slices + a lane concat + one matmul.
    x = x_ref[...]                                   # (N, S, S, 16*Cin)  f32
    N, S = x.shape[0], x.shape[1]
    H1 = S - 1                                       # conv1 output spatial (8)
    C = w1_ref.shape[1]                              # 32 conv channels

    cols = []
    for i in range(2):
        for j in range(2):
            slab = x[:, i:i + H1, j:j + H1, :]       # (N, H1, H1, 16*Cin)
            cols.append(slab.reshape(N * H1 * H1, slab.shape[-1]))
    patches1 = jnp.concatenate(cols, axis=-1)        # (N*H1*H1, 64*Cin)
    y1 = jnp.dot(patches1.astype(bf16), w1_ref[...],
                 preferred_element_type=f32) + b1_ref[...]
    h1 = jnp.maximum(y1, 0.0).reshape(N, H1, H1, C)  # (N, 8, 8, 32)

    # ----- conv2 (k=4, s=2): ONE batched matmul over all 9 output positions --
    H2 = (H1 - 4) // 2 + 1                           # 3
    # Cache every (row, col) pixel of h1 once; patches reuse them (overlap).
    elem = [[h1[:, r, c, :] for c in range(H1)] for r in range(H1)]   # (N, C)
    pos_patches = []                                 # one (N, 16*C) per (ho, wo)
    for ho in range(H2):
        for wo in range(H2):
            taps = [elem[2 * ho + i][2 * wo + j]
                    for i in range(4) for j in range(4)]
            pos_patches.append(jnp.concatenate(taps, axis=-1))        # (N, 16*C)
    patches2 = jnp.concatenate(pos_patches, axis=0)  # (9*N, 16*C), position-major rows
    y2 = jnp.dot(patches2.astype(bf16), w2_ref[...],
                 preferred_element_type=f32) + b2_ref[...]
    h2 = jnp.maximum(y2, 0.0)                        # (9*N, C)

    # ----- conv3 (k=3, s=1; 3x3 -> 1x1) -------------------------------------
    # Its 9 taps are exactly the 9 conv2 output positions (ho-major order):
    # gather the per-position batch blocks back with cheap sublane slices and
    # one lane concat so columns are ordered (pos, c) to match the w3 packing.
    p3 = jnp.concatenate([h2[k * N:(k + 1) * N, :] for k in range(H2 * H2)],
                         axis=-1)                    # (N, 9*C)
    y3 = jnp.dot(p3.astype(bf16), w3_ref[...],
                 preferred_element_type=f32) + b3_ref[...]
    flat = jnp.maximum(y3, 0.0)                      # (N, C) == flatten (1x1 spatial)

    # ----- fused FC + heads --------------------------------------------------
    h = jnp.maximum(jnp.dot(flat.astype(bf16), wfc_ref[...],
                            preferred_element_type=f32) + bfc_ref[...], 0.0)   # (N, 512)
    hv = jnp.maximum(jnp.dot(h.astype(bf16), wpv_ref[...],
                             preferred_element_type=f32) + bpv_ref[...], 0.0)  # (N, 512)
    logits = jnp.dot(hv.astype(bf16), whd_ref[...],
                     preferred_element_type=f32) + bhd_ref[...]                # (N, 128)

    lg = logits[:, 0:2]                              # policy logits
    m = jnp.max(lg, axis=-1, keepdims=True)
    e = jnp.exp(lg - m)
    policy = e * pl.reciprocal(jnp.sum(e, axis=-1, keepdims=True), approx=True)
    # One lane-dense 128-wide store: cols 0:2 = policy, col 2 = value, rest 0.
    o_ref[...] = jnp.concatenate([policy, logits[:, 2:]], axis=-1).astype(o_ref.dtype)


# ---------------------------------------------------------------------------
# Parameter init (Xavier-uniform weights, PyTorch-default biases)
# ---------------------------------------------------------------------------
def xavier_uniform(key, shape, fan_in, fan_out):
    bound = math.sqrt(6.0 / (fan_in + fan_out))
    return jax.random.uniform(key, shape, jnp.float32, -bound, bound)


def bias_default(key, shape, fan_in):
    bound = 1.0 / math.sqrt(fan_in)
    return jax.random.uniform(key, shape, jnp.float32, -bound, bound)


def init_params(key, in_channels, flatten_size):
    keys = iter(jax.random.split(key, 20))
    p = {}

    def conv(name, o, i, k):
        fan_in, fan_out = i * k * k, o * k * k
        p[name + "_w"] = xavier_uniform(next(keys), (o, i, k, k), fan_in, fan_out)
        p[name + "_b"] = bias_default(next(keys), (o,), fan_in)

    def lin(name, i, o):
        p[name + "_w"] = xavier_uniform(next(keys), (i, o), i, o)   # stored (in, out)
        p[name + "_b"] = bias_default(next(keys), (o,), i)

    conv("c1", 32, in_channels, 8)
    conv("c2", 32, 32, 4)
    conv("c3", 32, 32, 3)
    lin("fc", flatten_size, 512)
    lin("p1", 512, 256)
    lin("p2", 256, 2)
    lin("v1", 512, 256)
    lin("v2", 256, 1)
    return p


# ---------------------------------------------------------------------------
# One-time weight repacking into the fused-kernel layout (init-time glue)
# ---------------------------------------------------------------------------
def prepare_kernel_params(p):
    O, Cin = p["c1_w"].shape[0], p["c1_w"].shape[1]
    bf16 = jnp.bfloat16

    # conv1: (O, Cin, 8, 8) -> rows ordered (I, J, p, q, c) for the space-to-depth conv.
    w1 = p["c1_w"].reshape(O, Cin, 2, 4, 2, 4)               # (o, c, I, p, J, q)
    w1 = jnp.transpose(w1, (2, 4, 3, 5, 1, 0)).reshape(64 * Cin, O)
    # conv2 / conv3: rows ordered (i, j, c).
    w2 = jnp.transpose(p["c2_w"], (2, 3, 1, 0)).reshape(16 * 32, O)
    w3 = jnp.transpose(p["c3_w"], (2, 3, 1, 0)).reshape(9 * 32, O)

    # Fused heads: p1/v1 concatenated; p2/v2 packed block-diagonally into a
    # single lane-dense (512, 128) weight.
    wpv = jnp.concatenate([p["p1_w"], p["v1_w"]], axis=1)    # (512, 512)
    bpv = jnp.concatenate([p["p1_b"], p["v1_b"]], axis=0)    # (512,)
    whd = jnp.zeros((512, 128), jnp.float32)
    whd = whd.at[0:256, 0:2].set(p["p2_w"])
    whd = whd.at[256:512, 2:3].set(p["v2_w"])
    bhd = jnp.zeros((128,), jnp.float32)
    bhd = bhd.at[0:2].set(p["p2_b"]).at[2].set(p["v2_b"][0])

    W = lambda a: a.astype(bf16)                             # MXU-native inputs
    B = lambda a: a.reshape(1, -1).astype(jnp.float32)       # f32 epilogue
    return dict(
        w1=W(w1), b1=B(p["c1_b"]), w2=W(w2), b2=B(p["c2_b"]),
        w3=W(w3), b3=B(p["c3_b"]),
        wfc=W(p["fc_w"]), bfc=B(p["fc_b"]),
        wpv=W(wpv), bpv=B(bpv), whd=W(whd), bhd=B(bhd))


# ---------------------------------------------------------------------------
# Forward pass: one rearrangement of the raw input + ONE pallas_call
# ---------------------------------------------------------------------------
def net_forward(kparams, x_nchw):
    N, Cin, H, W = x_nchw.shape
    assert H == W and H % 4 == 0, "conv stack requires square input, H % 4 == 0"
    h1 = H // 4 - 1
    h2 = (h1 - 4) // 2 + 1
    assert h2 == 3, "fused kernel assumes conv3 output is 1x1 (e.g. 36x36 input)"

    # Fold NCHW->NHWC + space-to-depth(4) into one rearrangement of the input.
    x = jnp.transpose(x_nchw, (0, 2, 3, 1)).astype(jnp.float32)
    x = x.reshape(N, H // 4, 4, W // 4, 4, Cin)
    x = jnp.transpose(x, (0, 1, 3, 2, 4, 5)).reshape(N, H // 4, W // 4, 16 * Cin)

    vmem = pl.BlockSpec(memory_space=pltpu.MemorySpace.VMEM)
    out = pl.pallas_call(
        _net_kernel,
        out_shape=jax.ShapeDtypeStruct((N, 128), jnp.float32),
        in_specs=[vmem] * 13,
        out_specs=vmem,
    )(x,
      kparams["w1"], kparams["b1"], kparams["w2"], kparams["b2"],
      kparams["w3"], kparams["b3"], kparams["wfc"], kparams["bfc"],
      kparams["wpv"], kparams["bpv"], kparams["whd"], kparams["bhd"])

    policy = out[:, 0:2]
    value = out[:, 2:3]
    return policy, value


if __name__ == "__main__":
    # Smallest input consistent with the conv stack: (8,4)->(4,2)->(3,1) needs
    # H = W = 36  ->  spatial sizes 36 -> 8 -> 3 -> 1, flatten = 32*1*1 = 32.
    N, Cin, H, W = 2, 4, 36, 36
    h1 = (H - 8) // 4 + 1
    h2 = (h1 - 4) // 2 + 1
    h3 = h2 - 2
    flatten_size = 32 * h3 * h3

    key = jax.random.PRNGKey(0)
    k_params, k_x = jax.random.split(key)
    params = init_params(k_params, Cin, flatten_size)
    kparams = prepare_kernel_params(params)
    x = jax.random.normal(k_x, (N, Cin, H, W), jnp.float32)

    fwd = jax.jit(net_forward)
    policy, value = fwd(kparams, x)
    policy, value = jax.block_until_ready((policy, value))

    assert policy.shape == (N, 2) and value.shape == (N, 1)
    # approx reciprocal in the softmax -> allow a slightly looser tolerance
    assert bool(jnp.allclose(jnp.sum(policy, axis=-1), 1.0, atol=1e-2))
    print("KERNEL_OK")
</pallas_src>

<mosaic_0001>
module attributes {stable_mosaic.version = 11 : i64} {
  func.func @_net_kernel(%arg0: memref<2x9x9x64xf32, #tpu.memory_space<vmem>>, %arg1: memref<256x32xbf16, #tpu.memory_space<vmem>>, %arg2: memref<1x32xf32, #tpu.memory_space<vmem>>, %arg3: memref<512x32xbf16, #tpu.memory_space<vmem>>, %arg4: memref<1x32xf32, #tpu.memory_space<vmem>>, %arg5: memref<288x32xbf16, #tpu.memory_space<vmem>>, %arg6: memref<1x32xf32, #tpu.memory_space<vmem>>, %arg7: memref<32x512xbf16, #tpu.memory_space<vmem>>, %arg8: memref<1x512xf32, #tpu.memory_space<vmem>>, %arg9: memref<512x512xbf16, #tpu.memory_space<vmem>>, %arg10: memref<1x512xf32, #tpu.memory_space<vmem>>, %arg11: memref<512x128xbf16, #tpu.memory_space<vmem>>, %arg12: memref<1x128xf32, #tpu.memory_space<vmem>>, %arg13: memref<2x128xf32, #tpu.memory_space<vmem>>) attributes {dimension_semantics = [], scalar_prefetch = 0 : i64, scratch_operands = 0 : i64, tpu.core_type = #tpu.core_type<tc>} {
    %c0 = arith.constant 0 : index
    %c0_0 = arith.constant 0 : index
    %c0_1 = arith.constant 0 : index
    %c0_2 = arith.constant 0 : index
    %0 = vector.load %arg0[%c0, %c0_0, %c0_1, %c0_2] : memref<2x9x9x64xf32, #tpu.memory_space<vmem>>, vector<2x9x9x64xf32>
    %1 = vector.extract_strided_slice %0 {offsets = [0, 0, 0, 0], sizes = [2, 8, 8, 64], strides = [1, 1, 1, 1]} : vector<2x9x9x64xf32> to vector<2x8x8x64xf32>
    %2 = vector.shape_cast %1 : vector<2x8x8x64xf32> to vector<128x64xf32>
    %3 = vector.extract_strided_slice %0 {offsets = [0, 0, 1, 0], sizes = [2, 8, 8, 64], strides = [1, 1, 1, 1]} : vector<2x9x9x64xf32> to vector<2x8x8x64xf32>
    %4 = vector.shape_cast %3 : vector<2x8x8x64xf32> to vector<128x64xf32>
    %5 = vector.extract_strided_slice %0 {offsets = [0, 1, 0, 0], sizes = [2, 8, 8, 64], strides = [1, 1, 1, 1]} : vector<2x9x9x64xf32> to vector<2x8x8x64xf32>
    %6 = vector.shape_cast %5 : vector<2x8x8x64xf32> to vector<128x64xf32>
    %7 = vector.extract_strided_slice %0 {offsets = [0, 1, 1, 0], sizes = [2, 8, 8, 64], strides = [1, 1, 1, 1]} : vector<2x9x9x64xf32> to vector<2x8x8x64xf32>
    %8 = vector.shape_cast %7 : vector<2x8x8x64xf32> to vector<128x64xf32>
    %9 = tpu.concatenate %2, %4, %6, %8 in 1 : vector<128x64xf32>, vector<128x64xf32>, vector<128x64xf32>, vector<128x64xf32> -> vector<128x256xf32>
    %10 = arith.truncf %9 : vector<128x256xf32> to vector<128x256xbf16>
    %c0_3 = arith.constant 0 : index
    %c0_4 = arith.constant 0 : index
    %11 = vector.load %arg1[%c0_3, %c0_4] : memref<256x32xbf16, #tpu.memory_space<vmem>>, vector<256x32xbf16>
    %cst = arith.constant dense<0.000000e+00> : vector<128x32xf32>
    %12 = tpu.matmul %10, %11, %cst {dimension_numbers = #tpu.dot_dimension_numbers<[1], [0], [0], [1], [0, 0, 1, 1], [], []>} : vector<128x256xbf16>, vector<256x32xbf16>, vector<128x32xf32> -> vector<128x32xf32>
    %c0_5 = arith.constant 0 : index
    %c0_6 = arith.constant 0 : index
    %13 = vector.load %arg2[%c0_5, %c0_6] : memref<1x32xf32, #tpu.memory_space<vmem>>, vector<1x32xf32>
    %14 = vector.broadcast %13 : vector<1x32xf32> to vector<128x32xf32>
    %15 = arith.addf %12, %14 : vector<128x32xf32>
    %cst_7 = arith.constant 0.000000e+00 : f32
    %16 = vector.broadcast %cst_7 : f32 to vector<128x32xf32>
    %17 = arith.maximumf %15, %16 : vector<128x32xf32>
    %18 = vector.shape_cast %17 : vector<128x32xf32> to vector<2x8x8x32xf32>
    %19 = vector.extract_strided_slice %18 {offsets = [0, 0, 0, 0], sizes = [2, 1, 1, 32], strides = [1, 1, 1, 1]} : vector<2x8x8x32xf32> to vector<2x1x1x32xf32>
    %20 = vector.shape_cast %19 : vector<2x1x1x32xf32> to vector<2x32xf32>
    %21 = vector.extract_strided_slice %18 {offsets = [0, 0, 1, 0], sizes = [2, 1, 1, 32], strides = [1, 1, 1, 1]} : vector<2x8x8x32xf32> to vector<2x1x1x32xf32>
    %22 = vector.shape_cast %21 : vector<2x1x1x32xf32> to vector<2x32xf32>
    %23 = vector.extract_strided_slice %18 {offsets = [0, 0, 2, 0], sizes = [2, 1, 1, 32], strides = [1, 1, 1, 1]} : vector<2x8x8x32xf32> to vector<2x1x1x32xf32>
    %24 = vector.shape_cast %23 : vector<2x1x1x32xf32> to vector<2x32xf32>
    %25 = vector.extract_strided_slice %18 {offsets = [0, 0, 3, 0], sizes = [2, 1, 1, 32], strides = [1, 1, 1, 1]} : vector<2x8x8x32xf32> to vector<2x1x1x32xf32>
    %26 = vector.shape_cast %25 : vector<2x1x1x32xf32> to vector<2x32xf32>
    %27 = vector.extract_strided_slice %18 {offsets = [0, 0, 4, 0], sizes = [2, 1, 1, 32], strides = [1, 1, 1, 1]} : vector<2x8x8x32xf32> to vector<2x1x1x32xf32>
    %28 = vector.shape_cast %27 : vector<2x1x1x32xf32> to vector<2x32xf32>
    %29 = vector.extract_strided_slice %18 {offsets = [0, 0, 5, 0], sizes = [2, 1, 1, 32], strides = [1, 1, 1, 1]} : vector<2x8x8x32xf32> to vector<2x1x1x32xf32>
    %30 = vector.shape_cast %29 : vector<2x1x1x32xf32> to vector<2x32xf32>
    %31 = vector.extract_strided_slice %18 {offsets = [0, 0, 6, 0], sizes = [2, 1, 1, 32], strides = [1, 1, 1, 1]} : vector<2x8x8x32xf32> to vector<2x1x1x32xf32>
    %32 = vector.shape_cast %31 : vector<2x1x1x32xf32> to vector<2x32xf32>
    %33 = vector.extract_strided_slice %18 {offsets = [0, 0, 7, 0], sizes = [2, 1, 1, 32], strides = [1, 1, 1, 1]} : vector<2x8x8x32xf32> to vector<2x1x1x32xf32>
    %34 = vector.shape_cast %33 : vector<2x1x1x32xf32> to vector<2x32xf32>
    %35 = vector.extract_strided_slice %18 {offsets = [0, 1, 0, 0], sizes = [2, 1, 1, 32], strides = [1, 1, 1, 1]} : vector<2x8x8x32xf32> to vector<2x1x1x32xf32>
    %36 = vector.shape_cast %35 : vector<2x1x1x32xf32> to vector<2x32xf32>
    %37 = vector.extract_strided_slice %18 {offsets = [0, 1, 1, 0], sizes = [2, 1, 1, 32], strides = [1, 1, 1, 1]} : vector<2x8x8x32xf32> to vector<2x1x1x32xf32>
    %38 = vector.shape_cast %37 : vector<2x1x1x32xf32> to vector<2x32xf32>
    %39 = vector.extract_strided_slice %18 {offsets = [0, 1, 2, 0], sizes = [2, 1, 1, 32], strides = [1, 1, 1, 1]} : vector<2x8x8x32xf32> to vector<2x1x1x32xf32>
    %40 = vector.shape_cast %39 : vector<2x1x1x32xf32> to vector<2x32xf32>
    %41 = vector.extract_strided_slice %18 {offsets = [0, 1, 3, 0], sizes = [2, 1, 1, 32], strides = [1, 1, 1, 1]} : vector<2x8x8x32xf32> to vector<2x1x1x32xf32>
    %42 = vector.shape_cast %41 : vector<2x1x1x32xf32> to vector<2x32xf32>
    %43 = vector.extract_strided_slice %18 {offsets = [0, 1, 4, 0], sizes = [2, 1, 1, 32], strides = [1, 1, 1, 1]} : vector<2x8x8x32xf32> to vector<2x1x1x32xf32>
    %44 = vector.shape_cast %43 : vector<2x1x1x32xf32> to vector<2x32xf32>
    %45 = vector.extract_strided_slice %18 {offsets = [0, 1, 5, 0], sizes = [2, 1, 1, 32], strides = [1, 1, 1, 1]} : vector<2x8x8x32xf32> to vector<2x1x1x32xf32>
    %46 = vector.shape_cast %45 : vector<2x1x1x32xf32> to vector<2x32xf32>
    %47 = vector.extract_strided_slice %18 {offsets = [0, 1, 6, 0], sizes = [2, 1, 1, 32], strides = [1, 1, 1, 1]} : vector<2x8x8x32xf32> to vector<2x1x1x32xf32>
    %48 = vector.shape_cast %47 : vector<2x1x1x32xf32> to vector<2x32xf32>
    %49 = vector.extract_strided_slice %18 {offsets = [0, 1, 7, 0], sizes = [2, 1, 1, 32], strides = [1, 1, 1, 1]} : vector<2x8x8x32xf32> to vector<2x1x1x32xf32>
    %50 = vector.shape_cast %49 : vector<2x1x1x32xf32> to vector<2x32xf32>
    %51 = vector.extract_strided_slice %18 {offsets = [0, 2, 0, 0], sizes = [2, 1, 1, 32], strides = [1, 1, 1, 1]} : vector<2x8x8x32xf32> to vector<2x1x1x32xf32>
    %52 = vector.shape_cast %51 : vector<2x1x1x32xf32> to vector<2x32xf32>
    %53 = vector.extract_strided_slice %18 {offsets = [0, 2, 1, 0], sizes = [2, 1, 1, 32], strides = [1, 1, 1, 1]} : vector<2x8x8x32xf32> to vector<2x1x1x32xf32>
    %54 = vector.shape_cast %53 : vector<2x1x1x32xf32> to vector<2x32xf32>
    %55 = vector.extract_strided_slice %18 {offsets = [0, 2, 2, 0], sizes = [2, 1, 1, 32], strides = [1, 1, 1, 1]} : vector<2x8x8x32xf32> to vector<2x1x1x32xf32>
    %56 = vector.shape_cast %55 : vector<2x1x1x32xf32> to vector<2x32xf32>
    %57 = vector.extract_strided_slice %18 {offsets = [0, 2, 3, 0], sizes = [2, 1, 1, 32], strides = [1, 1, 1, 1]} : vector<2x8x8x32xf32> to vector<2x1x1x32xf32>
    %58 = vector.shape_cast %57 : vector<2x1x1x32xf32> to vector<2x32xf32>
    %59 = vector.extract_strided_slice %18 {offsets = [0, 2, 4, 0], sizes = [2, 1, 1, 32], strides = [1, 1, 1, 1]} : vector<2x8x8x32xf32> to vector<2x1x1x32xf32>
    %60 = vector.shape_cast %59 : vector<2x1x1x32xf32> to vector<2x32xf32>
    %61 = vector.extract_strided_slice %18 {offsets = [0, 2, 5, 0], sizes = [2, 1, 1, 32], strides = [1, 1, 1, 1]} : vector<2x8x8x32xf32> to vector<2x1x1x32xf32>
    %62 = vector.shape_cast %61 : vector<2x1x1x32xf32> to vector<2x32xf32>
    %63 = vector.extract_strided_slice %18 {offsets = [0, 2, 6, 0], sizes = [2, 1, 1, 32], strides = [1, 1, 1, 1]} : vector<2x8x8x32xf32> to vector<2x1x1x32xf32>
    %64 = vector.shape_cast %63 : vector<2x1x1x32xf32> to vector<2x32xf32>
    %65 = vector.extract_strided_slice %18 {offsets = [0, 2, 7, 0], sizes = [2, 1, 1, 32], strides = [1, 1, 1, 1]} : vector<2x8x8x32xf32> to vector<2x1x1x32xf32>
    %66 = vector.shape_cast %65 : vector<2x1x1x32xf32> to vector<2x32xf32>
    %67 = vector.extract_strided_slice %18 {offsets = [0, 3, 0, 0], sizes = [2, 1, 1, 32], strides = [1, 1, 1, 1]} : vector<2x8x8x32xf32> to vector<2x1x1x32xf32>
    %68 = vector.shape_cast %67 : vector<2x1x1x32xf32> to vector<2x32xf32>
    %69 = vector.extract_strided_slice %18 {offsets = [0, 3, 1, 0], sizes = [2, 1, 1, 32], strides = [1, 1, 1, 1]} : vector<2x8x8x32xf32> to vector<2x1x1x32xf32>
    %70 = vector.shape_cast %69 : vector<2x1x1x32xf32> to vector<2x32xf32>
    %71 = vector.extract_strided_slice %18 {offsets = [0, 3, 2, 0], sizes = [2, 1, 1, 32], strides = [1, 1, 1, 1]} : vector<2x8x8x32xf32> to vector<2x1x1x32xf32>
    %72 = vector.shape_cast %71 : vector<2x1x1x32xf32> to vector<2x32xf32>
    %73 = vector.extract_strided_slice %18 {offsets = [0, 3, 3, 0], sizes = [2, 1, 1, 32], strides = [1, 1, 1, 1]} : vector<2x8x8x32xf32> to vector<2x1x1x32xf32>
    %74 = vector.shape_cast %73 : vector<2x1x1x32xf32> to vector<2x32xf32>
    %75 = vector.extract_strided_slice %18 {offsets = [0, 3, 4, 0], sizes = [2, 1, 1, 32], strides = [1, 1, 1, 1]} : vector<2x8x8x32xf32> to vector<2x1x1x32xf32>
    %76 = vector.shape_cast %75 : vector<2x1x1x32xf32> to vector<2x32xf32>
    %77 = vector.extract_strided_slice %18 {offsets = [0, 3, 5, 0], sizes = [2, 1, 1, 32], strides = [1, 1, 1, 1]} : vector<2x8x8x32xf32> to vector<2x1x1x32xf32>
    %78 = vector.shape_cast %77 : vector<2x1x1x32xf32> to vector<2x32xf32>
    %79 = vector.extract_strided_slice %18 {offsets = [0, 3, 6, 0], sizes = [2, 1, 1, 32], strides = [1, 1, 1, 1]} : vector<2x8x8x32xf32> to vector<2x1x1x32xf32>
    %80 = vector.shape_cast %79 : vector<2x1x1x32xf32> to vector<2x32xf32>
    %81 = vector.extract_strided_slice %18 {offsets = [0, 3, 7, 0], sizes = [2, 1, 1, 32], strides = [1, 1, 1, 1]} : vector<2x8x8x32xf32> to vector<2x1x1x32xf32>
    %82 = vector.shape_cast %81 : vector<2x1x1x32xf32> to vector<2x32xf32>
    %83 = vector.extract_strided_slice %18 {offsets = [0, 4, 0, 0], sizes = [2, 1, 1, 32], strides = [1, 1, 1, 1]} : vector<2x8x8x32xf32> to vector<2x1x1x32xf32>
    %84 = vector.shape_cast %83 : vector<2x1x1x32xf32> to vector<2x32xf32>
    %85 = vector.extract_strided_slice %18 {offsets = [0, 4, 1, 0], sizes = [2, 1, 1, 32], strides = [1, 1, 1, 1]} : vector<2x8x8x32xf32> to vector<2x1x1x32xf32>
    %86 = vector.shape_cast %85 : vector<2x1x1x32xf32> to vector<2x32xf32>
    %87 = vector.extract_strided_slice %18 {offsets = [0, 4, 2, 0], sizes = [2, 1, 1, 32], strides = [1, 1, 1, 1]} : vector<2x8x8x32xf32> to vector<2x1x1x32xf32>
    %88 = vector.shape_cast %87 : vector<2x1x1x32xf32> to vector<2x32xf32>
    %89 = vector.extract_strided_slice %18 {offsets = [0, 4, 3, 0], sizes = [2, 1, 1, 32], strides = [1, 1, 1, 1]} : vector<2x8x8x32xf32> to vector<2x1x1x32xf32>
    %90 = vector.shape_cast %89 : vector<2x1x1x32xf32> to vector<2x32xf32>
    %91 = vector.extract_strided_slice %18 {offsets = [0, 4, 4, 0], sizes = [2, 1, 1, 32], strides = [1, 1, 1, 1]} : vector<2x8x8x32xf32> to vector<2x1x1x32xf32>
    %92 = vector.shape_cast %91 : vector<2x1x1x32xf32> to vector<2x32xf32>
    %93 = vector.extract_strided_slice %18 {offsets = [0, 4, 5, 0], sizes = [2, 1, 1, 32], strides = [1, 1, 1, 1]} : vector<2x8x8x32xf32> to vector<2x1x1x32xf32>
    %94 = vector.shape_cast %93 : vector<2x1x1x32xf32> to vector<2x32xf32>
    %95 = vector.extract_strided_slice %18 {offsets = [0, 4, 6, 0], sizes = [2, 1, 1, 32], strides = [1, 1, 1, 1]} : vector<2x8x8x32xf32> to vector<2x1x1x32xf32>
    %96 = vector.shape_cast %95 : vector<2x1x1x32xf32> to vector<2x32xf32>
    %97 = vector.extract_strided_slice %18 {offsets = [0, 4, 7, 0], sizes = [2, 1, 1, 32], strides = [1, 1, 1, 1]} : vector<2x8x8x32xf32> to vector<2x1x1x32xf32>
    %98 = vector.shape_cast %97 : vector<2x1x1x32xf32> to vector<2x32xf32>
    %99 = vector.extract_strided_slice %18 {offsets = [0, 5, 0, 0], sizes = [2, 1, 1, 32], strides = [1, 1, 1, 1]} : vector<2x8x8x32xf32> to vector<2x1x1x32xf32>
    %100 = vector.shape_cast %99 : vector<2x1x1x32xf32> to vector<2x32xf32>
    %101 = vector.extract_strided_slice %18 {offsets = [0, 5, 1, 0], sizes = [2, 1, 1, 32], strides = [1, 1, 1, 1]} : vector<2x8x8x32xf32> to vector<2x1x1x32xf32>
    %102 = vector.shape_cast %101 : vector<2x1x1x32xf32> to vector<2x32xf32>
    %103 = vector.extract_strided_slice %18 {offsets = [0, 5, 2, 0], sizes = [2, 1, 1, 32], strides = [1, 1, 1, 1]} : vector<2x8x8x32xf32> to vector<2x1x1x32xf32>
    %104 = vector.shape_cast %103 : vector<2x1x1x32xf32> to vector<2x32xf32>
    %105 = vector.extract_strided_slice %18 {offsets = [0, 5, 3, 0], sizes = [2, 1, 1, 32], strides = [1, 1, 1, 1]} : vector<2x8x8x32xf32> to vector<2x1x1x32xf32>
    %106 = vector.shape_cast %105 : vector<2x1x1x32xf32> to vector<2x32xf32>
    %107 = vector.extract_strided_slice %18 {offsets = [0, 5, 4, 0], sizes = [2, 1, 1, 32], strides = [1, 1, 1, 1]} : vector<2x8x8x32xf32> to vector<2x1x1x32xf32>
    %108 = vector.shape_cast %107 : vector<2x1x1x32xf32> to vector<2x32xf32>
    %109 = vector.extract_strided_slice %18 {offsets = [0, 5, 5, 0], sizes = [2, 1, 1, 32], strides = [1, 1, 1, 1]} : vector<2x8x8x32xf32> to vector<2x1x1x32xf32>
    %110 = vector.shape_cast %109 : vector<2x1x1x32xf32> to vector<2x32xf32>
    %111 = vector.extract_strided_slice %18 {offsets = [0, 5, 6, 0], sizes = [2, 1, 1, 32], strides = [1, 1, 1, 1]} : vector<2x8x8x32xf32> to vector<2x1x1x32xf32>
    %112 = vector.shape_cast %111 : vector<2x1x1x32xf32> to vector<2x32xf32>
    %113 = vector.extract_strided_slice %18 {offsets = [0, 5, 7, 0], sizes = [2, 1, 1, 32], strides = [1, 1, 1, 1]} : vector<2x8x8x32xf32> to vector<2x1x1x32xf32>
    %114 = vector.shape_cast %113 : vector<2x1x1x32xf32> to vector<2x32xf32>
    %115 = vector.extract_strided_slice %18 {offsets = [0, 6, 0, 0], sizes = [2, 1, 1, 32], strides = [1, 1, 1, 1]} : vector<2x8x8x32xf32> to vector<2x1x1x32xf32>
    %116 = vector.shape_cast %115 : vector<2x1x1x32xf32> to vector<2x32xf32>
    %117 = vector.extract_strided_slice %18 {offsets = [0, 6, 1, 0], sizes = [2, 1, 1, 32], strides = [1, 1, 1, 1]} : vector<2x8x8x32xf32> to vector<2x1x1x32xf32>
    %118 = vector.shape_cast %117 : vector<2x1x1x32xf32> to vector<2x32xf32>
    %119 = vector.extract_strided_slice %18 {offsets = [0, 6, 2, 0], sizes = [2, 1, 1, 32], strides = [1, 1, 1, 1]} : vector<2x8x8x32xf32> to vector<2x1x1x32xf32>
    %120 = vector.shape_cast %119 : vector<2x1x1x32xf32> to vector<2x32xf32>
    %121 = vector.extract_strided_slice %18 {offsets = [0, 6, 3, 0], sizes = [2, 1, 1, 32], strides = [1, 1, 1, 1]} : vector<2x8x8x32xf32> to vector<2x1x1x32xf32>
    %122 = vector.shape_cast %121 : vector<2x1x1x32xf32> to vector<2x32xf32>
    %123 = vector.extract_strided_slice %18 {offsets = [0, 6, 4, 0], sizes = [2, 1, 1, 32], strides = [1, 1, 1, 1]} : vector<2x8x8x32xf32> to vector<2x1x1x32xf32>
    %124 = vector.shape_cast %123 : vector<2x1x1x32xf32> to vector<2x32xf32>
    %125 = vector.extract_strided_slice %18 {offsets = [0, 6, 5, 0], sizes = [2, 1, 1, 32], strides = [1, 1, 1, 1]} : vector<2x8x8x32xf32> to vector<2x1x1x32xf32>
    %126 = vector.shape_cast %125 : vector<2x1x1x32xf32> to vector<2x32xf32>
    %127 = vector.extract_strided_slice %18 {offsets = [0, 6, 6, 0], sizes = [2, 1, 1, 32], strides = [1, 1, 1, 1]} : vector<2x8x8x32xf32> to vector<2x1x1x32xf32>
    %128 = vector.shape_cast %127 : vector<2x1x1x32xf32> to vector<2x32xf32>
    %129 = vector.extract_strided_slice %18 {offsets = [0, 6, 7, 0], sizes = [2, 1, 1, 32], strides = [1, 1, 1, 1]} : vector<2x8x8x32xf32> to vector<2x1x1x32xf32>
    %130 = vector.shape_cast %129 : vector<2x1x1x32xf32> to vector<2x32xf32>
    %131 = vector.extract_strided_slice %18 {offsets = [0, 7, 0, 0], sizes = [2, 1, 1, 32], strides = [1, 1, 1, 1]} : vector<2x8x8x32xf32> to vector<2x1x1x32xf32>
    %132 = vector.shape_cast %131 : vector<2x1x1x32xf32> to vector<2x32xf32>
    %133 = vector.extract_strided_slice %18 {offsets = [0, 7, 1, 0], sizes = [2, 1, 1, 32], strides = [1, 1, 1, 1]} : vector<2x8x8x32xf32> to vector<2x1x1x32xf32>
    %134 = vector.shape_cast %133 : vector<2x1x1x32xf32> to vector<2x32xf32>
    %135 = vector.extract_strided_slice %18 {offsets = [0, 7, 2, 0], sizes = [2, 1, 1, 32], strides = [1, 1, 1, 1]} : vector<2x8x8x32xf32> to vector<2x1x1x32xf32>
    %136 = vector.shape_cast %135 : vector<2x1x1x32xf32> to vector<2x32xf32>
    %137 = vector.extract_strided_slice %18 {offsets = [0, 7, 3, 0], sizes = [2, 1, 1, 32], strides = [1, 1, 1, 1]} : vector<2x8x8x32xf32> to vector<2x1x1x32xf32>
    %138 = vector.shape_cast %137 : vector<2x1x1x32xf32> to vector<2x32xf32>
    %139 = vector.extract_strided_slice %18 {offsets = [0, 7, 4, 0], sizes = [2, 1, 1, 32], strides = [1, 1, 1, 1]} : vector<2x8x8x32xf32> to vector<2x1x1x32xf32>
    %140 = vector.shape_cast %139 : vector<2x1x1x32xf32> to vector<2x32xf32>
    %141 = vector.extract_strided_slice %18 {offsets = [0, 7, 5, 0], sizes = [2, 1, 1, 32], strides = [1, 1, 1, 1]} : vector<2x8x8x32xf32> to vector<2x1x1x32xf32>
    %142 = vector.shape_cast %141 : vector<2x1x1x32xf32> to vector<2x32xf32>
    %143 = vector.extract_strided_slice %18 {offsets = [0, 7, 6, 0], sizes = [2, 1, 1, 32], strides = [1, 1, 1, 1]} : vector<2x8x8x32xf32> to vector<2x1x1x32xf32>
    %144 = vector.shape_cast %143 : vector<2x1x1x32xf32> to vector<2x32xf32>
    %145 = vector.extract_strided_slice %18 {offsets = [0, 7, 7, 0], sizes = [2, 1, 1, 32], strides = [1, 1, 1, 1]} : vector<2x8x8x32xf32> to vector<2x1x1x32xf32>
    %146 = vector.shape_cast %145 : vector<2x1x1x32xf32> to vector<2x32xf32>
    %147 = tpu.concatenate %20, %22, %24, %26, %36, %38, %40, %42, %52, %54, %56, %58, %68, %70, %72, %74 in 1 : vector<2x32xf32>, vector<2x32xf32>, vector<2x32xf32>, vector<2x32xf32>, vector<2x32xf32>, vector<2x32xf32>, vector<2x32xf32>, vector<2x32xf32>, vector<2x32xf32>, vector<2x32xf32>, vector<2x32xf32>, vector<2x32xf32>, vector<2x32xf32>, vector<2x32xf32>, vector<2x32xf32>, vector<2x32xf32> -> vector<2x512xf32>
    %148 = tpu.concatenate %24, %26, %28, %30, %40, %42, %44, %46, %56, %58, %60, %62, %72, %74, %76, %78 in 1 : vector<2x32xf32>, vector<2x32xf32>, vector<2x32xf32>, vector<2x32xf32>, vector<2x32xf32>, vector<2x32xf32>, vector<2x32xf32>, vector<2x32xf32>, vector<2x32xf32>, vector<2x32xf32>, vector<2x32xf32>, vector<2x32xf32>, vector<2x32xf32>, vector<2x32xf32>, vector<2x32xf32>, vector<2x32xf32> -> vector<2x512xf32>
    %149 = tpu.concatenate %28, %30, %32, %34, %44, %46, %48, %50, %60, %62, %64, %66, %76, %78, %80, %82 in 1 : vector<2x32xf32>, vector<2x32xf32>, vector<2x32xf32>, vector<2x32xf32>, vector<2x32xf32>, vector<2x32xf32>, vector<2x32xf32>, vector<2x32xf32>, vector<2x32xf32>, vector<2x32xf32>, vector<2x32xf32>, vector<2x32xf32>, vector<2x32xf32>, vector<2x32xf32>, vector<2x32xf32>, vector<2x32xf32> -> vector<2x512xf32>
    %150 = tpu.concatenate %52, %54, %56, %58, %68, %70, %72, %74, %84, %86, %88, %90, %100, %102, %104, %106 in 1 : vector<2x32xf32>, vector<2x32xf32>, vector<2x32xf32>, vector<2x32xf32>, vector<2x32xf32>, vector<2x32xf32>, vector<2x32xf32>, vector<2x32xf32>, vector<2x32xf32>, vector<2x32xf32>, vector<2x32xf32>, vector<2x32xf32>, vector<2x32xf32>, vector<2x32xf32>, vector<2x32xf32>, vector<2x32xf32> -> vector<2x512xf32>
    %151 = tpu.concatenate %56, %58, %60, %62, %72, %74, %76, %78, %88, %90, %92, %94, %104, %106, %108, %110 in 1 : vector<2x32xf32>, vector<2x32xf32>, vector<2x32xf32>, vector<2x32xf32>, vector<2x32xf32>, vector<2x32xf32>, vector<2x32xf32>, vector<2x32xf32>, vector<2x32xf32>, vector<2x32xf32>, vector<2x32xf32>, vector<2x32xf32>, vector<2x32xf32>, vector<2x32xf32>, vector<2x32xf32>, vector<2x32xf32> -> vector<2x512xf32>
    %152 = tpu.concatenate %60, %62, %64, %66, %76, %78, %80, %82, %92, %94, %96, %98, %108, %110, %112, %114 in 1 : vector<2x32xf32>, vector<2x32xf32>, vector<2x32xf32>, vector<2x32xf32>, vector<2x32xf32>, vector<2x32xf32>, vector<2x32xf32>, vector<2x32xf32>, vector<2x32xf32>, vector<2x32xf32>, vector<2x32xf32>, vector<2x32xf32>, vector<2x32xf32>, vector<2x32xf32>, vector<2x32xf32>, vector<2x32xf32> -> vector<2x512xf32>
    %153 = tpu.concatenate %84, %86, %88, %90, %100, %102, %104, %106, %116, %118, %120, %122, %132, %134, %136, %138 in 1 : vector<2x32xf32>, vector<2x32xf32>, vector<2x32xf32>, vector<2x32xf32>, vector<2x32xf32>, vector<2x32xf32>, vector<2x32xf32>, vector<2x32xf32>, vector<2x32xf32>, vector<2x32xf32>, vector<2x32xf32>, vector<2x32xf32>, vector<2x32xf32>, vector<2x32xf32>, vector<2x32xf32>, vector<2x32xf32> -> vector<2x512xf32>
    %154 = tpu.concatenate %88, %90, %92, %94, %104, %106, %108, %110, %120, %122, %124, %126, %136, %138, %140, %142 in 1 : vector<2x32xf32>, vector<2x32xf32>, vector<2x32xf32>, vector<2x32xf32>, vector<2x32xf32>, vector<2x32xf32>, vector<2x32xf32>, vector<2x32xf32>, vector<2x32xf32>, vector<2x32xf32>, vector<2x32xf32>, vector<2x32xf32>, vector<2x32xf32>, vector<2x32xf32>, vector<2x32xf32>, vector<2x32xf32> -> vector<2x512xf32>
    %155 = tpu.concatenate %92, %94, %96, %98, %108, %110, %112, %114, %124, %126, %128, %130, %140, %142, %144, %146 in 1 : vector<2x32xf32>, vector<2x32xf32>, vector<2x32xf32>, vector<2x32xf32>, vector<2x32xf32>, vector<2x32xf32>, vector<2x32xf32>, vector<2x32xf32>, vector<2x32xf32>, vector<2x32xf32>, vector<2x32xf32>, vector<2x32xf32>, vector<2x32xf32>, vector<2x32xf32>, vector<2x32xf32>, vector<2x32xf32> -> vector<2x512xf32>
    %156 = tpu.concatenate %147, %148, %149, %150, %151, %152, %153, %154, %155 in 0 : vector<2x512xf32>, vector<2x512xf32>, vector<2x512xf32>, vector<2x512xf32>, vector<2x512xf32>, vector<2x512xf32>, vector<2x512xf32>, vector<2x512xf32>, vector<2x512xf32> -> vector<18x512xf32>
    %157 = arith.truncf %156 : vector<18x512xf32> to vector<18x512xbf16>
    %c0_8 = arith.constant 0 : index
    %c0_9 = arith.constant 0 : index
    %158 = vector.load %arg3[%c0_8, %c0_9] : memref<512x32xbf16, #tpu.memory_space<vmem>>, vector<512x32xbf16>
    %cst_10 = arith.constant dense<0.000000e+00> : vector<18x32xf32>
    %159 = tpu.matmul %157, %158, %cst_10 {dimension_numbers = #tpu.dot_dimension_numbers<[1], [0], [0], [1], [0, 0, 1, 1], [], []>} : vector<18x512xbf16>, vector<512x32xbf16>, vector<18x32xf32> -> vector<18x32xf32>
    %c0_11 = arith.constant 0 : index
    %c0_12 = arith.constant 0 : index
    %160 = vector.load %arg4[%c0_11, %c0_12] : memref<1x32xf32, #tpu.memory_space<vmem>>, vector<1x32xf32>
    %161 = vector.broadcast %160 : vector<1x32xf32> to vector<18x32xf32>
    %162 = arith.addf %159, %161 : vector<18x32xf32>
    %cst_13 = arith.constant 0.000000e+00 : f32
    %163 = vector.broadcast %cst_13 : f32 to vector<18x32xf32>
    %164 = arith.maximumf %162, %163 : vector<18x32xf32>
    %165 = vector.extract_strided_slice %164 {offsets = [0, 0], sizes = [2, 32], strides = [1, 1]} : vector<18x32xf32> to vector<2x32xf32>
    %166 = vector.extract_strided_slice %164 {offsets = [2, 0], sizes = [2, 32], strides = [1, 1]} : vector<18x32xf32> to vector<2x32xf32>
    %167 = vector.extract_strided_slice %164 {offsets = [4, 0], sizes = [2, 32], strides = [1, 1]} : vector<18x32xf32> to vector<2x32xf32>
    %168 = vector.extract_strided_slice %164 {offsets = [6, 0], sizes = [2, 32], strides = [1, 1]} : vector<18x32xf32> to vector<2x32xf32>
    %169 = vector.extract_strided_slice %164 {offsets = [8, 0], sizes = [2, 32], strides = [1, 1]} : vector<18x32xf32> to vector<2x32xf32>
    %170 = vector.extract_strided_slice %164 {offsets = [10, 0], sizes = [2, 32], strides = [1, 1]} : vector<18x32xf32> to vector<2x32xf32>
    %171 = vector.extract_strided_slice %164 {offsets = [12, 0], sizes = [2, 32], strides = [1, 1]} : vector<18x32xf32> to vector<2x32xf32>
    %172 = vector.extract_strided_slice %164 {offsets = [14, 0], sizes = [2, 32], strides = [1, 1]} : vector<18x32xf32> to vector<2x32xf32>
    %173 = vector.extract_strided_slice %164 {offsets = [16, 0], sizes = [2, 32], strides = [1, 1]} : vector<18x32xf32> to vector<2x32xf32>
    %174 = tpu.concatenate %165, %166, %167, %168, %169, %170, %171, %172, %173 in 1 : vector<2x32xf32>, vector<2x32xf32>, vector<2x32xf32>, vector<2x32xf32>, vector<2x32xf32>, vector<2x32xf32>, vector<2x32xf32>, vector<2x32xf32>, vector<2x32xf32> -> vector<2x288xf32>
    %175 = arith.truncf %174 : vector<2x288xf32> to vector<2x288xbf16>
    %c0_14 = arith.constant 0 : index
    %c0_15 = arith.constant 0 : index
    %176 = vector.load %arg5[%c0_14, %c0_15] : memref<288x32xbf16, #tpu.memory_space<vmem>>, vector<288x32xbf16>
    %cst_16 = arith.constant dense<0.000000e+00> : vector<2x32xf32>
    %177 = tpu.matmul %175, %176, %cst_16 {dimension_numbers = #tpu.dot_dimension_numbers<[1], [0], [0], [1], [0, 0, 1, 1], [], []>} : vector<2x288xbf16>, vector<288x32xbf16>, vector<2x32xf32> -> vector<2x32xf32>
    %c0_17 = arith.constant 0 : index
    %c0_18 = arith.constant 0 : index
    %178 = vector.load %arg6[%c0_17, %c0_18] : memref<1x32xf32, #tpu.memory_space<vmem>>, vector<1x32xf32>
    %179 = vector.broadcast %178 : vector<1x32xf32> to vector<2x32xf32>
    %180 = arith.addf %177, %179 : vector<2x32xf32>
    %cst_19 = arith.constant 0.000000e+00 : f32
    %181 = vector.broadcast %cst_19 : f32 to vector<2x32xf32>
    %182 = arith.maximumf %180, %181 : vector<2x32xf32>
    %183 = arith.truncf %182 : vector<2x32xf32> to vector<2x32xbf16>
    %c0_20 = arith.constant 0 : index
    %c0_21 = arith.constant 0 : index
    %184 = vector.load %arg7[%c0_20, %c0_21] : memref<32x512xbf16, #tpu.memory_space<vmem>>, vector<32x512xbf16>
    %cst_22 = arith.constant dense<0.000000e+00> : vector<2x512xf32>
    %185 = tpu.matmul %183, %184, %cst_22 {dimension_numbers = #tpu.dot_dimension_numbers<[1], [0], [0], [1], [0, 0, 1, 1], [], []>} : vector<2x32xbf16>, vector<32x512xbf16>, vector<2x512xf32> -> vector<2x512xf32>
    %c0_23 = arith.constant 0 : index
    %c0_24 = arith.constant 0 : index
    %186 = vector.load %arg8[%c0_23, %c0_24] : memref<1x512xf32, #tpu.memory_space<vmem>>, vector<1x512xf32>
    %187 = vector.broadcast %186 : vector<1x512xf32> to vector<2x512xf32>
    %188 = arith.addf %185, %187 : vector<2x512xf32>
    %cst_25 = arith.constant 0.000000e+00 : f32
    %189 = vector.broadcast %cst_25 : f32 to vector<2x512xf32>
    %190 = arith.maximumf %188, %189 : vector<2x512xf32>
    %191 = arith.truncf %190 : vector<2x512xf32> to vector<2x512xbf16>
    %c0_26 = arith.constant 0 : index
    %c0_27 = arith.constant 0 : index
    %192 = vector.load %arg9[%c0_26, %c0_27] : memref<512x512xbf16, #tpu.memory_space<vmem>>, vector<512x512xbf16>
    %cst_28 = arith.constant dense<0.000000e+00> : vector<2x512xf32>
    %193 = tpu.matmul %191, %192, %cst_28 {dimension_numbers = #tpu.dot_dimension_numbers<[1], [0], [0], [1], [0, 0, 1, 1], [], []>} : vector<2x512xbf16>, vector<512x512xbf16>, vector<2x512xf32> -> vector<2x512xf32>
    %c0_29 = arith.constant 0 : index
    %c0_30 = arith.constant 0 : index
    %194 = vector.load %arg10[%c0_29, %c0_30] : memref<1x512xf32, #tpu.memory_space<vmem>>, vector<1x512xf32>
    %195 = vector.broadcast %194 : vector<1x512xf32> to vector<2x512xf32>
    %196 = arith.addf %193, %195 : vector<2x512xf32>
    %cst_31 = arith.constant 0.000000e+00 : f32
    %197 = vector.broadcast %cst_31 : f32 to vector<2x512xf32>
    %198 = arith.maximumf %196, %197 : vector<2x512xf32>
    %199 = arith.truncf %198 : vector<2x512xf32> to vector<2x512xbf16>
    %c0_32 = arith.constant 0 : index
    %c0_33 = arith.constant 0 : index
    %200 = vector.load %arg11[%c0_32, %c0_33] : memref<512x128xbf16, #tpu.memory_space<vmem>>, vector<512x128xbf16>
    %cst_34 = arith.constant dense<0.000000e+00> : vector<2x128xf32>
    %201 = tpu.matmul %199, %200, %cst_34 {dimension_numbers = #tpu.dot_dimension_numbers<[1], [0], [0], [1], [0, 0, 1, 1], [], []>} : vector<2x512xbf16>, vector<512x128xbf16>, vector<2x128xf32> -> vector<2x128xf32>
    %c0_35 = arith.constant 0 : index
    %c0_36 = arith.constant 0 : index
    %202 = vector.load %arg12[%c0_35, %c0_36] : memref<1x128xf32, #tpu.memory_space<vmem>>, vector<1x128xf32>
    %203 = vector.broadcast %202 : vector<1x128xf32> to vector<2x128xf32>
    %204 = arith.addf %201, %203 : vector<2x128xf32>
    %205 = vector.extract_strided_slice %204 {offsets = [0, 0], sizes = [2, 2], strides = [1, 1]} : vector<2x128xf32> to vector<2x2xf32>
    %cst_37 = arith.constant dense<0xFF800000> : vector<2xf32>
    %206 = vector.multi_reduction <maximumf>, %205, %cst_37 [1] : vector<2x2xf32> to vector<2xf32>
    %207 = vector.shape_cast %206 : vector<2xf32> to vector<2x1xf32>
    %208 = vector.broadcast %207 : vector<2x1xf32> to vector<2x2xf32>
    %209 = arith.subf %205, %208 : vector<2x2xf32>
    %210 = math.exp %209 : vector<2x2xf32>
    %cst_38 = arith.constant dense<0.000000e+00> : vector<2xf32>
    %211 = vector.multi_reduction <add>, %210, %cst_38 [1] : vector<2x2xf32> to vector<2xf32>
    %212 = vector.shape_cast %211 : vector<2xf32> to vector<2x1xf32>
    %213 = tpu.reciprocal %212 {approx = true} : vector<2x1xf32> -> vector<2x1xf32>
    %214 = vector.broadcast %213 : vector<2x1xf32> to vector<2x2xf32>
    %215 = arith.mulf %210, %214 : vector<2x2xf32>
    %216 = vector.extract_strided_slice %204 {offsets = [0, 2], sizes = [2, 126], strides = [1, 1]} : vector<2x128xf32> to vector<2x126xf32>
    %217 = tpu.concatenate %215, %216 in 1 : vector<2x2xf32>, vector<2x126xf32> -> vector<2x128xf32>
    %c0_39 = arith.constant 0 : index
    %c0_40 = arith.constant 0 : index
    %218 = vector.load %arg13[%c0_39, %c0_40] : memref<2x128xf32, #tpu.memory_space<vmem>>, vector<2x128xf32>
    tpu.vector_store %arg13[%c0_39, %c0_40], %217 {strides = array<i32>} : memref<2x128xf32, #tpu.memory_space<vmem>>, vector<2x128xf32>,
    return
  }
}

</mosaic_0001>

<llo_original>
// kernel: net_forward.1
$region0: #{net_forward.1}
  #allocation0 [shape = 'u32[]', space=smem, size = 0x4, offset = 0x4, fixed_abs, tag = 'smem constant byte address 0x4 - core index']
  #allocation1 [shape = 'u32[144,128]{1,0:T(1,128)}', space=vmem, size = 0x12000, scoped, tag = 'internal scratch']
  %s0 = inlined_call_operand.vmem [shape: f32[2,9,9,64], index: 0, kind: input, shape index: {}]
  %s1 = inlined_call_operand.vmem [shape: bf16[256,32], index: 1, kind: input, shape index: {}]
  %s2 = inlined_call_operand.vmem [shape: f32[1,32], index: 2, kind: input, shape index: {}]
  %s3 = inlined_call_operand.vmem [shape: bf16[512,32], index: 3, kind: input, shape index: {}]
  %s4 = inlined_call_operand.vmem [shape: f32[1,32], index: 4, kind: input, shape index: {}]
  %s5 = inlined_call_operand.vmem [shape: bf16[288,32], index: 5, kind: input, shape index: {}]
  %s6 = inlined_call_operand.vmem [shape: f32[1,32], index: 6, kind: input, shape index: {}]
  %s7 = inlined_call_operand.vmem [shape: bf16[32,512], index: 7, kind: input, shape index: {}]
  %s8 = inlined_call_operand.vmem [shape: f32[1,512], index: 8, kind: input, shape index: {}]
  %s9 = inlined_call_operand.vmem [shape: bf16[512,512], index: 9, kind: input, shape index: {}]
  %s10 = inlined_call_operand.vmem [shape: f32[1,512], index: 10, kind: input, shape index: {}]
  %s11 = inlined_call_operand.vmem [shape: bf16[512,128], index: 11, kind: input, shape index: {}]
  %s12 = inlined_call_operand.vmem [shape: f32[1,128], index: 12, kind: input, shape index: {}]
  %s13 = inlined_call_operand.vmem [shape: f32[2,128], index: 13, kind: output, shape index: {}]
  %s14 = sld [smem:[#allocation0]]
  $region62: #{net_forward.1} parent=0
    _
  %s16 = ssub.s32 1, %s14
  %s17 = scalar_select 0, %s16, %s14
  // Predicated region
  $region2: #{net_forward.1} parent=0 // pred_check
    _
  $region3: #{net_forward.1} parent=0 // pred_check_branch
    %19 = sbr.rel (0) target = $region5
  $region4: #{net_forward.1} parent=0 // pred_region
    _
  $region5: #{net_forward.1} parent=0 // pred_fallthru
    _
  // Predicated region
  $region6: #{net_forward.1} parent=0 // pred_check
    _
  $region7: #{net_forward.1} parent=0 // pred_check_branch
    %21 = sbr.rel (0) target = $region9
  $region8: #{net_forward.1} parent=0 // pred_region
    _
  $region9: #{net_forward.1} parent=0 // pred_fallthru
    _
  // Predicated region
  $region10: #{net_forward.1} parent=0 // pred_check
    _
  $region11: #{net_forward.1} parent=0 // pred_check_branch
    %23 = sbr.rel (0) target = $region13
  $region12: #{net_forward.1} parent=0 // pred_region
    _
  $region13: #{net_forward.1} parent=0 // pred_fallthru
    _
  // Predicated region
  $region14: #{net_forward.1} parent=0 // pred_check
    _
  $region15: #{net_forward.1} parent=0 // pred_check_branch
    %25 = sbr.rel (0) target = $region17
  $region16: #{net_forward.1} parent=0 // pred_region
    _
  $region17: #{net_forward.1} parent=0 // pred_fallthru
    _
  // Predicated region
  $region18: #{net_forward.1} parent=0 // pred_check
    _
  $region19: #{net_forward.1} parent=0 // pred_check_branch
    %27 = sbr.rel (0) target = $region21
  $region20: #{net_forward.1} parent=0 // pred_region
    _
  $region21: #{net_forward.1} parent=0 // pred_fallthru
    _
  // Predicated region
  $region22: #{net_forward.1} parent=0 // pred_check
    _
  $region23: #{net_forward.1} parent=0 // pred_check_branch
    %29 = sbr.rel (0) target = $region25
  $region24: #{net_forward.1} parent=0 // pred_region
    _
  $region25: #{net_forward.1} parent=0 // pred_fallthru
    _
  // Predicated region
  $region26: #{net_forward.1} parent=0 // pred_check
    _
  $region27: #{net_forward.1} parent=0 // pred_check_branch
    %31 = sbr.rel (0) target = $region29
  $region28: #{net_forward.1} parent=0 // pred_region
    _
  $region29: #{net_forward.1} parent=0 // pred_fallthru
    _
  // Predicated region
  $region30: #{net_forward.1} parent=0 // pred_check
    _
  $region31: #{net_forward.1} parent=0 // pred_check_branch
    %33 = sbr.rel (0) target = $region33
  $region32: #{net_forward.1} parent=0 // pred_region
    _
  $region33: #{net_forward.1} parent=0 // pred_fallthru
    _
  // Predicated region
  $region34: #{net_forward.1} parent=0 // pred_check
    _
  $region35: #{net_forward.1} parent=0 // pred_check_branch
    %35 = sbr.rel (0) target = $region37
  $region36: #{net_forward.1} parent=0 // pred_region
    _
  $region37: #{net_forward.1} parent=0 // pred_fallthru
    _
  // Predicated region
  $region38: #{net_forward.1} parent=0 // pred_check
    _
  $region39: #{net_forward.1} parent=0 // pred_check_branch
    %37 = sbr.rel (0) target = $region41
  $region40: #{net_forward.1} parent=0 // pred_region
    _
  $region41: #{net_forward.1} parent=0 // pred_fallthru
    _
  // Predicated region
  $region42: #{net_forward.1} parent=0 // pred_check
    _
  $region43: #{net_forward.1} parent=0 // pred_check_branch
    %39 = sbr.rel (0) target = $region45
  $region44: #{net_forward.1} parent=0 // pred_region
    _
  $region45: #{net_forward.1} parent=0 // pred_fallthru
    _
  // Predicated region
  $region46: #{net_forward.1} parent=0 // pred_check
    _
  $region47: #{net_forward.1} parent=0 // pred_check_branch
    %41 = sbr.rel (0) target = $region49
  $region48: #{net_forward.1} parent=0 // pred_region
    _
  $region49: #{net_forward.1} parent=0 // pred_fallthru
    _
  // Predicated region
  $region50: #{net_forward.1} parent=0 // pred_check
    _
  $region51: #{net_forward.1} parent=0 // pred_check_branch
    %43 = sbr.rel (0) target = $region53
  $region52: #{net_forward.1} parent=0 // pred_region
    _
  $region53: #{net_forward.1} parent=0 // pred_fallthru
    _
  %v45 = vld [vmem:[%s0] sm:$0xff]
  %v46 = vld [vmem:[%s0 + $0x8] sm:$0x1]
  %v47 = vld [vmem:[%s0 + $0x10] sm:$0xff]
  %v48 = vld [vmem:[%s0 + $0x18] sm:$0x1]
  %v49 = vld [vmem:[%s0 + $0x20] sm:$0xff]
  %v50 = vld [vmem:[%s0 + $0x28] sm:$0x1]
  %v51 = vld [vmem:[%s0 + $0x30] sm:$0xff]
  %v52 = vld [vmem:[%s0 + $0x38] sm:$0x1]
  %v53 = vld [vmem:[%s0 + $0x40] sm:$0xff]
  %v54 = vld [vmem:[%s0 + $0x48] sm:$0x1]
  %v55 = vld [vmem:[%s0 + $0x50] sm:$0xff]
  %v56 = vld [vmem:[%s0 + $0x58] sm:$0x1]
  %v57 = vld [vmem:[%s0 + $0x60] sm:$0xff]
  %v58 = vld [vmem:[%s0 + $0x68] sm:$0x1]
  %v59 = vld [vmem:[%s0 + $0x70] sm:$0xff]
  %v60 = vld [vmem:[%s0 + $0x78] sm:$0x1]
  %v61 = vld [vmem:[%s0 + $0x80] sm:$0xff]
  %v62 = vld [vmem:[%s0 + $0x88] sm:$0x1]
  %v63 = vld [vmem:[%s0 + $0x90] sm:$0xff]
  %v64 = vld [vmem:[%s0 + $0x98] sm:$0x1]
  %v65 = vld [vmem:[%s0 + $0xa0] sm:$0xff]
  %v66 = vld [vmem:[%s0 + $0xa8] sm:$0x1]
  %v67 = vld [vmem:[%s0 + $0xb0] sm:$0xff]
  %v68 = vld [vmem:[%s0 + $0xb8] sm:$0x1]
  %v69 = vld [vmem:[%s0 + $0xc0] sm:$0xff]
  %v70 = vld [vmem:[%s0 + $0xc8] sm:$0x1]
  %v71 = vld [vmem:[%s0 + $0xd0] sm:$0xff]
  %v72 = vld [vmem:[%s0 + $0xd8] sm:$0x1]
  %v73 = vld [vmem:[%s0 + $0xe0] sm:$0xff]
  %v74 = vld [vmem:[%s0 + $0xe8] sm:$0x1]
  %v75 = vld [vmem:[%s0 + $0xf0] sm:$0xff]
  %v76 = vld [vmem:[%s0 + $0xf8] sm:$0x1]
  %v77 = vld [vmem:[%s0 + $0x100] sm:$0xff]
  %v78 = vld [vmem:[%s0 + $0x108] sm:$0x1]
  %v79 = vld [vmem:[%s0 + $0x110] sm:$0xff]
  %v80 = vld [vmem:[%s0 + $0x118] sm:$0x1]
  %vm113 = vcmask 1046528
  %v114 = vrot.slane %v45, 1
  %v115 = vrot.slane %v46, 1
  %v116 = vsel %vm113, %v114, %v115
  %v117 = vrot.slane %v47, 1
  %v118 = vrot.slane %v48, 1
  %v119 = vsel %vm113, %v117, %v118
  %v120 = vrot.slane %v49, 1
  %v121 = vrot.slane %v50, 1
  %v122 = vsel %vm113, %v120, %v121
  %v123 = vrot.slane %v51, 1
  %v124 = vrot.slane %v52, 1
  %v125 = vsel %vm113, %v123, %v124
  %v126 = vrot.slane %v53, 1
  %v127 = vrot.slane %v54, 1
  %v128 = vsel %vm113, %v126, %v127
  %v129 = vrot.slane %v55, 1
  %v130 = vrot.slane %v56, 1
  %v131 = vsel %vm113, %v129, %v130
  %v132 = vrot.slane %v57, 1
  %v133 = vrot.slane %v58, 1
  %v134 = vsel %vm113, %v132, %v133
  %v135 = vrot.slane %v59, 1
  %v136 = vrot.slane %v60, 1
  %v137 = vsel %vm113, %v135, %v136
  %v138 = vrot.slane %v63, 1
  %v139 = vrot.slane %v64, 1
  %v140 = vsel %vm113, %v138, %v139
  %v141 = vrot.slane %v65, 1
  %v142 = vrot.slane %v66, 1
  %v143 = vsel %vm113, %v141, %v142
  %v144 = vrot.slane %v67, 1
  %v145 = vrot.slane %v68, 1
  %v146 = vsel %vm113, %v144, %v145
  %v147 = vrot.slane %v69, 1
  %v148 = vrot.slane %v70, 1
  %v149 = vsel %vm113, %v147, %v148
  %v150 = vrot.slane %v71, 1
  %v151 = vrot.slane %v72, 1
  %v152 = vsel %vm113, %v150, %v151
  %v153 = vrot.slane %v73, 1
  %v154 = vrot.slane %v74, 1
  %v155 = vsel %vm113, %v153, %v154
  %v156 = vrot.slane %v75, 1
  %v157 = vrot.slane %v76, 1
  %v158 = vsel %vm113, %v156, %v157
  %v159 = vrot.slane %v77, 1
  %v160 = vrot.slane %v78, 1
  %v161 = vsel %vm113, %v159, %v160
  %v166 = vrot.slane %v61, 1
  %v167 = vrot.slane %v62, 1
  %v168 = vsel %vm113, %v166, %v167
  %v169 = vrot.slane %v79, 1
  %v170 = vrot.slane %v80, 1
  %v171 = vsel %vm113, %v169, %v170
  %172 = vrot.lane.b32.xlu0 %v116, 64
  %v173 = vpop.permute.xlu0 %172
  %174 = vrot.lane.b32.xlu0 %v119, 64
  %v175 = vpop.permute.xlu0 %174
  %176 = vrot.lane.b32.xlu0 %v122, 64
  %v177 = vpop.permute.xlu0 %176
  %178 = vrot.lane.b32.xlu0 %v125, 64
  %v179 = vpop.permute.xlu0 %178
  %180 = vrot.lane.b32.xlu0 %v128, 64
  %v181 = vpop.permute.xlu0 %180
  %182 = vrot.lane.b32.xlu0 %v131, 64
  %v183 = vpop.permute.xlu0 %182
  %184 = vrot.lane.b32.xlu0 %v134, 64
  %v185 = vpop.permute.xlu0 %184
  %186 = vrot.lane.b32.xlu0 %v137, 64
  %v187 = vpop.permute.xlu0 %186
  %188 = vrot.lane.b32.xlu0 %v140, 64
  %v189 = vpop.permute.xlu0 %188
  %190 = vrot.lane.b32.xlu0 %v143, 64
  %v191 = vpop.permute.xlu0 %190
  %192 = vrot.lane.b32.xlu0 %v146, 64
  %v193 = vpop.permute.xlu0 %192
  %194 = vrot.lane.b32.xlu0 %v149, 64
  %v195 = vpop.permute.xlu0 %194
  %196 = vrot.lane.b32.xlu0 %v152, 64
  %v197 = vpop.permute.xlu0 %196
  %198 = vrot.lane.b32.xlu0 %v155, 64
  %v199 = vpop.permute.xlu0 %198
  %200 = vrot.lane.b32.xlu0 %v158, 64
  %v201 = vpop.permute.xlu0 %200
  %202 = vrot.lane.b32.xlu0 %v161, 64
  %v203 = vpop.permute.xlu0 %202
  %220 = vrot.lane.b32.xlu0 %v168, 64
  %v221 = vpop.permute.xlu0 %220
  %222 = vrot.lane.b32.xlu0 %v171, 64
  %v223 = vpop.permute.xlu0 %222
  %vm226 = vcmask 523264
  %v227 = vsel %vm226, %v45, %v173
  %v228 = vsel %vm226, %v47, %v175
  %v229 = vsel %vm226, %v49, %v177
  %v230 = vsel %vm226, %v51, %v179
  %v231 = vsel %vm226, %v53, %v181
  %v232 = vsel %vm226, %v55, %v183
  %v233 = vsel %vm226, %v57, %v185
  %v234 = vsel %vm226, %v59, %v187
  %v235 = vsel %vm226, %v63, %v189
  %v236 = vsel %vm226, %v65, %v191
  %v237 = vsel %vm226, %v67, %v193
  %v238 = vsel %vm226, %v69, %v195
  %v239 = vsel %vm226, %v71, %v197
  %v240 = vsel %vm226, %v73, %v199
  %v241 = vsel %vm226, %v75, %v201
  %v242 = vsel %vm226, %v77, %v203
  %v243 = vsel %vm226, %v61, %v221
  %v244 = vsel %vm226, %v79, %v223
  %v245 = vpack.c.bf16 %v228, %v227
  %v246 = vpack.c.bf16 %v229, %v228
  %v247 = vpack.c.bf16 %v230, %v229
  %v248 = vpack.c.bf16 %v231, %v230
  %v249 = vpack.c.bf16 %v232, %v231
  %v250 = vpack.c.bf16 %v233, %v232
  %v251 = vpack.c.bf16 %v234, %v233
  %v252 = vpack.c.bf16 %v243, %v234
  %v253 = vpack.c.bf16 %v236, %v235
  %v254 = vpack.c.bf16 %v237, %v236
  %v255 = vpack.c.bf16 %v238, %v237
  %v256 = vpack.c.bf16 %v239, %v238
  %v257 = vpack.c.bf16 %v240, %v239
  %v258 = vpack.c.bf16 %v241, %v240
  %v259 = vpack.c.bf16 %v242, %v241
  %v260 = vpack.c.bf16 %v244, %v242
  %v261 = vld [vmem:[%s1] sm:$0xf]
  %v262 = vld [vmem:[%s1 + $0x4] sm:$0xf]
  %v263 = vld [vmem:[%s1 + $0x8] sm:$0xf]
  %v264 = vld [vmem:[%s1 + $0xc] sm:$0xf]
  %v265 = vld [vmem:[%s1 + $0x10] sm:$0xf]
  %v266 = vld [vmem:[%s1 + $0x14] sm:$0xf]
  %v267 = vld [vmem:[%s1 + $0x18] sm:$0xf]
  %v268 = vld [vmem:[%s1 + $0x1c] sm:$0xf]
  %v269 = vld [vmem:[%s1 + $0x20] sm:$0xf]
  %v270 = vld [vmem:[%s1 + $0x24] sm:$0xf]
  %v271 = vld [vmem:[%s1 + $0x28] sm:$0xf]
  %v272 = vld [vmem:[%s1 + $0x2c] sm:$0xf]
  %v273 = vld [vmem:[%s1 + $0x30] sm:$0xf]
  %v274 = vld [vmem:[%s1 + $0x34] sm:$0xf]
  %v275 = vld [vmem:[%s1 + $0x38] sm:$0xf]
  %v276 = vld [vmem:[%s1 + $0x3c] sm:$0xf]
  %v277 = vld [vmem:[%s1 + $0x40] sm:$0xf]
  %v278 = vld [vmem:[%s1 + $0x44] sm:$0xf]
  %v279 = vld [vmem:[%s1 + $0x48] sm:$0xf]
  %v280 = vld [vmem:[%s1 + $0x4c] sm:$0xf]
  %v281 = vld [vmem:[%s1 + $0x50] sm:$0xf]
  %v282 = vld [vmem:[%s1 + $0x54] sm:$0xf]
  %v283 = vld [vmem:[%s1 + $0x58] sm:$0xf]
  %v284 = vld [vmem:[%s1 + $0x5c] sm:$0xf]
  %v285 = vld [vmem:[%s1 + $0x60] sm:$0xf]
  %v286 = vld [vmem:[%s1 + $0x64] sm:$0xf]
  %v287 = vld [vmem:[%s1 + $0x68] sm:$0xf]
  %v288 = vld [vmem:[%s1 + $0x6c] sm:$0xf]
  %v289 = vld [vmem:[%s1 + $0x70] sm:$0xf]
  %v290 = vld [vmem:[%s1 + $0x74] sm:$0xf]
  %v291 = vld [vmem:[%s1 + $0x78] sm:$0xf]
  %v292 = vld [vmem:[%s1 + $0x7c] sm:$0xf]
  %v293 = vld [vmem:[%s2] sm:$0x1]
  %v295 = vlaneseq
  %v296 = vshrl.u32 %v295, 7
  %v297 = vsub.s32 0, %v296
  %v298 = vrot.slane %v293, %v297
  %v332 = vunpack.c.l.b16 %v261
  %v333 = vunpack.c.l.b16 %v262
  %v334 = vunpack.c.l.b16 %v263
  %v335 = vunpack.c.l.b16 %v264
  %v336 = vunpack.c.l.b16 %v265
  %v337 = vunpack.c.l.b16 %v266
  %v338 = vunpack.c.l.b16 %v267
  %v339 = vunpack.c.l.b16 %v268
  %v340 = vunpack.c.l.b16 %v269
  %v341 = vunpack.c.l.b16 %v270
  %v342 = vunpack.c.l.b16 %v271
  %v343 = vunpack.c.l.b16 %v272
  %v344 = vunpack.c.l.b16 %v273
  %v345 = vunpack.c.l.b16 %v274
  %v346 = vunpack.c.l.b16 %v275
  %v347 = vunpack.c.l.b16 %v276
  %v348 = vunpack.c.l.b16 %v277
  %v349 = vunpack.c.l.b16 %v278
  %v350 = vunpack.c.l.b16 %v279
  %v351 = vunpack.c.l.b16 %v280
  %v352 = vunpack.c.l.b16 %v281
  %v353 = vunpack.c.l.b16 %v282
  %v354 = vunpack.c.l.b16 %v283
  %v355 = vunpack.c.l.b16 %v284
  %v356 = vunpack.c.l.b16 %v285
  %v357 = vunpack.c.l.b16 %v286
  %v358 = vunpack.c.l.b16 %v287
  %v359 = vunpack.c.l.b16 %v288
  %v360 = vunpack.c.l.b16 %v289
  %v361 = vunpack.c.l.b16 %v290
  %v362 = vunpack.c.l.b16 %v291
  %v363 = vunpack.c.l.b16 %v292
  %v364 = vpack.c.b16 %v333, %v332
  %v365 = vpack.c.b16 %v335, %v334
  %v366 = vpack.c.b16 %v337, %v336
  %v367 = vpack.c.b16 %v339, %v338
  %v368 = vpack.c.b16 %v341, %v340
  %v369 = vpack.c.b16 %v343, %v342
  %v370 = vpack.c.b16 %v345, %v344
  %v371 = vpack.c.b16 %v347, %v346
  %v372 = vpack.c.b16 %v349, %v348
  %v373 = vpack.c.b16 %v351, %v350
  %v374 = vpack.c.b16 %v353, %v352
  %v375 = vpack.c.b16 %v355, %v354
  %v376 = vpack.c.b16 %v357, %v356
  %v377 = vpack.c.b16 %v359, %v358
  %v378 = vpack.c.b16 %v361, %v360
  %v379 = vpack.c.b16 %v363, %v362
  %396 = vmatprep.subr.bf16.mxu0 0
  %397 = vmatpush1.bf16.msra.mxu0 %v364
  %398 = vmatprep.subr.bf16.mxu0 0
  %399 = vmatpush1.bf16.msra.mxu0 %v365
  %400 = vmatprep.subr.bf16.mxu0 0
  %401 = vmatpush1.bf16.msra.mxu0 %v366
  %402 = vmatprep.subr.bf16.mxu0 0
  %403 = vmatpush1.bf16.msra.mxu0 %v367
  %404 = vmatprep.subr.bf16.mxu0 0
  %405 = vmatpush1.bf16.msra.mxu0 %v368
  %406 = vmatprep.subr.bf16.mxu0 0
  %407 = vmatpush1.bf16.msra.mxu0 %v369
  %408 = vmatprep.subr.bf16.mxu0 0
  %409 = vmatpush1.bf16.msra.mxu0 %v370
  %410 = vmatprep.subr.bf16.mxu0 0
  %411 = vmatpush1.bf16.msra.mxu0 %v371
  %412 = vmatprep.subr.bf16.mxu0 0
  %413 = vmatpush1.bf16.msra.mxu0 %v372
  %414 = vmatprep.subr.bf16.mxu0 0
  %415 = vmatpush1.bf16.msra.mxu0 %v373
  %416 = vmatprep.subr.bf16.mxu0 0
  %417 = vmatpush1.bf16.msra.mxu0 %v374
  %418 = vmatprep.subr.bf16.mxu0 0
  %419 = vmatpush1.bf16.msra.mxu0 %v375
  %420 = vmatprep.subr.bf16.mxu0 0
  %421 = vmatpush1.bf16.msra.mxu0 %v376
  %422 = vmatprep.subr.bf16.mxu0 0
  %423 = vmatpush1.bf16.msra.mxu0 %v377
  %424 = vmatprep.subr.bf16.mxu0 0
  %425 = vmatpush1.bf16.msra.mxu0 %v378
  %426 = vmatprep.subr.bf16.mxu0 0
  %427 = vmatpush1.bf16.msra.mxu0 %v379
  %428 = vmatprep.mubr.bf16.mxu0 %v246
  %429 = vmatmul.mubr.bf16.gmra.mrb[0].mxu0 %v245
  %v430 = vpop.f32.mrb[0].mxu0
  %v431 = vadd.f32 %v298, %v430
  %v432 = vpop.f32.mrb[0].mxu0
  %v433 = vpop.f32.mrb[0].mxu0
  %v434 = vadd.f32 %v298, %v433
  %v435 = vpop.f32.mrb[0].mxu0
  %436 = vmatprep.mubr.bf16.mxu0 %v248
  %437 = vmatmul.mubr.bf16.gmra.mrb[0].mxu0 %v247
  %v438 = vpop.f32.mrb[0].mxu0
  %v439 = vadd.f32 %v298, %v438
  %v440 = vpop.f32.mrb[0].mxu0
  %v441 = vpop.f32.mrb[0].mxu0
  %v442 = vadd.f32 %v298, %v441
  %v443 = vpop.f32.mrb[0].mxu0
  %444 = vmatprep.mubr.bf16.mxu0 %v250
  %445 = vmatmul.mubr.bf16.gmra.mrb[0].mxu0 %v249
  %v446 = vpop.f32.mrb[0].mxu0
  %v447 = vadd.f32 %v298, %v446
  %v448 = vpop.f32.mrb[0].mxu0
  %v449 = vpop.f32.mrb[0].mxu0
  %v450 = vadd.f32 %v298, %v449
  %v451 = vpop.f32.mrb[0].mxu0
  %452 = vmatprep.mubr.bf16.mxu0 %v252
  %453 = vmatmul.mubr.bf16.gmra.mrb[0].mxu0 %v251
  %v454 = vpop.f32.mrb[0].mxu0
  %v455 = vadd.f32 %v298, %v454
  %v456 = vpop.f32.mrb[0].mxu0
  %v457 = vpop.f32.mrb[0].mxu0
  %v458 = vadd.f32 %v298, %v457
  %v459 = vpop.f32.mrb[0].mxu0
  %460 = vmatprep.mubr.bf16.mxu0 %v254
  %461 = vmatmul.mubr.bf16.gmra.mrb[0].mxu0 %v253
  %v462 = vpop.f32.mrb[0].mxu0
  %v463 = vadd.f32 %v298, %v462
  %v464 = vpop.f32.mrb[0].mxu0
  %v465 = vpop.f32.mrb[0].mxu0
  %v466 = vadd.f32 %v298, %v465
  %v467 = vpop.f32.mrb[0].mxu0
  %468 = vmatprep.mubr.bf16.mxu0 %v256
  %469 = vmatmul.mubr.bf16.gmra.mrb[0].mxu0 %v255
  %v470 = vpop.f32.mrb[0].mxu0
  %v471 = vadd.f32 %v298, %v470
  %v472 = vpop.f32.mrb[0].mxu0
  %v473 = vpop.f32.mrb[0].mxu0
  %v474 = vadd.f32 %v298, %v473
  %v475 = vpop.f32.mrb[0].mxu0
  %476 = vmatprep.mubr.bf16.mxu0 %v258
  %477 = vmatmul.mubr.bf16.gmra.mrb[0].mxu0 %v257
  %v478 = vpop.f32.mrb[0].mxu0
  %v479 = vadd.f32 %v298, %v478
  %v480 = vpop.f32.mrb[0].mxu0
  %v481 = vpop.f32.mrb[0].mxu0
  %v482 = vadd.f32 %v298, %v481
  %v483 = vpop.f32.mrb[0].mxu0
  %484 = vmatprep.mubr.bf16.mxu0 %v260
  %485 = vmatmul.mubr.bf16.gmra.mrb[0].mxu0 %v259
  %v486 = vpop.f32.mrb[0].mxu0
  %v487 = vadd.f32 %v298, %v486
  %v488 = vpop.f32.mrb[0].mxu0
  %v489 = vpop.f32.mrb[0].mxu0
  %v490 = vadd.f32 %v298, %v489
  %v491 = vpop.f32.mrb[0].mxu0
  %492 = vdwg.mxu0
  %v493 = vmax.f32 %v431, 0.0
  %v494 = vmax.f32 %v434, 0.0
  %v495 = vmax.f32 %v439, 0.0
  %v496 = vmax.f32 %v442, 0.0
  %v497 = vmax.f32 %v447, 0.0
  %v498 = vmax.f32 %v450, 0.0
  %v499 = vmax.f32 %v455, 0.0
  %v500 = vmax.f32 %v458, 0.0
  %v501 = vmax.f32 %v463, 0.0
  %v502 = vmax.f32 %v466, 0.0
  %v503 = vmax.f32 %v471, 0.0
  %v504 = vmax.f32 %v474, 0.0
  %v505 = vmax.f32 %v479, 0.0
  %v506 = vmax.f32 %v482, 0.0
  %v507 = vmax.f32 %v487, 0.0
  %v508 = vmax.f32 %v490, 0.0
  %v511 = vrot.slane %v501, 7
  %vm512 = vcmask 1041409
  %v513 = vsel %vm512, %v511, %v493
  %v515 = vrot.slane %v493, 1
  %v516 = vsel %vm512, %v501, %v515
  %517 = vrot.lane.b32.xlu0 %v516, 32
  %v518 = vpop.permute.xlu0 %517
  %v520 = vrot.slane %v493, 2
  %v521 = vrot.slane %v501, 1
  %v522 = vsel %vm512, %v521, %v520
  %523 = vrot.lane.b32.xlu0 %v522, 64
  %v524 = vpop.permute.xlu0 %523
  %v526 = vrot.slane %v493, 3
  %v527 = vrot.slane %v501, 2
  %v528 = vsel %vm512, %v527, %v526
  %529 = vrot.lane.b32.xlu0 %v528, 96
  %v530 = vpop.permute.xlu0 %529
  %v534 = vrot.slane %v502, 7
  %v535 = vsel %vm512, %v534, %v494
  %v537 = vrot.slane %v494, 1
  %v538 = vsel %vm512, %v502, %v537
  %539 = vrot.lane.b32.xlu0 %v538, 32
  %v540 = vpop.permute.xlu0 %539
  %v542 = vrot.slane %v494, 2
  %v543 = vrot.slane %v502, 1
  %v544 = vsel %vm512, %v543, %v542
  %545 = vrot.lane.b32.xlu0 %v544, 64
  %v546 = vpop.permute.xlu0 %545
  %v548 = vrot.slane %v494, 3
  %v549 = vrot.slane %v502, 2
  %v550 = vsel %vm512, %v549, %v548
  %551 = vrot.lane.b32.xlu0 %v550, 96
  %v552 = vpop.permute.xlu0 %551
  %v556 = vrot.slane %v503, 7
  %v557 = vsel %vm512, %v556, %v495
  %v559 = vrot.slane %v495, 1
  %v560 = vsel %vm512, %v503, %v559
  %561 = vrot.lane.b32.xlu0 %v560, 32
  %v562 = vpop.permute.xlu0 %561
  %v564 = vrot.slane %v495, 2
  %v565 = vrot.slane %v503, 1
  %v566 = vsel %vm512, %v565, %v564
  %567 = vrot.lane.b32.xlu0 %v566, 64
  %v568 = vpop.permute.xlu0 %567
  %v570 = vrot.slane %v495, 3
  %v571 = vrot.slane %v503, 2
  %v572 = vsel %vm512, %v571, %v570
  %573 = vrot.lane.b32.xlu0 %v572, 96
  %v574 = vpop.permute.xlu0 %573
  %v578 = vrot.slane %v504, 7
  %v579 = vsel %vm512, %v578, %v496
  %v581 = vrot.slane %v496, 1
  %v582 = vsel %vm512, %v504, %v581
  %583 = vrot.lane.b32.xlu0 %v582, 32
  %v584 = vpop.permute.xlu0 %583
  %v586 = vrot.slane %v496, 2
  %v587 = vrot.slane %v504, 1
  %v588 = vsel %vm512, %v587, %v586
  %589 = vrot.lane.b32.xlu0 %v588, 64
  %v590 = vpop.permute.xlu0 %589
  %v592 = vrot.slane %v496, 3
  %v593 = vrot.slane %v504, 2
  %v594 = vsel %vm512, %v593, %v592
  %595 = vrot.lane.b32.xlu0 %v594, 96
  %v596 = vpop.permute.xlu0 %595
  %vm598 = vcmask 261120
  %v599 = vsel %vm598, %v513, %v518
  %v600 = vsel %vm226, %v599, %v524
  %vm601 = vcmask 785408
  %v602 = vsel %vm601, %v600, %v530
  %v603 = vsel %vm598, %v535, %v540
  %v604 = vsel %vm226, %v603, %v546
  %v605 = vsel %vm601, %v604, %v552
  %v606 = vsel %vm598, %v557, %v562
  %v607 = vsel %vm226, %v606, %v568
  %v608 = vsel %vm601, %v607, %v574
  %v609 = vsel %vm598, %v579, %v584
  %v610 = vsel %vm226, %v609, %v590
  %v611 = vsel %vm601, %v610, %v596
  %vm612 = vcmask 1043459
  %v613 = vsel %vm612, %v511, %v493
  %v615 = vsel %vm612, %v501, %v515
  %616 = vrot.lane.b32.xlu0 %v615, 32
  %v617 = vpop.permute.xlu0 %616
  %v619 = vsel %vm612, %v521, %v520
  %620 = vrot.lane.b32.xlu0 %v619, 64
  %v621 = vpop.permute.xlu0 %620
  %v623 = vsel %vm612, %v527, %v526
  %624 = vrot.lane.b32.xlu0 %v623, 96
  %v625 = vpop.permute.xlu0 %624
  %v627 = vsel %vm612, %v534, %v494
  %v629 = vsel %vm612, %v502, %v537
  %630 = vrot.lane.b32.xlu0 %v629, 32
  %v631 = vpop.permute.xlu0 %630
  %v633 = vsel %vm612, %v543, %v542
  %634 = vrot.lane.b32.xlu0 %v633, 64
  %v635 = vpop.permute.xlu0 %634
  %v637 = vsel %vm612, %v549, %v548
  %638 = vrot.lane.b32.xlu0 %v637, 96
  %v639 = vpop.permute.xlu0 %638
  %v641 = vsel %vm612, %v556, %v495
  %v643 = vsel %vm612, %v503, %v559
  %644 = vrot.lane.b32.xlu0 %v643, 32
  %v645 = vpop.permute.xlu0 %644
  %v647 = vsel %vm612, %v565, %v564
  %648 = vrot.lane.b32.xlu0 %v647, 64
  %v649 = vpop.permute.xlu0 %648
  %v651 = vsel %vm612, %v571, %v570
  %652 = vrot.lane.b32.xlu0 %v651, 96
  %v653 = vpop.permute.xlu0 %652
  %v655 = vsel %vm612, %v578, %v496
  %v657 = vsel %vm612, %v504, %v581
  %658 = vrot.lane.b32.xlu0 %v657, 32
  %v659 = vpop.permute.xlu0 %658
  %v661 = vsel %vm612, %v587, %v586
  %662 = vrot.lane.b32.xlu0 %v661, 64
  %v663 = vpop.permute.xlu0 %662
  %v665 = vsel %vm612, %v593, %v592
  %666 = vrot.lane.b32.xlu0 %v665, 96
  %v667 = vpop.permute.xlu0 %666
  %v669 = vsel %vm598, %v613, %v617
  %v670 = vsel %vm226, %v669, %v621
  %v671 = vsel %vm601, %v670, %v625
  %v672 = vsel %vm598, %v627, %v631
  %v673 = vsel %vm226, %v672, %v635
  %v674 = vsel %vm601, %v673, %v639
  %v675 = vsel %vm598, %v641, %v645
  %v676 = vsel %vm226, %v675, %v649
  %v677 = vsel %vm601, %v676, %v653
  %v678 = vsel %vm598, %v655, %v659
  %v679 = vsel %vm226, %v678, %v663
  %v680 = vsel %vm601, %v679, %v667
  %vm681 = vcmask 1045509
  %v682 = vsel %vm681, %v511, %v493
  %v684 = vsel %vm681, %v501, %v515
  %685 = vrot.lane.b32.xlu0 %v684, 32
  %v686 = vpop.permute.xlu0 %685
  %v688 = vsel %vm681, %v521, %v520
  %689 = vrot.lane.b32.xlu0 %v688, 64
  %v690 = vpop.permute.xlu0 %689
  %v692 = vsel %vm681, %v527, %v526
  %693 = vrot.lane.b32.xlu0 %v692, 96
  %v694 = vpop.permute.xlu0 %693
  %v696 = vsel %vm681, %v534, %v494
  %v698 = vsel %vm681, %v502, %v537
  %699 = vrot.lane.b32.xlu0 %v698, 32
  %v700 = vpop.permute.xlu0 %699
  %v702 = vsel %vm681, %v543, %v542
  %703 = vrot.lane.b32.xlu0 %v702, 64
  %v704 = vpop.permute.xlu0 %703
  %v706 = vsel %vm681, %v549, %v548
  %707 = vrot.lane.b32.xlu0 %v706, 96
  %v708 = vpop.permute.xlu0 %707
  %v710 = vsel %vm681, %v556, %v495
  %v712 = vsel %vm681, %v503, %v559
  %713 = vrot.lane.b32.xlu0 %v712, 32
  %v714 = vpop.permute.xlu0 %713
  %v716 = vsel %vm681, %v565, %v564
  %717 = vrot.lane.b32.xlu0 %v716, 64
  %v718 = vpop.permute.xlu0 %717
  %v720 = vsel %vm681, %v571, %v570
  %721 = vrot.lane.b32.xlu0 %v720, 96
  %v722 = vpop.permute.xlu0 %721
  %v724 = vsel %vm681, %v578, %v496
  %v726 = vsel %vm681, %v504, %v581
  %727 = vrot.lane.b32.xlu0 %v726, 32
  %v728 = vpop.permute.xlu0 %727
  %v730 = vsel %vm681, %v587, %v586
  %731 = vrot.lane.b32.xlu0 %v730, 64
  %v732 = vpop.permute.xlu0 %731
  %v734 = vsel %vm681, %v593, %v592
  %735 = vrot.lane.b32.xlu0 %v734, 96
  %v736 = vpop.permute.xlu0 %735
  %v738 = vsel %vm598, %v682, %v686
  %v739 = vsel %vm226, %v738, %v690
  %v740 = vsel %vm601, %v739, %v694
  %v741 = vsel %vm598, %v696, %v700
  %v742 = vsel %vm226, %v741, %v704
  %v743 = vsel %vm601, %v742, %v708
  %v744 = vsel %vm598, %v710, %v714
  %v745 = vsel %vm226, %v744, %v718
  %v746 = vsel %vm601, %v745, %v722
  %v747 = vsel %vm598, %v724, %v728
  %v748 = vsel %vm226, %v747, %v732
  %v749 = vsel %vm601, %v748, %v736
  %v752 = vrot.slane %v505, 7
  %v753 = vsel %vm512, %v752, %v497
  %v755 = vrot.slane %v497, 1
  %v756 = vsel %vm512, %v505, %v755
  %757 = vrot.lane.b32.xlu0 %v756, 32
  %v758 = vpop.permute.xlu0 %757
  %v760 = vrot.slane %v497, 2
  %v761 = vrot.slane %v505, 1
  %v762 = vsel %vm512, %v761, %v760
  %763 = vrot.lane.b32.xlu0 %v762, 64
  %v764 = vpop.permute.xlu0 %763
  %v766 = vrot.slane %v497, 3
  %v767 = vrot.slane %v505, 2
  %v768 = vsel %vm512, %v767, %v766
  %769 = vrot.lane.b32.xlu0 %v768, 96
  %v770 = vpop.permute.xlu0 %769
  %v774 = vrot.slane %v506, 7
  %v775 = vsel %vm512, %v774, %v498
  %v777 = vrot.slane %v498, 1
  %v778 = vsel %vm512, %v506, %v777
  %779 = vrot.lane.b32.xlu0 %v778, 32
  %v780 = vpop.permute.xlu0 %779
  %v782 = vrot.slane %v498, 2
  %v783 = vrot.slane %v506, 1
  %v784 = vsel %vm512, %v783, %v782
  %785 = vrot.lane.b32.xlu0 %v784, 64
  %v786 = vpop.permute.xlu0 %785
  %v788 = vrot.slane %v498, 3
  %v789 = vrot.slane %v506, 2
  %v790 = vsel %vm512, %v789, %v788
  %791 = vrot.lane.b32.xlu0 %v790, 96
  %v792 = vpop.permute.xlu0 %791
  %v794 = vsel %vm598, %v753, %v758
  %v795 = vsel %vm226, %v794, %v764
  %v796 = vsel %vm601, %v795, %v770
  %v797 = vsel %vm598, %v775, %v780
  %v798 = vsel %vm226, %v797, %v786
  %v799 = vsel %vm601, %v798, %v792
  %v800 = vsel %vm612, %v752, %v497
  %v802 = vsel %vm612, %v505, %v755
  %803 = vrot.lane.b32.xlu0 %v802, 32
  %v804 = vpop.permute.xlu0 %803
  %v806 = vsel %vm612, %v761, %v760
  %807 = vrot.lane.b32.xlu0 %v806, 64
  %v808 = vpop.permute.xlu0 %807
  %v810 = vsel %vm612, %v767, %v766
  %811 = vrot.lane.b32.xlu0 %v810, 96
  %v812 = vpop.permute.xlu0 %811
  %v814 = vsel %vm612, %v774, %v498
  %v816 = vsel %vm612, %v506, %v777
  %817 = vrot.lane.b32.xlu0 %v816, 32
  %v818 = vpop.permute.xlu0 %817
  %v820 = vsel %vm612, %v783, %v782
  %821 = vrot.lane.b32.xlu0 %v820, 64
  %v822 = vpop.permute.xlu0 %821
  %v824 = vsel %vm612, %v789, %v788
  %825 = vrot.lane.b32.xlu0 %v824, 96
  %v826 = vpop.permute.xlu0 %825
  %v828 = vsel %vm598, %v800, %v804
  %v829 = vsel %vm226, %v828, %v808
  %v830 = vsel %vm601, %v829, %v812
  %v831 = vsel %vm598, %v814, %v818
  %v832 = vsel %vm226, %v831, %v822
  %v833 = vsel %vm601, %v832, %v826
  %v834 = vsel %vm681, %v752, %v497
  %v836 = vsel %vm681, %v505, %v755
  %837 = vrot.lane.b32.xlu0 %v836, 32
  %v838 = vpop.permute.xlu0 %837
  %v840 = vsel %vm681, %v761, %v760
  %841 = vrot.lane.b32.xlu0 %v840, 64
  %v842 = vpop.permute.xlu0 %841
  %v844 = vsel %vm681, %v767, %v766
  %845 = vrot.lane.b32.xlu0 %v844, 96
  %v846 = vpop.permute.xlu0 %845
  %v848 = vsel %vm681, %v774, %v498
  %v850 = vsel %vm681, %v506, %v777
  %851 = vrot.lane.b32.xlu0 %v850, 32
  %v852 = vpop.permute.xlu0 %851
  %v854 = vsel %vm681, %v783, %v782
  %855 = vrot.lane.b32.xlu0 %v854, 64
  %v856 = vpop.permute.xlu0 %855
  %v858 = vsel %vm681, %v789, %v788
  %859 = vrot.lane.b32.xlu0 %v858, 96
  %v860 = vpop.permute.xlu0 %859
  %v862 = vsel %vm598, %v834, %v838
  %v863 = vsel %vm226, %v862, %v842
  %v864 = vsel %vm601, %v863, %v846
  %v865 = vsel %vm598, %v848, %v852
  %v866 = vsel %vm226, %v865, %v856
  %v867 = vsel %vm601, %v866, %v860
  %v870 = vrot.slane %v507, 7
  %v871 = vsel %vm512, %v870, %v499
  %v873 = vrot.slane %v499, 1
  %v874 = vsel %vm512, %v507, %v873
  %875 = vrot.lane.b32.xlu0 %v874, 32
  %v876 = vpop.permute.xlu0 %875
  %v878 = vrot.slane %v499, 2
  %v879 = vrot.slane %v507, 1
  %v880 = vsel %vm512, %v879, %v878
  %881 = vrot.lane.b32.xlu0 %v880, 64
  %v882 = vpop.permute.xlu0 %881
  %v884 = vrot.slane %v499, 3
  %v885 = vrot.slane %v507, 2
  %v886 = vsel %vm512, %v885, %v884
  %887 = vrot.lane.b32.xlu0 %v886, 96
  %v888 = vpop.permute.xlu0 %887
  %v892 = vrot.slane %v508, 7
  %v893 = vsel %vm512, %v892, %v500
  %v895 = vrot.slane %v500, 1
  %v896 = vsel %vm512, %v508, %v895
  %897 = vrot.lane.b32.xlu0 %v896, 32
  %v898 = vpop.permute.xlu0 %897
  %v900 = vrot.slane %v500, 2
  %v901 = vrot.slane %v508, 1
  %v902 = vsel %vm512, %v901, %v900
  %903 = vrot.lane.b32.xlu0 %v902, 64
  %v904 = vpop.permute.xlu0 %903
  %v906 = vrot.slane %v500, 3
  %v907 = vrot.slane %v508, 2
  %v908 = vsel %vm512, %v907, %v906
  %909 = vrot.lane.b32.xlu0 %v908, 96
  %v910 = vpop.permute.xlu0 %909
  %v912 = vsel %vm598, %v871, %v876
  %v913 = vsel %vm226, %v912, %v882
  %v914 = vsel %vm601, %v913, %v888
  %v915 = vsel %vm598, %v893, %v898
  %v916 = vsel %vm226, %v915, %v904
  %v917 = vsel %vm601, %v916, %v910
  %v918 = vsel %vm612, %v870, %v499
  %v920 = vsel %vm612, %v507, %v873
  %921 = vrot.lane.b32.xlu0 %v920, 32
  %v922 = vpop.permute.xlu0 %921
  %v924 = vsel %vm612, %v879, %v878
  %925 = vrot.lane.b32.xlu0 %v924, 64
  %v926 = vpop.permute.xlu0 %925
  %v928 = vsel %vm612, %v885, %v884
  %929 = vrot.lane.b32.xlu0 %v928, 96
  %v930 = vpop.permute.xlu0 %929
  %v932 = vsel %vm612, %v892, %v500
  %v934 = vsel %vm612, %v508, %v895
  %935 = vrot.lane.b32.xlu0 %v934, 32
  %v936 = vpop.permute.xlu0 %935
  %v938 = vsel %vm612, %v901, %v900
  %939 = vrot.lane.b32.xlu0 %v938, 64
  %v940 = vpop.permute.xlu0 %939
  %v942 = vsel %vm612, %v907, %v906
  %943 = vrot.lane.b32.xlu0 %v942, 96
  %v944 = vpop.permute.xlu0 %943
  %v946 = vsel %vm598, %v918, %v922
  %v947 = vsel %vm226, %v946, %v926
  %v948 = vsel %vm601, %v947, %v930
  %v949 = vsel %vm598, %v932, %v936
  %v950 = vsel %vm226, %v949, %v940
  %v951 = vsel %vm601, %v950, %v944
  %v952 = vsel %vm681, %v870, %v499
  %v954 = vsel %vm681, %v507, %v873
  %955 = vrot.lane.b32.xlu0 %v954, 32
  %v956 = vpop.permute.xlu0 %955
  %v958 = vsel %vm681, %v879, %v878
  %959 = vrot.lane.b32.xlu0 %v958, 64
  %v960 = vpop.permute.xlu0 %959
  %v962 = vsel %vm681, %v885, %v884
  %963 = vrot.lane.b32.xlu0 %v962, 96
  %v964 = vpop.permute.xlu0 %963
  %v966 = vsel %vm681, %v892, %v500
  %v968 = vsel %vm681, %v508, %v895
  %969 = vrot.lane.b32.xlu0 %v968, 32
  %v970 = vpop.permute.xlu0 %969
  %v972 = vsel %vm681, %v901, %v900
  %973 = vrot.lane.b32.xlu0 %v972, 64
  %v974 = vpop.permute.xlu0 %973
  %v976 = vsel %vm681, %v907, %v906
  %977 = vrot.lane.b32.xlu0 %v976, 96
  %v978 = vpop.permute.xlu0 %977
  %v980 = vsel %vm598, %v952, %v956
  %v981 = vsel %vm226, %v980, %v960
  %v982 = vsel %vm601, %v981, %v964
  %v983 = vsel %vm598, %v966, %v970
  %v984 = vsel %vm226, %v983, %v974
  %v985 = vsel %vm601, %v984, %v978
  %v990 = vrot.slane %v608, 2
  %v991 = vrot.slane %v611, 2
  %v992 = vrot.slane %v796, 2
  %v993 = vrot.slane %v799, 2
  %v1002 = vrot.slane %v677, 2
  %v1003 = vrot.slane %v680, 2
  %v1004 = vrot.slane %v830, 2
  %v1005 = vrot.slane %v833, 2
  %v1014 = vrot.slane %v746, 2
  %v1015 = vrot.slane %v749, 2
  %v1016 = vrot.slane %v864, 2
  %v1017 = vrot.slane %v867, 2
  %v1024 = vrot.slane %v796, 4
  %v1025 = vrot.slane %v799, 4
  %v1026 = vrot.slane %v914, 4
  %v1027 = vrot.slane %v917, 4
  %v1034 = vrot.slane %v830, 4
  %v1035 = vrot.slane %v833, 4
  %v1036 = vrot.slane %v948, 4
  %v1037 = vrot.slane %v951, 4
  %v1044 = vrot.slane %v864, 4
  %v1045 = vrot.slane %v867, 4
  %v1046 = vrot.slane %v982, 4
  %v1047 = vrot.slane %v985, 4
  %vm1052 = vcmask 1041408
  %v1053 = vsel %vm1052, %v602, %v671
  %v1054 = vsel %vm1052, %v605, %v674
  %v1055 = vsel %vm1052, %v608, %v677
  %v1056 = vsel %vm1052, %v611, %v680
  %vm1057 = vcmask 1043456
  %v1058 = vsel %vm1057, %v1053, %v740
  %v1059 = vsel %vm1057, %v1054, %v743
  %v1060 = vsel %vm1057, %v1055, %v746
  %v1061 = vsel %vm1057, %v1056, %v749
  %vm1062 = vcmask 1045504
  %v1063 = vsel %vm1062, %v1058, %v990
  %v1064 = vsel %vm1062, %v1059, %v991
  %v1065 = vsel %vm1062, %v1060, %v992
  %v1066 = vsel %vm1062, %v1061, %v993
  %v1067 = vsel %vm1052, %v1002, %v1014
  %v1068 = vsel %vm1052, %v1003, %v1015
  %v1069 = vsel %vm1052, %v1004, %v1016
  %v1070 = vsel %vm1052, %v1005, %v1017
  %v1071 = vsel %vm1057, %v1067, %v1024
  %v1072 = vsel %vm1057, %v1068, %v1025
  %v1073 = vsel %vm1057, %v1069, %v1026
  %v1074 = vsel %vm1057, %v1070, %v1027
  %v1075 = vsel %vm1062, %v1071, %v1034
  %v1076 = vsel %vm1062, %v1072, %v1035
  %v1077 = vsel %vm1062, %v1073, %v1036
  %v1078 = vsel %vm1062, %v1074, %v1037
  %v1079 = vpack.c.bf16 %v1075, %v1063
  %v1080 = vpack.c.bf16 %v1076, %v1064
  %v1081 = vpack.c.bf16 %v1077, %v1065
  %v1082 = vpack.c.bf16 %v1078, %v1066
  %v1083 = vpack.c.bf16 %v1044, %v1044
  %v1084 = vpack.c.bf16 %v1045, %v1045
  %v1085 = vpack.c.bf16 %v1046, %v1046
  %v1086 = vpack.c.bf16 %v1047, %v1047
  %v1087 = vld [vmem:[%s3] sm:$0xf]
  %v1088 = vld [vmem:[%s3 + $0x4] sm:$0xf]
  %v1089 = vld [vmem:[%s3 + $0x8] sm:$0xf]
  %v1090 = vld [vmem:[%s3 + $0xc] sm:$0xf]
  %v1091 = vld [vmem:[%s3 + $0x10] sm:$0xf]
  %v1092 = vld [vmem:[%s3 + $0x14] sm:$0xf]
  %v1093 = vld [vmem:[%s3 + $0x18] sm:$0xf]
  %v1094 = vld [vmem:[%s3 + $0x1c] sm:$0xf]
  %v1095 = vld [vmem:[%s3 + $0x20] sm:$0xf]
  %v1096 = vld [vmem:[%s3 + $0x24] sm:$0xf]
  %v1097 = vld [vmem:[%s3 + $0x28] sm:$0xf]
  %v1098 = vld [vmem:[%s3 + $0x2c] sm:$0xf]
  %v1099 = vld [vmem:[%s3 + $0x30] sm:$0xf]
  %v1100 = vld [vmem:[%s3 + $0x34] sm:$0xf]
  %v1101 = vld [vmem:[%s3 + $0x38] sm:$0xf]
  %v1102 = vld [vmem:[%s3 + $0x3c] sm:$0xf]
  %v1103 = vld [vmem:[%s3 + $0x40] sm:$0xf]
  %v1104 = vld [vmem:[%s3 + $0x44] sm:$0xf]
  %v1105 = vld [vmem:[%s3 + $0x48] sm:$0xf]
  %v1106 = vld [vmem:[%s3 + $0x4c] sm:$0xf]
  %v1107 = vld [vmem:[%s3 + $0x50] sm:$0xf]
  %v1108 = vld [vmem:[%s3 + $0x54] sm:$0xf]
  %v1109 = vld [vmem:[%s3 + $0x58] sm:$0xf]
  %v1110 = vld [vmem:[%s3 + $0x5c] sm:$0xf]
  %v1111 = vld [vmem:[%s3 + $0x60] sm:$0xf]
  %v1112 = vld [vmem:[%s3 + $0x64] sm:$0xf]
  %v1113 = vld [vmem:[%s3 + $0x68] sm:$0xf]
  %v1114 = vld [vmem:[%s3 + $0x6c] sm:$0xf]
  %v1115 = vld [vmem:[%s3 + $0x70] sm:$0xf]
  %v1116 = vld [vmem:[%s3 + $0x74] sm:$0xf]
  %v1117 = vld [vmem:[%s3 + $0x78] sm:$0xf]
  %v1118 = vld [vmem:[%s3 + $0x7c] sm:$0xf]
  %v1119 = vld [vmem:[%s3 + $0x80] sm:$0xf]
  %v1120 = vld [vmem:[%s3 + $0x84] sm:$0xf]
  %v1121 = vld [vmem:[%s3 + $0x88] sm:$0xf]
  %v1122 = vld [vmem:[%s3 + $0x8c] sm:$0xf]
  %v1123 = vld [vmem:[%s3 + $0x90] sm:$0xf]
  %v1124 = vld [vmem:[%s3 + $0x94] sm:$0xf]
  %v1125 = vld [vmem:[%s3 + $0x98] sm:$0xf]
  %v1126 = vld [vmem:[%s3 + $0x9c] sm:$0xf]
  %v1127 = vld [vmem:[%s3 + $0xa0] sm:$0xf]
  %v1128 = vld [vmem:[%s3 + $0xa4] sm:$0xf]
  %v1129 = vld [vmem:[%s3 + $0xa8] sm:$0xf]
  %v1130 = vld [vmem:[%s3 + $0xac] sm:$0xf]
  %v1131 = vld [vmem:[%s3 + $0xb0] sm:$0xf]
  %v1132 = vld [vmem:[%s3 + $0xb4] sm:$0xf]
  %v1133 = vld [vmem:[%s3 + $0xb8] sm:$0xf]
  %v1134 = vld [vmem:[%s3 + $0xbc] sm:$0xf]
  %v1135 = vld [vmem:[%s3 + $0xc0] sm:$0xf]
  %v1136 = vld [vmem:[%s3 + $0xc4] sm:$0xf]
  %v1137 = vld [vmem:[%s3 + $0xc8] sm:$0xf]
  %v1138 = vld [vmem:[%s3 + $0xcc] sm:$0xf]
  %v1139 = vld [vmem:[%s3 + $0xd0] sm:$0xf]
  %v1140 = vld [vmem:[%s3 + $0xd4] sm:$0xf]
  %v1141 = vld [vmem:[%s3 + $0xd8] sm:$0xf]
  %v1142 = vld [vmem:[%s3 + $0xdc] sm:$0xf]
  %v1143 = vld [vmem:[%s3 + $0xe0] sm:$0xf]
  %v1144 = vld [vmem:[%s3 + $0xe4] sm:$0xf]
  %v1145 = vld [vmem:[%s3 + $0xe8] sm:$0xf]
  %v1146 = vld [vmem:[%s3 + $0xec] sm:$0xf]
  %v1147 = vld [vmem:[%s3 + $0xf0] sm:$0xf]
  %v1148 = vld [vmem:[%s3 + $0xf4] sm:$0xf]
  %v1149 = vld [vmem:[%s3 + $0xf8] sm:$0xf]
  %v1150 = vld [vmem:[%s3 + $0xfc] sm:$0xf]
  %v1151 = vld [vmem:[%s4] sm:$0x1]
  %v1153 = vlaneseq
  %v1154 = vshrl.u32 %v1153, 7
  %v1155 = vsub.s32 0, %v1154
  %v1156 = vrot.slane %v1151, %v1155
  %v1222 = vunpack.c.l.b16 %v1087
  %v1223 = vunpack.c.l.b16 %v1088
  %v1224 = vunpack.c.l.b16 %v1089
  %v1225 = vunpack.c.l.b16 %v1090
  %v1226 = vunpack.c.l.b16 %v1091
  %v1227 = vunpack.c.l.b16 %v1092
  %v1228 = vunpack.c.l.b16 %v1093
  %v1229 = vunpack.c.l.b16 %v1094
  %v1230 = vunpack.c.l.b16 %v1095
  %v1231 = vunpack.c.l.b16 %v1096
  %v1232 = vunpack.c.l.b16 %v1097
  %v1233 = vunpack.c.l.b16 %v1098
  %v1234 = vunpack.c.l.b16 %v1099
  %v1235 = vunpack.c.l.b16 %v1100
  %v1236 = vunpack.c.l.b16 %v1101
  %v1237 = vunpack.c.l.b16 %v1102
  %v1238 = vunpack.c.l.b16 %v1103
  %v1239 = vunpack.c.l.b16 %v1104
  %v1240 = vunpack.c.l.b16 %v1105
  %v1241 = vunpack.c.l.b16 %v1106
  %v1242 = vunpack.c.l.b16 %v1107
  %v1243 = vunpack.c.l.b16 %v1108
  %v1244 = vunpack.c.l.b16 %v1109
  %v1245 = vunpack.c.l.b16 %v1110
  %v1246 = vunpack.c.l.b16 %v1111
  %v1247 = vunpack.c.l.b16 %v1112
  %v1248 = vunpack.c.l.b16 %v1113
  %v1249 = vunpack.c.l.b16 %v1114
  %v1250 = vunpack.c.l.b16 %v1115
  %v1251 = vunpack.c.l.b16 %v1116
  %v1252 = vunpack.c.l.b16 %v1117
  %v1253 = vunpack.c.l.b16 %v1118
  %v1254 = vunpack.c.l.b16 %v1119
  %v1255 = vunpack.c.l.b16 %v1120
  %v1256 = vunpack.c.l.b16 %v1121
  %v1257 = vunpack.c.l.b16 %v1122
  %v1258 = vunpack.c.l.b16 %v1123
  %v1259 = vunpack.c.l.b16 %v1124
  %v1260 = vunpack.c.l.b16 %v1125
  %v1261 = vunpack.c.l.b16 %v1126
  %v1262 = vunpack.c.l.b16 %v1127
  %v1263 = vunpack.c.l.b16 %v1128
  %v1264 = vunpack.c.l.b16 %v1129
  %v1265 = vunpack.c.l.b16 %v1130
  %v1266 = vunpack.c.l.b16 %v1131
  %v1267 = vunpack.c.l.b16 %v1132
  %v1268 = vunpack.c.l.b16 %v1133
  %v1269 = vunpack.c.l.b16 %v1134
  %v1270 = vunpack.c.l.b16 %v1135
  %v1271 = vunpack.c.l.b16 %v1136
  %v1272 = vunpack.c.l.b16 %v1137
  %v1273 = vunpack.c.l.b16 %v1138
  %v1274 = vunpack.c.l.b16 %v1139
  %v1275 = vunpack.c.l.b16 %v1140
  %v1276 = vunpack.c.l.b16 %v1141
  %v1277 = vunpack.c.l.b16 %v1142
  %v1278 = vunpack.c.l.b16 %v1143
  %v1279 = vunpack.c.l.b16 %v1144
  %v1280 = vunpack.c.l.b16 %v1145
  %v1281 = vunpack.c.l.b16 %v1146
  %v1282 = vunpack.c.l.b16 %v1147
  %v1283 = vunpack.c.l.b16 %v1148
  %v1284 = vunpack.c.l.b16 %v1149
  %v1285 = vunpack.c.l.b16 %v1150
  %v1286 = vpack.c.b16 %v1223, %v1222
  %v1287 = vpack.c.b16 %v1225, %v1224
  %v1288 = vpack.c.b16 %v1227, %v1226
  %v1289 = vpack.c.b16 %v1229, %v1228
  %v1290 = vpack.c.b16 %v1231, %v1230
  %v1291 = vpack.c.b16 %v1233, %v1232
  %v1292 = vpack.c.b16 %v1235, %v1234
  %v1293 = vpack.c.b16 %v1237, %v1236
  %v1294 = vpack.c.b16 %v1239, %v1238
  %v1295 = vpack.c.b16 %v1241, %v1240
  %v1296 = vpack.c.b16 %v1243, %v1242
  %v1297 = vpack.c.b16 %v1245, %v1244
  %v1298 = vpack.c.b16 %v1247, %v1246
  %v1299 = vpack.c.b16 %v1249, %v1248
  %v1300 = vpack.c.b16 %v1251, %v1250
  %v1301 = vpack.c.b16 %v1253, %v1252
  %v1302 = vpack.c.b16 %v1255, %v1254
  %v1303 = vpack.c.b16 %v1257, %v1256
  %v1304 = vpack.c.b16 %v1259, %v1258
  %v1305 = vpack.c.b16 %v1261, %v1260
  %v1306 = vpack.c.b16 %v1263, %v1262
  %v1307 = vpack.c.b16 %v1265, %v1264
  %v1308 = vpack.c.b16 %v1267, %v1266
  %v1309 = vpack.c.b16 %v1269, %v1268
  %v1310 = vpack.c.b16 %v1271, %v1270
  %v1311 = vpack.c.b16 %v1273, %v1272
  %v1312 = vpack.c.b16 %v1275, %v1274
  %v1313 = vpack.c.b16 %v1277, %v1276
  %v1314 = vpack.c.b16 %v1279, %v1278
  %v1315 = vpack.c.b16 %v1281, %v1280
  %v1316 = vpack.c.b16 %v1283, %v1282
  %v1317 = vpack.c.b16 %v1285, %v1284
  %1350 = vmatprep.subr.bf16.mxu0 0
  %1351 = vmatpush1.bf16.msra.mxu0 %v1286
  %1352 = vmatprep.subr.bf16.mxu0 0
  %1353 = vmatpush1.bf16.msra.mxu0 %v1287
  %1354 = vmatprep.subr.bf16.mxu0 0
  %1355 = vmatpush1.bf16.msra.mxu0 %v1288
  %1356 = vmatprep.subr.bf16.mxu0 0
  %1357 = vmatpush1.bf16.msra.mxu0 %v1289
  %1358 = vmatprep.subr.bf16.mxu0 0
  %1359 = vmatpush1.bf16.msra.mxu0 %v1290
  %1360 = vmatprep.subr.bf16.mxu0 0
  %1361 = vmatpush1.bf16.msra.mxu0 %v1291
  %1362 = vmatprep.subr.bf16.mxu0 0
  %1363 = vmatpush1.bf16.msra.mxu0 %v1292
  %1364 = vmatprep.subr.bf16.mxu0 0
  %1365 = vmatpush1.bf16.msra.mxu0 %v1293
  %1366 = vmatprep.subr.bf16.mxu0 0
  %1367 = vmatpush1.bf16.msra.mxu0 %v1294
  %1368 = vmatprep.subr.bf16.mxu0 0
  %1369 = vmatpush1.bf16.msra.mxu0 %v1295
  %1370 = vmatprep.subr.bf16.mxu0 0
  %1371 = vmatpush1.bf16.msra.mxu0 %v1296
  %1372 = vmatprep.subr.bf16.mxu0 0
  %1373 = vmatpush1.bf16.msra.mxu0 %v1297
  %1374 = vmatprep.subr.bf16.mxu0 0
  %1375 = vmatpush1.bf16.msra.mxu0 %v1298
  %1376 = vmatprep.subr.bf16.mxu0 0
  %1377 = vmatpush1.bf16.msra.mxu0 %v1299
  %1378 = vmatprep.subr.bf16.mxu0 0
  %1379 = vmatpush1.bf16.msra.mxu0 %v1300
  %1380 = vmatprep.subr.bf16.mxu0 0
  %1381 = vmatpush1.bf16.msra.mxu0 %v1301
  %1382 = vmatprep.mubr.bf16.mxu0 %v1080
  %1383 = vmatmul.mubr.bf16.gmra.mrb[0].mxu0 %v1079
  %v1384 = vpop.f32.mrb[0].mxu0
  %v1385 = vadd.f32 %v1156, %v1384
  %v1386 = vpop.f32.mrb[0].mxu0
  %v1387 = vpop.f32.mrb[0].mxu0
  %v1388 = vadd.f32 %v1156, %v1387
  %v1389 = vpop.f32.mrb[0].mxu0
  %1390 = vmatprep.mubr.bf16.mxu0 %v1084
  %1391 = vmatmul.mubr.bf16.gmra.mrb[0].mxu0 %v1083
  %v1392 = vpop.f32.mrb[0].mxu0
  %v1393 = vadd.f32 %v1156, %v1392
  %v1394 = vpop.f32.mrb[0].mxu0
  %v1395 = vpop.f32.mrb[0].mxu0
  %v1396 = vpop.f32.mrb[0].mxu0
  %1397 = vdwg.mxu0
  %1398 = vmatprep.subr.bf16.mxu0 0
  %1399 = vmatpush1.bf16.msra.mxu0 %v1302
  %1400 = vmatprep.subr.bf16.mxu0 0
  %1401 = vmatpush1.bf16.msra.mxu0 %v1303
  %1402 = vmatprep.subr.bf16.mxu0 0
  %1403 = vmatpush1.bf16.msra.mxu0 %v1304
  %1404 = vmatprep.subr.bf16.mxu0 0
  %1405 = vmatpush1.bf16.msra.mxu0 %v1305
  %1406 = vmatprep.subr.bf16.mxu0 0
  %1407 = vmatpush1.bf16.msra.mxu0 %v1306
  %1408 = vmatprep.subr.bf16.mxu0 0
  %1409 = vmatpush1.bf16.msra.mxu0 %v1307
  %1410 = vmatprep.subr.bf16.mxu0 0
  %1411 = vmatpush1.bf16.msra.mxu0 %v1308
  %1412 = vmatprep.subr.bf16.mxu0 0
  %1413 = vmatpush1.bf16.msra.mxu0 %v1309
  %1414 = vmatprep.subr.bf16.mxu0 0
  %1415 = vmatpush1.bf16.msra.mxu0 %v1310
  %1416 = vmatprep.subr.bf16.mxu0 0
  %1417 = vmatpush1.bf16.msra.mxu0 %v1311
  %1418 = vmatprep.subr.bf16.mxu0 0
  %1419 = vmatpush1.bf16.msra.mxu0 %v1312
  %1420 = vmatprep.subr.bf16.mxu0 0
  %1421 = vmatpush1.bf16.msra.mxu0 %v1313
  %1422 = vmatprep.subr.bf16.mxu0 0
  %1423 = vmatpush1.bf16.msra.mxu0 %v1314
  %1424 = vmatprep.subr.bf16.mxu0 0
  %1425 = vmatpush1.bf16.msra.mxu0 %v1315
  %1426 = vmatprep.subr.bf16.mxu0 0
  %1427 = vmatpush1.bf16.msra.mxu0 %v1316
  %1428 = vmatprep.subr.bf16.mxu0 0
  %1429 = vmatpush1.bf16.msra.mxu0 %v1317
  %1430 = vmatprep.mubr.bf16.mxu0 %v1082
  %1431 = vmatmul.mubr.bf16.gmra.mrb[0].mxu0 %v1081
  %v1432 = vpop.f32.mrb[0].mxu0
  %v1433 = vadd.f32 %v1385, %v1432
  %v1434 = vpop.f32.mrb[0].mxu0
  %v1435 = vpop.f32.mrb[0].mxu0
  %v1436 = vadd.f32 %v1388, %v1435
  %v1437 = vpop.f32.mrb[0].mxu0
  %1438 = vmatprep.mubr.bf16.mxu0 %v1086
  %1439 = vmatmul.mubr.bf16.gmra.mrb[0].mxu0 %v1085
  %v1440 = vpop.f32.mrb[0].mxu0
  %v1441 = vadd.f32 %v1393, %v1440
  %v1442 = vpop.f32.mrb[0].mxu0
  %v1443 = vpop.f32.mrb[0].mxu0
  %v1444 = vpop.f32.mrb[0].mxu0
  %1445 = vdwg.mxu0
  %v1446 = vmax.f32 %v1433, 0.0
  %v1447 = vmax.f32 %v1436, 0.0
  %v1448 = vmax.f32 %v1441, 0.0
  %v1450 = vrot.slane %v1446, 2
  %1451 = vrot.lane.b32.xlu0 %v1450, 32
  %v1452 = vpop.permute.xlu0 %1451
  %v1454 = vrot.slane %v1446, 4
  %1455 = vrot.lane.b32.xlu0 %v1454, 64
  %v1456 = vpop.permute.xlu0 %1455
  %v1458 = vrot.slane %v1446, 6
  %1459 = vrot.lane.b32.xlu0 %v1458, 96
  %v1460 = vpop.permute.xlu0 %1459
  %v1463 = vrot.slane %v1447, 2
  %1464 = vrot.lane.b32.xlu0 %v1463, 32
  %v1465 = vpop.permute.xlu0 %1464
  %v1467 = vrot.slane %v1447, 4
  %1468 = vrot.lane.b32.xlu0 %v1467, 64
  %v1469 = vpop.permute.xlu0 %1468
  %v1471 = vrot.slane %v1447, 6
  %1472 = vrot.lane.b32.xlu0 %v1471, 96
  %v1473 = vpop.permute.xlu0 %1472
  %v1475 = vsel %vm598, %v1446, %v1452
  %v1476 = vsel %vm226, %v1475, %v1456
  %v1477 = vsel %vm601, %v1476, %v1460
  %v1478 = vsel %vm598, %v1447, %v1465
  %v1479 = vsel %vm226, %v1478, %v1469
  %v1480 = vsel %vm601, %v1479, %v1473
  %v1481 = vpack.c.bf16 %v1477, %v1477
  %v1482 = vpack.c.bf16 %v1480, %v1480
  %v1483 = vpack.c.bf16 %v1448, %v1448
  %v1484 = vld [vmem:[%s5] sm:$0xf]
  %v1485 = vld [vmem:[%s5 + $0x4] sm:$0xf]
  %v1486 = vld [vmem:[%s5 + $0x8] sm:$0xf]
  %v1487 = vld [vmem:[%s5 + $0xc] sm:$0xf]
  %v1488 = vld [vmem:[%s5 + $0x10] sm:$0xf]
  %v1489 = vld [vmem:[%s5 + $0x14] sm:$0xf]
  %v1490 = vld [vmem:[%s5 + $0x18] sm:$0xf]
  %v1491 = vld [vmem:[%s5 + $0x1c] sm:$0xf]
  %v1492 = vld [vmem:[%s5 + $0x20] sm:$0xf]
  %v1493 = vld [vmem:[%s5 + $0x24] sm:$0xf]
  %v1494 = vld [vmem:[%s5 + $0x28] sm:$0xf]
  %v1495 = vld [vmem:[%s5 + $0x2c] sm:$0xf]
  %v1496 = vld [vmem:[%s5 + $0x30] sm:$0xf]
  %v1497 = vld [vmem:[%s5 + $0x34] sm:$0xf]
  %v1498 = vld [vmem:[%s5 + $0x38] sm:$0xf]
  %v1499 = vld [vmem:[%s5 + $0x3c] sm:$0xf]
  %v1500 = vld [vmem:[%s5 + $0x40] sm:$0xf]
  %v1501 = vld [vmem:[%s5 + $0x44] sm:$0xf]
  %v1502 = vld [vmem:[%s5 + $0x48] sm:$0xf]
  %v1503 = vld [vmem:[%s5 + $0x4c] sm:$0xf]
  %v1504 = vld [vmem:[%s5 + $0x50] sm:$0xf]
  %v1505 = vld [vmem:[%s5 + $0x54] sm:$0xf]
  %v1506 = vld [vmem:[%s5 + $0x58] sm:$0xf]
  %v1507 = vld [vmem:[%s5 + $0x5c] sm:$0xf]
  %v1508 = vld [vmem:[%s5 + $0x60] sm:$0xf]
  %v1509 = vld [vmem:[%s5 + $0x64] sm:$0xf]
  %v1510 = vld [vmem:[%s5 + $0x68] sm:$0xf]
  %v1511 = vld [vmem:[%s5 + $0x6c] sm:$0xf]
  %v1512 = vld [vmem:[%s5 + $0x70] sm:$0xf]
  %v1513 = vld [vmem:[%s5 + $0x74] sm:$0xf]
  %v1514 = vld [vmem:[%s5 + $0x78] sm:$0xf]
  %v1515 = vld [vmem:[%s5 + $0x7c] sm:$0xf]
  %v1516 = vld [vmem:[%s5 + $0x80] sm:$0xf]
  %v1517 = vld [vmem:[%s5 + $0x84] sm:$0xf]
  %v1518 = vld [vmem:[%s5 + $0x88] sm:$0xf]
  %v1519 = vld [vmem:[%s5 + $0x8c] sm:$0xf]
  %v1520 = vld [vmem:[%s6] sm:$0x1]
  %v1522 = vlaneseq
  %v1523 = vshrl.u32 %v1522, 7
  %v1524 = vsub.s32 0, %v1523
  %v1525 = vrot.slane %v1520, %v1524
  %v1563 = vunpack.c.l.b16 %v1484
  %v1564 = vunpack.c.l.b16 %v1485
  %v1565 = vunpack.c.l.b16 %v1486
  %v1566 = vunpack.c.l.b16 %v1487
  %v1567 = vunpack.c.l.b16 %v1488
  %v1568 = vunpack.c.l.b16 %v1489
  %v1569 = vunpack.c.l.b16 %v1490
  %v1570 = vunpack.c.l.b16 %v1491
  %v1571 = vunpack.c.l.b16 %v1492
  %v1572 = vunpack.c.l.b16 %v1493
  %v1573 = vunpack.c.l.b16 %v1494
  %v1574 = vunpack.c.l.b16 %v1495
  %v1575 = vunpack.c.l.b16 %v1496
  %v1576 = vunpack.c.l.b16 %v1497
  %v1577 = vunpack.c.l.b16 %v1498
  %v1578 = vunpack.c.l.b16 %v1499
  %v1579 = vunpack.c.l.b16 %v1500
  %v1580 = vunpack.c.l.b16 %v1501
  %v1581 = vunpack.c.l.b16 %v1502
  %v1582 = vunpack.c.l.b16 %v1503
  %v1583 = vunpack.c.l.b16 %v1504
  %v1584 = vunpack.c.l.b16 %v1505
  %v1585 = vunpack.c.l.b16 %v1506
  %v1586 = vunpack.c.l.b16 %v1507
  %v1587 = vunpack.c.l.b16 %v1508
  %v1588 = vunpack.c.l.b16 %v1509
  %v1589 = vunpack.c.l.b16 %v1510
  %v1590 = vunpack.c.l.b16 %v1511
  %v1591 = vunpack.c.l.b16 %v1512
  %v1592 = vunpack.c.l.b16 %v1513
  %v1593 = vunpack.c.l.b16 %v1514
  %v1594 = vunpack.c.l.b16 %v1515
  %v1595 = vunpack.c.l.b16 %v1516
  %v1596 = vunpack.c.l.b16 %v1517
  %v1597 = vunpack.c.l.b16 %v1518
  %v1598 = vunpack.c.l.b16 %v1519
  %v1599 = vpack.c.b16 %v1564, %v1563
  %v1600 = vpack.c.b16 %v1566, %v1565
  %v1601 = vpack.c.b16 %v1568, %v1567
  %v1602 = vpack.c.b16 %v1570, %v1569
  %v1603 = vpack.c.b16 %v1572, %v1571
  %v1604 = vpack.c.b16 %v1574, %v1573
  %v1605 = vpack.c.b16 %v1576, %v1575
  %v1606 = vpack.c.b16 %v1578, %v1577
  %v1607 = vpack.c.b16 %v1580, %v1579
  %v1608 = vpack.c.b16 %v1582, %v1581
  %v1609 = vpack.c.b16 %v1584, %v1583
  %v1610 = vpack.c.b16 %v1586, %v1585
  %v1611 = vpack.c.b16 %v1588, %v1587
  %v1612 = vpack.c.b16 %v1590, %v1589
  %v1613 = vpack.c.b16 %v1592, %v1591
  %v1614 = vpack.c.b16 %v1594, %v1593
  %v1615 = vpack.c.b16 %v1596, %v1595
  %v1616 = vpack.c.b16 %v1598, %v1597
  %v1636 = vsel %vm598, %v1483, 0
  %1638 = vmatprep.subr.bf16.mxu0 0
  %1639 = vmatpush1.bf16.msra.mxu0 %v1599
  %1640 = vmatprep.subr.bf16.mxu0 0
  %1641 = vmatpush1.bf16.msra.mxu0 %v1600
  %1642 = vmatprep.subr.bf16.mxu0 0
  %1643 = vmatpush1.bf16.msra.mxu0 %v1601
  %1644 = vmatprep.subr.bf16.mxu0 0
  %1645 = vmatpush1.bf16.msra.mxu0 %v1602
  %1646 = vmatprep.subr.bf16.mxu0 0
  %1647 = vmatpush1.bf16.msra.mxu0 %v1603
  %1648 = vmatprep.subr.bf16.mxu0 0
  %1649 = vmatpush1.bf16.msra.mxu0 %v1604
  %1650 = vmatprep.subr.bf16.mxu0 0
  %1651 = vmatpush1.bf16.msra.mxu0 %v1605
  %1652 = vmatprep.subr.bf16.mxu0 0
  %1653 = vmatpush1.bf16.msra.mxu0 %v1606
  %1654 = vmatprep.subr.bf16.mxu0 0
  %1655 = vmatpush1.bf16.msra.mxu0 %v1607
  %1656 = vmatprep.subr.bf16.mxu0 0
  %1657 = vmatpush1.bf16.msra.mxu0 %v1608
  %1658 = vmatprep.subr.bf16.mxu0 0
  %1659 = vmatpush1.bf16.msra.mxu0 %v1609
  %1660 = vmatprep.subr.bf16.mxu0 0
  %1661 = vmatpush1.bf16.msra.mxu0 %v1610
  %1662 = vmatprep.subr.bf16.mxu0 0
  %1663 = vmatpush1.bf16.msra.mxu0 %v1611
  %1664 = vmatprep.subr.bf16.mxu0 0
  %1665 = vmatpush1.bf16.msra.mxu0 %v1612
  %1666 = vmatprep.subr.bf16.mxu0 0
  %1667 = vmatpush1.bf16.msra.mxu0 %v1613
  %1668 = vmatprep.subr.bf16.mxu0 0
  %1669 = vmatpush1.bf16.msra.mxu0 %v1614
  %1670 = vmatprep.mubr.bf16.mxu0 %v1482
  %1671 = vmatmul.mubr.bf16.gmra.mrb[0].mxu0 %v1481
  %v1672 = vpop.f32.mrb[0].mxu0
  %v1673 = vadd.f32 %v1525, %v1672
  %v1674 = vpop.f32.mrb[0].mxu0
  %v1675 = vpop.f32.mrb[0].mxu0
  %v1676 = vpop.f32.mrb[0].mxu0
  %1677 = vdwg.mxu0
  %1678 = vmatprep.subr.bf16.mxu0 0
  %1679 = vmatpush1.bf16.msra.mxu0 %v1615
  %1680 = vmatprep.subr.bf16.mxu0 0
  %1681 = vmatpush1.bf16.msra.mxu0 %v1616
  %1682 = vmatprep.subr.bf16.mxu0 0
  %1683 = vmatpush1.bf16.msra.mxu0 0
  %1684 = vmatprep.subr.bf16.mxu0 0
  %1685 = vmatpush1.bf16.msra.mxu0 0
  %1686 = vmatprep.subr.bf16.mxu0 0
  %1687 = vmatpush1.bf16.msra.mxu0 0
  %1688 = vmatprep.subr.bf16.mxu0 0
  %1689 = vmatpush1.bf16.msra.mxu0 0
  %1690 = vmatprep.subr.bf16.mxu0 0
  %1691 = vmatpush1.bf16.msra.mxu0 0
  %1692 = vmatprep.subr.bf16.mxu0 0
  %1693 = vmatpush1.bf16.msra.mxu0 0
  %1694 = vmatprep.subr.bf16.mxu0 0
  %1695 = vmatpush1.bf16.msra.mxu0 0
  %1696 = vmatprep.subr.bf16.mxu0 0
  %1697 = vmatpush1.bf16.msra.mxu0 0
  %1698 = vmatprep.subr.bf16.mxu0 0
  %1699 = vmatpush1.bf16.msra.mxu0 0
  %1700 = vmatprep.subr.bf16.mxu0 0
  %1701 = vmatpush1.bf16.msra.mxu0 0
  %1702 = vmatprep.subr.bf16.mxu0 0
  %1703 = vmatpush1.bf16.msra.mxu0 0
  %1704 = vmatprep.subr.bf16.mxu0 0
  %1705 = vmatpush1.bf16.msra.mxu0 0
  %1706 = vmatprep.subr.bf16.mxu0 0
  %1707 = vmatpush1.bf16.msra.mxu0 0
  %1708 = vmatprep.subr.bf16.mxu0 0
  %1709 = vmatpush1.bf16.msra.mxu0 0
  %1710 = vmatprep.mubr.bf16.mxu0 0
  %1711 = vmatmul.mubr.bf16.gmra.mrb[0].mxu0 %v1636
  %v1712 = vpop.f32.mrb[0].mxu0
  %v1713 = vadd.f32 %v1673, %v1712
  %v1714 = vpop.f32.mrb[0].mxu0
  %v1715 = vpop.f32.mrb[0].mxu0
  %v1716 = vpop.f32.mrb[0].mxu0
  %1717 = vdwg.mxu0
  %v1718 = vmax.f32 %v1713, 0.0
  %v1719 = vpack.c.bf16 %v1718, %v1718
  %v1720 = vld [vmem:[%s7] sm:$0xff]
  %v1721 = vld [vmem:[%s7 + $0x8] sm:$0xff]
  %v1722 = vld [vmem:[%s7 + $0x10] sm:$0xff]
  %v1723 = vld [vmem:[%s7 + $0x18] sm:$0xff]
  %v1724 = vld [vmem:[%s7 + $0x20] sm:$0xff]
  %v1725 = vld [vmem:[%s7 + $0x28] sm:$0xff]
  %v1726 = vld [vmem:[%s7 + $0x30] sm:$0xff]
  %v1727 = vld [vmem:[%s7 + $0x38] sm:$0xff]
  %v1728 = vld [vmem:[%s8] sm:$0xf]
  %v1730 = vlaneseq
  %v1731 = vshrl.u32 %v1730, 7
  %v1732 = vsub.s32 0, %v1731
  %v1733 = vrot.slane %v1728, %v1732
  %v1734 = vlaneseq
  %v1735 = vshrl.u32 %v1734, 7
  %v1736 = vsub.s32 1, %v1735
  %v1737 = vrot.slane %v1728, %v1736
  %v1738 = vlaneseq
  %v1739 = vshrl.u32 %v1738, 7
  %v1740 = vsub.s32 2, %v1739
  %v1741 = vrot.slane %v1728, %v1740
  %v1742 = vlaneseq
  %v1743 = vshrl.u32 %v1742, 7
  %v1744 = vsub.s32 3, %v1743
  %v1745 = vrot.slane %v1728, %v1744
  %v1758 = vunpack.c.l.b16 %v1720
  %v1759 = vunpack.c.h.b16 %v1720
  %v1760 = vunpack.c.l.b16 %v1721
  %v1761 = vunpack.c.h.b16 %v1721
  %v1762 = vunpack.c.l.b16 %v1722
  %v1763 = vunpack.c.h.b16 %v1722
  %v1764 = vunpack.c.l.b16 %v1723
  %v1765 = vunpack.c.h.b16 %v1723
  %v1766 = vunpack.c.l.b16 %v1724
  %v1767 = vunpack.c.h.b16 %v1724
  %v1768 = vunpack.c.l.b16 %v1725
  %v1769 = vunpack.c.h.b16 %v1725
  %v1770 = vunpack.c.l.b16 %v1726
  %v1771 = vunpack.c.h.b16 %v1726
  %v1772 = vunpack.c.l.b16 %v1727
  %v1773 = vunpack.c.h.b16 %v1727
  %v1774 = vpack.c.b16 %v1762, %v1758
  %v1775 = vpack.c.b16 %v1763, %v1759
  %v1776 = vpack.c.b16 %v1764, %v1760
  %v1777 = vpack.c.b16 %v1765, %v1761
  %v1778 = vpack.c.b16 %v1770, %v1766
  %v1779 = vpack.c.b16 %v1771, %v1767
  %v1780 = vpack.c.b16 %v1772, %v1768
  %v1781 = vpack.c.b16 %v1773, %v1769
  %v1791 = vsel %vm598, %v1719, 0
  %1793 = vmatprep.subr.bf16.mxu0 %v1775
  %1794 = vmatpush1.bf16.msra.mxu0 %v1774
  %1795 = vmatprep.subr.bf16.mxu0 %v1779
  %1796 = vmatpush1.bf16.msra.mxu0 %v1778
  %1797 = vmatprep.subr.bf16.mxu0 0
  %1798 = vmatpush1.bf16.msra.mxu0 0
  %1799 = vmatprep.subr.bf16.mxu0 0
  %1800 = vmatpush1.bf16.msra.mxu0 0
  %1801 = vmatprep.subr.bf16.mxu0 0
  %1802 = vmatpush1.bf16.msra.mxu0 0
  %1803 = vmatprep.subr.bf16.mxu0 0
  %1804 = vmatpush1.bf16.msra.mxu0 0
  %1805 = vmatprep.subr.bf16.mxu0 0
  %1806 = vmatpush1.bf16.msra.mxu0 0
  %1807 = vmatprep.subr.bf16.mxu0 0
  %1808 = vmatpush1.bf16.msra.mxu0 0
  %1809 = vmatprep.subr.bf16.mxu0 0
  %1810 = vmatpush1.bf16.msra.mxu0 0
  %1811 = vmatprep.subr.bf16.mxu0 0
  %1812 = vmatpush1.bf16.msra.mxu0 0
  %1813 = vmatprep.subr.bf16.mxu0 0
  %1814 = vmatpush1.bf16.msra.mxu0 0
  %1815 = vmatprep.subr.bf16.mxu0 0
  %1816 = vmatpush1.bf16.msra.mxu0 0
  %1817 = vmatprep.subr.bf16.mxu0 0
  %1818 = vmatpush1.bf16.msra.mxu0 0
  %1819 = vmatprep.subr.bf16.mxu0 0
  %1820 = vmatpush1.bf16.msra.mxu0 0
  %1821 = vmatprep.subr.bf16.mxu0 0
  %1822 = vmatpush1.bf16.msra.mxu0 0
  %1823 = vmatprep.subr.bf16.mxu0 0
  %1824 = vmatpush1.bf16.msra.mxu0 0
  %1825 = vmatprep.mubr.bf16.mxu0 0
  %1826 = vmatmul.mubr.bf16.gmra.mrb[0].mxu0 %v1791
  %v1827 = vpop.f32.mrb[0].mxu0
  %v1828 = vadd.f32 %v1733, %v1827
  %v1829 = vpop.f32.mrb[0].mxu0
  %v1830 = vadd.f32 %v1737, %v1829
  %v1831 = vpop.f32.mrb[0].mxu0
  %v1832 = vpop.f32.mrb[0].mxu0
  %1833 = vdwg.mxu0
  %1834 = vmatprep.subr.bf16.mxu0 %v1777
  %1835 = vmatpush1.bf16.msra.mxu0 %v1776
  %1836 = vmatprep.subr.bf16.mxu0 %v1781
  %1837 = vmatpush1.bf16.msra.mxu0 %v1780
  %1838 = vmatprep.subr.bf16.mxu0 0
  %1839 = vmatpush1.bf16.msra.mxu0 0
  %1840 = vmatprep.subr.bf16.mxu0 0
  %1841 = vmatpush1.bf16.msra.mxu0 0
  %1842 = vmatprep.subr.bf16.mxu0 0
  %1843 = vmatpush1.bf16.msra.mxu0 0
  %1844 = vmatprep.subr.bf16.mxu0 0
  %1845 = vmatpush1.bf16.msra.mxu0 0
  %1846 = vmatprep.subr.bf16.mxu0 0
  %1847 = vmatpush1.bf16.msra.mxu0 0
  %1848 = vmatprep.subr.bf16.mxu0 0
  %1849 = vmatpush1.bf16.msra.mxu0 0
  %1850 = vmatprep.subr.bf16.mxu0 0
  %1851 = vmatpush1.bf16.msra.mxu0 0
  %1852 = vmatprep.subr.bf16.mxu0 0
  %1853 = vmatpush1.bf16.msra.mxu0 0
  %1854 = vmatprep.subr.bf16.mxu0 0
  %1855 = vmatpush1.bf16.msra.mxu0 0
  %1856 = vmatprep.subr.bf16.mxu0 0
  %1857 = vmatpush1.bf16.msra.mxu0 0
  %1858 = vmatprep.subr.bf16.mxu0 0
  %1859 = vmatpush1.bf16.msra.mxu0 0
  %1860 = vmatprep.subr.bf16.mxu0 0
  %1861 = vmatpush1.bf16.msra.mxu0 0
  %1862 = vmatprep.subr.bf16.mxu0 0
  %1863 = vmatpush1.bf16.msra.mxu0 0
  %1864 = vmatprep.subr.bf16.mxu0 0
  %1865 = vmatpush1.bf16.msra.mxu0 0
  %1866 = vmatprep.mubr.bf16.mxu0 0
  %1867 = vmatmul.mubr.bf16.gmra.mrb[0].mxu0 %v1791
  %v1868 = vpop.f32.mrb[0].mxu0
  %v1869 = vadd.f32 %v1741, %v1868
  %v1870 = vpop.f32.mrb[0].mxu0
  %v1871 = vadd.f32 %v1745, %v1870
  %v1872 = vpop.f32.mrb[0].mxu0
  %v1873 = vpop.f32.mrb[0].mxu0
  %1874 = vdwg.mxu0
  %v1875 = vmax.f32 %v1828, 0.0
  %v1876 = vmax.f32 %v1830, 0.0
  %v1877 = vmax.f32 %v1869, 0.0
  %v1878 = vmax.f32 %v1871, 0.0
  %v1879 = vpack.c.bf16 %v1875, %v1875
  %v1880 = vpack.c.bf16 %v1876, %v1876
  %v1881 = vpack.c.bf16 %v1877, %v1877
  %v1882 = vpack.c.bf16 %v1878, %v1878
  %v1883 = vld [vmem:[%s9] sm:$0xff]
  %v1884 = vld [vmem:[%s9 + $0x8] sm:$0xff]
  %v1885 = vld [vmem:[%s9 + $0x10] sm:$0xff]
  %v1886 = vld [vmem:[%s9 + $0x18] sm:$0xff]
  %v1887 = vld [vmem:[%s9 + $0x20] sm:$0xff]
  %v1888 = vld [vmem:[%s9 + $0x28] sm:$0xff]
  %v1889 = vld [vmem:[%s9 + $0x30] sm:$0xff]
  %v1890 = vld [vmem:[%s9 + $0x38] sm:$0xff]
  %v1891 = vld [vmem:[%s9 + $0x40] sm:$0xff]
  %v1892 = vld [vmem:[%s9 + $0x48] sm:$0xff]
  %v1893 = vld [vmem:[%s9 + $0x50] sm:$0xff]
  %v1894 = vld [vmem:[%s9 + $0x58] sm:$0xff]
  %v1895 = vld [vmem:[%s9 + $0x60] sm:$0xff]
  %v1896 = vld [vmem:[%s9 + $0x68] sm:$0xff]
  %v1897 = vld [vmem:[%s9 + $0x70] sm:$0xff]
  %v1898 = vld [vmem:[%s9 + $0x78] sm:$0xff]
  %v1899 = vld [vmem:[%s9 + $0x80] sm:$0xff]
  %v1900 = vld [vmem:[%s9 + $0x88] sm:$0xff]
  %v1901 = vld [vmem:[%s9 + $0x90] sm:$0xff]
  %v1902 = vld [vmem:[%s9 + $0x98] sm:$0xff]
  %v1903 = vld [vmem:[%s9 + $0xa0] sm:$0xff]
  %v1904 = vld [vmem:[%s9 + $0xa8] sm:$0xff]
  %v1905 = vld [vmem:[%s9 + $0xb0] sm:$0xff]
  %v1906 = vld [vmem:[%s9 + $0xb8] sm:$0xff]
  %v1907 = vld [vmem:[%s9 + $0xc0] sm:$0xff]
  %v1908 = vld [vmem:[%s9 + $0xc8] sm:$0xff]
  %v1909 = vld [vmem:[%s9 + $0xd0] sm:$0xff]
  %v1910 = vld [vmem:[%s9 + $0xd8] sm:$0xff]
  %v1911 = vld [vmem:[%s9 + $0xe0] sm:$0xff]
  %v1912 = vld [vmem:[%s9 + $0xe8] sm:$0xff]
  %v1913 = vld [vmem:[%s9 + $0xf0] sm:$0xff]
  %v1914 = vld [vmem:[%s9 + $0xf8] sm:$0xff]
  %v1915 = vld [vmem:[%s9 + $0x100] sm:$0xff]
  %v1916 = vld [vmem:[%s9 + $0x108] sm:$0xff]
  %v1917 = vld [vmem:[%s9 + $0x110] sm:$0xff]
  %v1918 = vld [vmem:[%s9 + $0x118] sm:$0xff]
  %v1919 = vld [vmem:[%s9 + $0x120] sm:$0xff]
  %v1920 = vld [vmem:[%s9 + $0x128] sm:$0xff]
  %v1921 = vld [vmem:[%s9 + $0x130] sm:$0xff]
  %v1922 = vld [vmem:[%s9 + $0x138] sm:$0xff]
  %v1923 = vld [vmem:[%s9 + $0x140] sm:$0xff]
  %v1924 = vld [vmem:[%s9 + $0x148] sm:$0xff]
  %v1925 = vld [vmem:[%s9 + $0x150] sm:$0xff]
  %v1926 = vld [vmem:[%s9 + $0x158] sm:$0xff]
  %v1927 = vld [vmem:[%s9 + $0x160] sm:$0xff]
  %v1928 = vld [vmem:[%s9 + $0x168] sm:$0xff]
  %v1929 = vld [vmem:[%s9 + $0x170] sm:$0xff]
  %v1930 = vld [vmem:[%s9 + $0x178] sm:$0xff]
  %v1931 = vld [vmem:[%s9 + $0x180] sm:$0xff]
  %v1932 = vld [vmem:[%s9 + $0x188] sm:$0xff]
  %v1933 = vld [vmem:[%s9 + $0x190] sm:$0xff]
  %v1934 = vld [vmem:[%s9 + $0x198] sm:$0xff]
  %v1935 = vld [vmem:[%s9 + $0x1a0] sm:$0xff]
  %v1936 = vld [vmem:[%s9 + $0x1a8] sm:$0xff]
  %v1937 = vld [vmem:[%s9 + $0x1b0] sm:$0xff]
  %v1938 = vld [vmem:[%s9 + $0x1b8] sm:$0xff]
  %v1939 = vld [vmem:[%s9 + $0x1c0] sm:$0xff]
  %v1940 = vld [vmem:[%s9 + $0x1c8] sm:$0xff]
  %v1941 = vld [vmem:[%s9 + $0x1d0] sm:$0xff]
  %v1942 = vld [vmem:[%s9 + $0x1d8] sm:$0xff]
  %v1943 = vld [vmem:[%s9 + $0x1e0] sm:$0xff]
  %v1944 = vld [vmem:[%s9 + $0x1e8] sm:$0xff]
  %v1945 = vld [vmem:[%s9 + $0x1f0] sm:$0xff]
  %v1946 = vld [vmem:[%s9 + $0x1f8] sm:$0xff]
  %v1947 = vld [vmem:[%s9 + $0x200] sm:$0xff]
  %v1948 = vld [vmem:[%s9 + $0x208] sm:$0xff]
  %v1949 = vld [vmem:[%s9 + $0x210] sm:$0xff]
  %v1950 = vld [vmem:[%s9 + $0x218] sm:$0xff]
  %v1951 = vld [vmem:[%s9 + $0x220] sm:$0xff]
  %v1952 = vld [vmem:[%s9 + $0x228] sm:$0xff]
  %v1953 = vld [vmem:[%s9 + $0x230] sm:$0xff]
  %v1954 = vld [vmem:[%s9 + $0x238] sm:$0xff]
  %v1955 = vld [vmem:[%s9 + $0x240] sm:$0xff]
  %v1956 = vld [vmem:[%s9 + $0x248] sm:$0xff]
  %v1957 = vld [vmem:[%s9 + $0x250] sm:$0xff]
  %v1958 = vld [vmem:[%s9 + $0x258] sm:$0xff]
  %v1959 = vld [vmem:[%s9 + $0x260] sm:$0xff]
  %v1960 = vld [vmem:[%s9 + $0x268] sm:$0xff]
  %v1961 = vld [vmem:[%s9 + $0x270] sm:$0xff]
  %v1962 = vld [vmem:[%s9 + $0x278] sm:$0xff]
  %v1963 = vld [vmem:[%s9 + $0x280] sm:$0xff]
  %v1964 = vld [vmem:[%s9 + $0x288] sm:$0xff]
  %v1965 = vld [vmem:[%s9 + $0x290] sm:$0xff]
  %v1966 = vld [vmem:[%s9 + $0x298] sm:$0xff]
  %v1967 = vld [vmem:[%s9 + $0x2a0] sm:$0xff]
  %v1968 = vld [vmem:[%s9 + $0x2a8] sm:$0xff]
  %v1969 = vld [vmem:[%s9 + $0x2b0] sm:$0xff]
  %v1970 = vld [vmem:[%s9 + $0x2b8] sm:$0xff]
  %v1971 = vld [vmem:[%s9 + $0x2c0] sm:$0xff]
  %v1972 = vld [vmem:[%s9 + $0x2c8] sm:$0xff]
  %v1973 = vld [vmem:[%s9 + $0x2d0] sm:$0xff]
  %v1974 = vld [vmem:[%s9 + $0x2d8] sm:$0xff]
  %v1975 = vld [vmem:[%s9 + $0x2e0] sm:$0xff]
  %v1976 = vld [vmem:[%s9 + $0x2e8] sm:$0xff]
  %v1977 = vld [vmem:[%s9 + $0x2f0] sm:$0xff]
  %v1978 = vld [vmem:[%s9 + $0x2f8] sm:$0xff]
  %v1979 = vld [vmem:[%s9 + $0x300] sm:$0xff]
  %v1980 = vld [vmem:[%s9 + $0x308] sm:$0xff]
  %v1981 = vld [vmem:[%s9 + $0x310] sm:$0xff]
  %v1982 = vld [vmem:[%s9 + $0x318] sm:$0xff]
  %v1983 = vld [vmem:[%s9 + $0x320] sm:$0xff]
  %v1984 = vld [vmem:[%s9 + $0x328] sm:$0xff]
  %v1985 = vld [vmem:[%s9 + $0x330] sm:$0xff]
  %v1986 = vld [vmem:[%s9 + $0x338] sm:$0xff]
  %v1987 = vld [vmem:[%s9 + $0x340] sm:$0xff]
  %v1988 = vld [vmem:[%s9 + $0x348] sm:$0xff]
  %v1989 = vld [vmem:[%s9 + $0x350] sm:$0xff]
  %v1990 = vld [vmem:[%s9 + $0x358] sm:$0xff]
  %v1991 = vld [vmem:[%s9 + $0x360] sm:$0xff]
  %v1992 = vld [vmem:[%s9 + $0x368] sm:$0xff]
  %v1993 = vld [vmem:[%s9 + $0x370] sm:$0xff]
  %v1994 = vld [vmem:[%s9 + $0x378] sm:$0xff]
  %v1995 = vld [vmem:[%s9 + $0x380] sm:$0xff]
  %v1996 = vld [vmem:[%s9 + $0x388] sm:$0xff]
  %v1997 = vld [vmem:[%s9 + $0x390] sm:$0xff]
  %v1998 = vld [vmem:[%s9 + $0x398] sm:$0xff]
  %v1999 = vld [vmem:[%s9 + $0x3a0] sm:$0xff]
  %v2000 = vld [vmem:[%s9 + $0x3a8] sm:$0xff]
  %v2001 = vld [vmem:[%s9 + $0x3b0] sm:$0xff]
  %v2002 = vld [vmem:[%s9 + $0x3b8] sm:$0xff]
  %v2003 = vld [vmem:[%s9 + $0x3c0] sm:$0xff]
  %v2004 = vld [vmem:[%s9 + $0x3c8] sm:$0xff]
  %v2005 = vld [vmem:[%s9 + $0x3d0] sm:$0xff]
  %v2006 = vld [vmem:[%s9 + $0x3d8] sm:$0xff]
  %v2007 = vld [vmem:[%s9 + $0x3e0] sm:$0xff]
  %v2008 = vld [vmem:[%s9 + $0x3e8] sm:$0xff]
  %v2009 = vld [vmem:[%s9 + $0x3f0] sm:$0xff]
  %v2010 = vld [vmem:[%s9 + $0x3f8] sm:$0xff]
  %v2011 = vld [vmem:[%s10] sm:$0xf]
  %v2013 = vlaneseq
  %v2014 = vshrl.u32 %v2013, 7
  %v2015 = vsub.s32 0, %v2014
  %v2016 = vrot.slane %v2011, %v2015
  %v2017 = vlaneseq
  %v2018 = vshrl.u32 %v2017, 7
  %v2019 = vsub.s32 1, %v2018
  %v2020 = vrot.slane %v2011, %v2019
  %v2021 = vlaneseq
  %v2022 = vshrl.u32 %v2021, 7
  %v2023 = vsub.s32 2, %v2022
  %v2024 = vrot.slane %v2011, %v2023
  %v2025 = vlaneseq
  %v2026 = vshrl.u32 %v2025, 7
  %v2027 = vsub.s32 3, %v2026
  %v2028 = vrot.slane %v2011, %v2027
  %v2161 = vunpack.c.l.b16 %v1883
  %v2162 = vunpack.c.h.b16 %v1883
  %v2163 = vunpack.c.l.b16 %v1884
  %v2164 = vunpack.c.h.b16 %v1884
  %v2165 = vunpack.c.l.b16 %v1885
  %v2166 = vunpack.c.h.b16 %v1885
  %v2167 = vunpack.c.l.b16 %v1886
  %v2168 = vunpack.c.h.b16 %v1886
  %v2169 = vunpack.c.l.b16 %v1887
  %v2170 = vunpack.c.h.b16 %v1887
  %v2171 = vunpack.c.l.b16 %v1888
  %v2172 = vunpack.c.h.b16 %v1888
  %v2173 = vunpack.c.l.b16 %v1889
  %v2174 = vunpack.c.h.b16 %v1889
  %v2175 = vunpack.c.l.b16 %v1890
  %v2176 = vunpack.c.h.b16 %v1890
  %v2177 = vunpack.c.l.b16 %v1891
  %v2178 = vunpack.c.h.b16 %v1891
  %v2179 = vunpack.c.l.b16 %v1892
  %v2180 = vunpack.c.h.b16 %v1892
  %v2181 = vunpack.c.l.b16 %v1893
  %v2182 = vunpack.c.h.b16 %v1893
  %v2183 = vunpack.c.l.b16 %v1894
  %v2184 = vunpack.c.h.b16 %v1894
  %v2185 = vunpack.c.l.b16 %v1895
  %v2186 = vunpack.c.h.b16 %v1895
  %v2187 = vunpack.c.l.b16 %v1896
  %v2188 = vunpack.c.h.b16 %v1896
  %v2189 = vunpack.c.l.b16 %v1897
  %v2190 = vunpack.c.h.b16 %v1897
  %v2191 = vunpack.c.l.b16 %v1898
  %v2192 = vunpack.c.h.b16 %v1898
  %v2193 = vunpack.c.l.b16 %v1899
  %v2194 = vunpack.c.h.b16 %v1899
  %v2195 = vunpack.c.l.b16 %v1900
  %v2196 = vunpack.c.h.b16 %v1900
  %v2197 = vunpack.c.l.b16 %v1901
  %v2198 = vunpack.c.h.b16 %v1901
  %v2199 = vunpack.c.l.b16 %v1902
  %v2200 = vunpack.c.h.b16 %v1902
  %v2201 = vunpack.c.l.b16 %v1903
  %v2202 = vunpack.c.h.b16 %v1903
  %v2203 = vunpack.c.l.b16 %v1904
  %v2204 = vunpack.c.h.b16 %v1904
  %v2205 = vunpack.c.l.b16 %v1905
  %v2206 = vunpack.c.h.b16 %v1905
  %v2207 = vunpack.c.l.b16 %v1906
  %v2208 = vunpack.c.h.b16 %v1906
  %v2209 = vunpack.c.l.b16 %v1907
  %v2210 = vunpack.c.h.b16 %v1907
  %v2211 = vunpack.c.l.b16 %v1908
  %v2212 = vunpack.c.h.b16 %v1908
  %v2213 = vunpack.c.l.b16 %v1909
  %v2214 = vunpack.c.h.b16 %v1909
  %v2215 = vunpack.c.l.b16 %v1910
  %v2216 = vunpack.c.h.b16 %v1910
  %v2217 = vunpack.c.l.b16 %v1911
  %v2218 = vunpack.c.h.b16 %v1911
  %v2219 = vunpack.c.l.b16 %v1912
  %v2220 = vunpack.c.h.b16 %v1912
  %v2221 = vunpack.c.l.b16 %v1913
  %v2222 = vunpack.c.h.b16 %v1913
  %v2223 = vunpack.c.l.b16 %v1914
  %v2224 = vunpack.c.h.b16 %v1914
  %v2225 = vunpack.c.l.b16 %v1915
  %v2226 = vunpack.c.h.b16 %v1915
  %v2227 = vunpack.c.l.b16 %v1916
  %v2228 = vunpack.c.h.b16 %v1916
  %v2229 = vunpack.c.l.b16 %v1917
  %v2230 = vunpack.c.h.b16 %v1917
  %v2231 = vunpack.c.l.b16 %v1918
  %v2232 = vunpack.c.h.b16 %v1918
  %v2233 = vunpack.c.l.b16 %v1919
  %v2234 = vunpack.c.h.b16 %v1919
  %v2235 = vunpack.c.l.b16 %v1920
  %v2236 = vunpack.c.h.b16 %v1920
  %v2237 = vunpack.c.l.b16 %v1921
  %v2238 = vunpack.c.h.b16 %v1921
  %v2239 = vunpack.c.l.b16 %v1922
  %v2240 = vunpack.c.h.b16 %v1922
  %v2241 = vunpack.c.l.b16 %v1923
  %v2242 = vunpack.c.h.b16 %v1923
  %v2243 = vunpack.c.l.b16 %v1924
  %v2244 = vunpack.c.h.b16 %v1924
  %v2245 = vunpack.c.l.b16 %v1925
  %v2246 = vunpack.c.h.b16 %v1925
  %v2247 = vunpack.c.l.b16 %v1926
  %v2248 = vunpack.c.h.b16 %v1926
  %v2249 = vunpack.c.l.b16 %v1927
  %v2250 = vunpack.c.h.b16 %v1927
  %v2251 = vunpack.c.l.b16 %v1928
  %v2252 = vunpack.c.h.b16 %v1928
  %v2253 = vunpack.c.l.b16 %v1929
  %v2254 = vunpack.c.h.b16 %v1929
  %v2255 = vunpack.c.l.b16 %v1930
  %v2256 = vunpack.c.h.b16 %v1930
  %v2257 = vunpack.c.l.b16 %v1931
  %v2258 = vunpack.c.h.b16 %v1931
  %v2259 = vunpack.c.l.b16 %v1932
  %v2260 = vunpack.c.h.b16 %v1932
  %v2261 = vunpack.c.l.b16 %v1933
  %v2262 = vunpack.c.h.b16 %v1933
  %v2263 = vunpack.c.l.b16 %v1934
  %v2264 = vunpack.c.h.b16 %v1934
  %v2265 = vunpack.c.l.b16 %v1935
  %v2266 = vunpack.c.h.b16 %v1935
  %v2267 = vunpack.c.l.b16 %v1936
  %v2268 = vunpack.c.h.b16 %v1936
  %v2269 = vunpack.c.l.b16 %v1937
  %v2270 = vunpack.c.h.b16 %v1937
  %v2271 = vunpack.c.l.b16 %v1938
  %v2272 = vunpack.c.h.b16 %v1938
  %v2273 = vunpack.c.l.b16 %v1939
  %v2274 = vunpack.c.h.b16 %v1939
  %v2275 = vunpack.c.l.b16 %v1940
  %v2276 = vunpack.c.h.b16 %v1940
  %v2277 = vunpack.c.l.b16 %v1941
  %v2278 = vunpack.c.h.b16 %v1941
  %v2279 = vunpack.c.l.b16 %v1942
  %v2280 = vunpack.c.h.b16 %v1942
  %v2281 = vunpack.c.l.b16 %v1943
  %v2282 = vunpack.c.h.b16 %v1943
  %v2283 = vunpack.c.l.b16 %v1944
  %v2284 = vunpack.c.h.b16 %v1944
  %v2285 = vunpack.c.l.b16 %v1945
  %v2286 = vunpack.c.h.b16 %v1945
  %v2287 = vunpack.c.l.b16 %v1946
  %v2288 = vunpack.c.h.b16 %v1946
  %v2289 = vunpack.c.l.b16 %v1947
  %v2290 = vunpack.c.h.b16 %v1947
  %v2291 = vunpack.c.l.b16 %v1948
  %v2292 = vunpack.c.h.b16 %v1948
  %v2293 = vunpack.c.l.b16 %v1949
  %v2294 = vunpack.c.h.b16 %v1949
  %v2295 = vunpack.c.l.b16 %v1950
  %v2296 = vunpack.c.h.b16 %v1950
  %v2297 = vunpack.c.l.b16 %v1951
  %v2298 = vunpack.c.h.b16 %v1951
  %v2299 = vunpack.c.l.b16 %v1952
  %v2300 = vunpack.c.h.b16 %v1952
  %v2301 = vunpack.c.l.b16 %v1953
  %v2302 = vunpack.c.h.b16 %v1953
  %v2303 = vunpack.c.l.b16 %v1954
  %v2304 = vunpack.c.h.b16 %v1954
  %v2305 = vunpack.c.l.b16 %v1955
  %v2306 = vunpack.c.h.b16 %v1955
  %v2307 = vunpack.c.l.b16 %v1956
  %v2308 = vunpack.c.h.b16 %v1956
  %v2309 = vunpack.c.l.b16 %v1957
  %v2310 = vunpack.c.h.b16 %v1957
  %v2311 = vunpack.c.l.b16 %v1958
  %v2312 = vunpack.c.h.b16 %v1958
  %v2313 = vunpack.c.l.b16 %v1959
  %v2314 = vunpack.c.h.b16 %v1959
  %v2315 = vunpack.c.l.b16 %v1960
  %v2316 = vunpack.c.h.b16 %v1960
  %v2317 = vunpack.c.l.b16 %v1961
  %v2318 = vunpack.c.h.b16 %v1961
  %v2319 = vunpack.c.l.b16 %v1962
  %v2320 = vunpack.c.h.b16 %v1962
  %v2321 = vunpack.c.l.b16 %v1963
  %v2322 = vunpack.c.h.b16 %v1963
  %v2323 = vunpack.c.l.b16 %v1964
  %v2324 = vunpack.c.h.b16 %v1964
  %v2325 = vunpack.c.l.b16 %v1965
  %v2326 = vunpack.c.h.b16 %v1965
  %v2327 = vunpack.c.l.b16 %v1966
  %v2328 = vunpack.c.h.b16 %v1966
  %v2329 = vunpack.c.l.b16 %v1967
  %v2330 = vunpack.c.h.b16 %v1967
  %v2331 = vunpack.c.l.b16 %v1968
  %v2332 = vunpack.c.h.b16 %v1968
  %v2333 = vunpack.c.l.b16 %v1969
  %v2334 = vunpack.c.h.b16 %v1969
  %v2335 = vunpack.c.l.b16 %v1970
  %v2336 = vunpack.c.h.b16 %v1970
  %v2337 = vunpack.c.l.b16 %v1971
  %v2338 = vunpack.c.h.b16 %v1971
  %v2339 = vunpack.c.l.b16 %v1972
  %v2340 = vunpack.c.h.b16 %v1972
  %v2341 = vunpack.c.l.b16 %v1973
  %v2342 = vunpack.c.h.b16 %v1973
  %v2343 = vunpack.c.l.b16 %v1974
  %v2344 = vunpack.c.h.b16 %v1974
  %v2345 = vunpack.c.l.b16 %v1975
  %v2346 = vunpack.c.h.b16 %v1975
  %v2347 = vunpack.c.l.b16 %v1976
  %v2348 = vunpack.c.h.b16 %v1976
  %v2349 = vunpack.c.l.b16 %v1977
  %v2350 = vunpack.c.h.b16 %v1977
  %v2351 = vunpack.c.l.b16 %v1978
  %v2352 = vunpack.c.h.b16 %v1978
  %v2353 = vunpack.c.l.b16 %v1979
  %v2354 = vunpack.c.h.b16 %v1979
  %v2355 = vunpack.c.l.b16 %v1980
  %v2356 = vunpack.c.h.b16 %v1980
  %v2357 = vunpack.c.l.b16 %v1981
  %v2358 = vunpack.c.h.b16 %v1981
  %v2359 = vunpack.c.l.b16 %v1982
  %v2360 = vunpack.c.h.b16 %v1982
  %v2361 = vunpack.c.l.b16 %v1983
  %v2362 = vunpack.c.h.b16 %v1983
  %v2363 = vunpack.c.l.b16 %v1984
  %v2364 = vunpack.c.h.b16 %v1984
  %v2365 = vunpack.c.l.b16 %v1985
  %v2366 = vunpack.c.h.b16 %v1985
  %v2367 = vunpack.c.l.b16 %v1986
  %v2368 = vunpack.c.h.b16 %v1986
  %v2369 = vunpack.c.l.b16 %v1987
  %v2370 = vunpack.c.h.b16 %v1987
  %v2371 = vunpack.c.l.b16 %v1988
  %v2372 = vunpack.c.h.b16 %v1988
  %v2373 = vunpack.c.l.b16 %v1989
  %v2374 = vunpack.c.h.b16 %v1989
  %v2375 = vunpack.c.l.b16 %v1990
  %v2376 = vunpack.c.h.b16 %v1990
  %v2377 = vunpack.c.l.b16 %v1991
  %v2378 = vunpack.c.h.b16 %v1991
  %v2379 = vunpack.c.l.b16 %v1992
  %v2380 = vunpack.c.h.b16 %v1992
  %v2381 = vunpack.c.l.b16 %v1993
  %v2382 = vunpack.c.h.b16 %v1993
  %v2383 = vunpack.c.l.b16 %v1994
  %v2384 = vunpack.c.h.b16 %v1994
  %v2385 = vunpack.c.l.b16 %v1995
  %v2386 = vunpack.c.h.b16 %v1995
  %v2387 = vunpack.c.l.b16 %v1996
  %v2388 = vunpack.c.h.b16 %v1996
  %v2389 = vunpack.c.l.b16 %v1997
  %v2390 = vunpack.c.h.b16 %v1997
  %v2391 = vunpack.c.l.b16 %v1998
  %v2392 = vunpack.c.h.b16 %v1998
  %v2393 = vunpack.c.l.b16 %v1999
  %v2394 = vunpack.c.h.b16 %v1999
  %v2395 = vunpack.c.l.b16 %v2000
  %v2396 = vunpack.c.h.b16 %v2000
  %v2397 = vunpack.c.l.b16 %v2001
  %v2398 = vunpack.c.h.b16 %v2001
  %v2399 = vunpack.c.l.b16 %v2002
  %v2400 = vunpack.c.h.b16 %v2002
  %v2401 = vunpack.c.l.b16 %v2003
  %v2402 = vunpack.c.h.b16 %v2003
  %v2403 = vunpack.c.l.b16 %v2004
  %v2404 = vunpack.c.h.b16 %v2004
  %v2405 = vunpack.c.l.b16 %v2005
  %v2406 = vunpack.c.h.b16 %v2005
  %v2407 = vunpack.c.l.b16 %v2006
  %v2408 = vunpack.c.h.b16 %v2006
  %v2409 = vunpack.c.l.b16 %v2007
  %v2410 = vunpack.c.h.b16 %v2007
  %v2411 = vunpack.c.l.b16 %v2008
  %v2412 = vunpack.c.h.b16 %v2008
  %v2413 = vunpack.c.l.b16 %v2009
  %v2414 = vunpack.c.h.b16 %v2009
  %v2415 = vunpack.c.l.b16 %v2010
  %v2416 = vunpack.c.h.b16 %v2010
  %v2417 = vpack.c.b16 %v2165, %v2161
  %v2418 = vpack.c.b16 %v2166, %v2162
  %v2419 = vpack.c.b16 %v2167, %v2163
  %v2420 = vpack.c.b16 %v2168, %v2164
  %v2421 = vpack.c.b16 %v2173, %v2169
  %v2422 = vpack.c.b16 %v2174, %v2170
  %v2423 = vpack.c.b16 %v2175, %v2171
  %v2424 = vpack.c.b16 %v2176, %v2172
  %v2425 = vpack.c.b16 %v2181, %v2177
  %v2426 = vpack.c.b16 %v2182, %v2178
  %v2427 = vpack.c.b16 %v2183, %v2179
  %v2428 = vpack.c.b16 %v2184, %v2180
  %v2429 = vpack.c.b16 %v2189, %v2185
  %v2430 = vpack.c.b16 %v2190, %v2186
  %v2431 = vpack.c.b16 %v2191, %v2187
  %v2432 = vpack.c.b16 %v2192, %v2188
  %v2433 = vpack.c.b16 %v2197, %v2193
  %v2434 = vpack.c.b16 %v2198, %v2194
  %v2435 = vpack.c.b16 %v2199, %v2195
  %v2436 = vpack.c.b16 %v2200, %v2196
  %v2437 = vpack.c.b16 %v2205, %v2201
  %v2438 = vpack.c.b16 %v2206, %v2202
  %v2439 = vpack.c.b16 %v2207, %v2203
  %v2440 = vpack.c.b16 %v2208, %v2204
  %v2441 = vpack.c.b16 %v2213, %v2209
  %v2442 = vpack.c.b16 %v2214, %v2210
  %v2443 = vpack.c.b16 %v2215, %v2211
  %v2444 = vpack.c.b16 %v2216, %v2212
  %v2445 = vpack.c.b16 %v2221, %v2217
  %v2446 = vpack.c.b16 %v2222, %v2218
  %v2447 = vpack.c.b16 %v2223, %v2219
  %v2448 = vpack.c.b16 %v2224, %v2220
  %v2449 = vpack.c.b16 %v2229, %v2225
  %v2450 = vpack.c.b16 %v2230, %v2226
  %v2451 = vpack.c.b16 %v2231, %v2227
  %v2452 = vpack.c.b16 %v2232, %v2228
  %v2453 = vpack.c.b16 %v2237, %v2233
  %v2454 = vpack.c.b16 %v2238, %v2234
  %v2455 = vpack.c.b16 %v2239, %v2235
  %v2456 = vpack.c.b16 %v2240, %v2236
  %v2457 = vpack.c.b16 %v2245, %v2241
  %v2458 = vpack.c.b16 %v2246, %v2242
  %v2459 = vpack.c.b16 %v2247, %v2243
  %v2460 = vpack.c.b16 %v2248, %v2244
  %v2461 = vpack.c.b16 %v2253, %v2249
  %v2462 = vpack.c.b16 %v2254, %v2250
  %v2463 = vpack.c.b16 %v2255, %v2251
  %v2464 = vpack.c.b16 %v2256, %v2252
  %v2465 = vpack.c.b16 %v2261, %v2257
  %v2466 = vpack.c.b16 %v2262, %v2258
  %v2467 = vpack.c.b16 %v2263, %v2259
  %v2468 = vpack.c.b16 %v2264, %v2260
  %v2469 = vpack.c.b16 %v2269, %v2265
  %v2470 = vpack.c.b16 %v2270, %v2266
  %v2471 = vpack.c.b16 %v2271, %v2267
  %v2472 = vpack.c.b16 %v2272, %v2268
  %v2473 = vpack.c.b16 %v2277, %v2273
  %v2474 = vpack.c.b16 %v2278, %v2274
  %v2475 = vpack.c.b16 %v2279, %v2275
  %v2476 = vpack.c.b16 %v2280, %v2276
  %v2477 = vpack.c.b16 %v2285, %v2281
  %v2478 = vpack.c.b16 %v2286, %v2282
  %v2479 = vpack.c.b16 %v2287, %v2283
  %v2480 = vpack.c.b16 %v2288, %v2284
  %v2481 = vpack.c.b16 %v2293, %v2289
  %v2482 = vpack.c.b16 %v2294, %v2290
  %v2483 = vpack.c.b16 %v2295, %v2291
  %v2484 = vpack.c.b16 %v2296, %v2292
  %v2485 = vpack.c.b16 %v2301, %v2297
  %v2486 = vpack.c.b16 %v2302, %v2298
  %v2487 = vpack.c.b16 %v2303, %v2299
  %v2488 = vpack.c.b16 %v2304, %v2300
  %v2489 = vpack.c.b16 %v2309, %v2305
  %v2490 = vpack.c.b16 %v2310, %v2306
  %v2491 = vpack.c.b16 %v2311, %v2307
  %v2492 = vpack.c.b16 %v2312, %v2308
  %v2493 = vpack.c.b16 %v2317, %v2313
  %v2494 = vpack.c.b16 %v2318, %v2314
  %v2495 = vpack.c.b16 %v2319, %v2315
  %v2496 = vpack.c.b16 %v2320, %v2316
  %v2497 = vpack.c.b16 %v2325, %v2321
  %v2498 = vpack.c.b16 %v2326, %v2322
  %v2499 = vpack.c.b16 %v2327, %v2323
  %v2500 = vpack.c.b16 %v2328, %v2324
  %v2501 = vpack.c.b16 %v2333, %v2329
  %v2502 = vpack.c.b16 %v2334, %v2330
  %v2503 = vpack.c.b16 %v2335, %v2331
  %v2504 = vpack.c.b16 %v2336, %v2332
  %v2505 = vpack.c.b16 %v2341, %v2337
  %v2506 = vpack.c.b16 %v2342, %v2338
  %v2507 = vpack.c.b16 %v2343, %v2339
  %v2508 = vpack.c.b16 %v2344, %v2340
  %v2509 = vpack.c.b16 %v2349, %v2345
  %v2510 = vpack.c.b16 %v2350, %v2346
  %v2511 = vpack.c.b16 %v2351, %v2347
  %v2512 = vpack.c.b16 %v2352, %v2348
  %v2513 = vpack.c.b16 %v2357, %v2353
  %v2514 = vpack.c.b16 %v2358, %v2354
  %v2515 = vpack.c.b16 %v2359, %v2355
  %v2516 = vpack.c.b16 %v2360, %v2356
  %v2517 = vpack.c.b16 %v2365, %v2361
  %v2518 = vpack.c.b16 %v2366, %v2362
  %v2519 = vpack.c.b16 %v2367, %v2363
  %v2520 = vpack.c.b16 %v2368, %v2364
  %v2521 = vpack.c.b16 %v2373, %v2369
  %v2522 = vpack.c.b16 %v2374, %v2370
  %v2523 = vpack.c.b16 %v2375, %v2371
  %v2524 = vpack.c.b16 %v2376, %v2372
  %v2525 = vpack.c.b16 %v2381, %v2377
  %v2526 = vpack.c.b16 %v2382, %v2378
  %v2527 = vpack.c.b16 %v2383, %v2379
  %v2528 = vpack.c.b16 %v2384, %v2380
  %v2529 = vpack.c.b16 %v2389, %v2385
  %v2530 = vpack.c.b16 %v2390, %v2386
  %v2531 = vpack.c.b16 %v2391, %v2387
  %v2532 = vpack.c.b16 %v2392, %v2388
  %v2533 = vpack.c.b16 %v2397, %v2393
  %v2534 = vpack.c.b16 %v2398, %v2394
  %v2535 = vpack.c.b16 %v2399, %v2395
  %v2536 = vpack.c.b16 %v2400, %v2396
  %v2537 = vpack.c.b16 %v2405, %v2401
  %v2538 = vpack.c.b16 %v2406, %v2402
  %v2539 = vpack.c.b16 %v2407, %v2403
  %v2540 = vpack.c.b16 %v2408, %v2404
  %v2541 = vpack.c.b16 %v2413, %v2409
  %v2542 = vpack.c.b16 %v2414, %v2410
  %v2543 = vpack.c.b16 %v2415, %v2411
  %v2544 = vpack.c.b16 %v2416, %v2412
  %2673 = vmatprep.subr.bf16.mxu0 %v2418
  %2674 = vmatpush1.bf16.msra.mxu0 %v2417
  %2675 = vmatprep.subr.bf16.mxu0 %v2422
  %2676 = vmatpush1.bf16.msra.mxu0 %v2421
  %2677 = vmatprep.subr.bf16.mxu0 %v2426
  %2678 = vmatpush1.bf16.msra.mxu0 %v2425
  %2679 = vmatprep.subr.bf16.mxu0 %v2430
  %2680 = vmatpush1.bf16.msra.mxu0 %v2429
  %2681 = vmatprep.subr.bf16.mxu0 %v2434
  %2682 = vmatpush1.bf16.msra.mxu0 %v2433
  %2683 = vmatprep.subr.bf16.mxu0 %v2438
  %2684 = vmatpush1.bf16.msra.mxu0 %v2437
  %2685 = vmatprep.subr.bf16.mxu0 %v2442
  %2686 = vmatpush1.bf16.msra.mxu0 %v2441
  %2687 = vmatprep.subr.bf16.mxu0 %v2446
  %2688 = vmatpush1.bf16.msra.mxu0 %v2445
  %2689 = vmatprep.subr.bf16.mxu0 %v2450
  %2690 = vmatpush1.bf16.msra.mxu0 %v2449
  %2691 = vmatprep.subr.bf16.mxu0 %v2454
  %2692 = vmatpush1.bf16.msra.mxu0 %v2453
  %2693 = vmatprep.subr.bf16.mxu0 %v2458
  %2694 = vmatpush1.bf16.msra.mxu0 %v2457
  %2695 = vmatprep.subr.bf16.mxu0 %v2462
  %2696 = vmatpush1.bf16.msra.mxu0 %v2461
  %2697 = vmatprep.subr.bf16.mxu0 %v2466
  %2698 = vmatpush1.bf16.msra.mxu0 %v2465
  %2699 = vmatprep.subr.bf16.mxu0 %v2470
  %2700 = vmatpush1.bf16.msra.mxu0 %v2469
  %2701 = vmatprep.subr.bf16.mxu0 %v2474
  %2702 = vmatpush1.bf16.msra.mxu0 %v2473
  %2703 = vmatprep.subr.bf16.mxu0 %v2478
  %2704 = vmatpush1.bf16.msra.mxu0 %v2477
  %2705 = vmatprep.mubr.bf16.mxu0 %v1880
  %2706 = vmatmul.mubr.bf16.gmra.mrb[0].mxu0 %v1879
  %v2707 = vpop.f32.mrb[0].mxu0
  %v2708 = vadd.f32 %v2016, %v2707
  %v2709 = vpop.f32.mrb[0].mxu0
  %v2710 = vadd.f32 %v2020, %v2709
  %v2711 = vpop.f32.mrb[0].mxu0
  %v2712 = vpop.f32.mrb[0].mxu0
  %2713 = vdwg.mxu0
  %2714 = vmatprep.subr.bf16.mxu0 %v2482
  %2715 = vmatpush1.bf16.msra.mxu0 %v2481
  %2716 = vmatprep.subr.bf16.mxu0 %v2486
  %2717 = vmatpush1.bf16.msra.mxu0 %v2485
  %2718 = vmatprep.subr.bf16.mxu0 %v2490
  %2719 = vmatpush1.bf16.msra.mxu0 %v2489
  %2720 = vmatprep.subr.bf16.mxu0 %v2494
  %2721 = vmatpush1.bf16.msra.mxu0 %v2493
  %2722 = vmatprep.subr.bf16.mxu0 %v2498
  %2723 = vmatpush1.bf16.msra.mxu0 %v2497
  %2724 = vmatprep.subr.bf16.mxu0 %v2502
  %2725 = vmatpush1.bf16.msra.mxu0 %v2501
  %2726 = vmatprep.subr.bf16.mxu0 %v2506
  %2727 = vmatpush1.bf16.msra.mxu0 %v2505
  %2728 = vmatprep.subr.bf16.mxu0 %v2510
  %2729 = vmatpush1.bf16.msra.mxu0 %v2509
  %2730 = vmatprep.subr.bf16.mxu0 %v2514
  %2731 = vmatpush1.bf16.msra.mxu0 %v2513
  %2732 = vmatprep.subr.bf16.mxu0 %v2518
  %2733 = vmatpush1.bf16.msra.mxu0 %v2517
  %2734 = vmatprep.subr.bf16.mxu0 %v2522
  %2735 = vmatpush1.bf16.msra.mxu0 %v2521
  %2736 = vmatprep.subr.bf16.mxu0 %v2526
  %2737 = vmatpush1.bf16.msra.mxu0 %v2525
  %2738 = vmatprep.subr.bf16.mxu0 %v2530
  %2739 = vmatpush1.bf16.msra.mxu0 %v2529
  %2740 = vmatprep.subr.bf16.mxu0 %v2534
  %2741 = vmatpush1.bf16.msra.mxu0 %v2533
  %2742 = vmatprep.subr.bf16.mxu0 %v2538
  %2743 = vmatpush1.bf16.msra.mxu0 %v2537
  %2744 = vmatprep.subr.bf16.mxu0 %v2542
  %2745 = vmatpush1.bf16.msra.mxu0 %v2541
  %2746 = vmatprep.mubr.bf16.mxu0 %v1882
  %2747 = vmatmul.mubr.bf16.gmra.mrb[0].mxu0 %v1881
  %v2748 = vpop.f32.mrb[0].mxu0
  %v2749 = vadd.f32 %v2708, %v2748
  %v2750 = vpop.f32.mrb[0].mxu0
  %v2751 = vadd.f32 %v2710, %v2750
  %v2752 = vpop.f32.mrb[0].mxu0
  %v2753 = vpop.f32.mrb[0].mxu0
  %2754 = vdwg.mxu0
  %2755 = vmatprep.subr.bf16.mxu0 %v2420
  %2756 = vmatpush1.bf16.msra.mxu0 %v2419
  %2757 = vmatprep.subr.bf16.mxu0 %v2424
  %2758 = vmatpush1.bf16.msra.mxu0 %v2423
  %2759 = vmatprep.subr.bf16.mxu0 %v2428
  %2760 = vmatpush1.bf16.msra.mxu0 %v2427
  %2761 = vmatprep.subr.bf16.mxu0 %v2432
  %2762 = vmatpush1.bf16.msra.mxu0 %v2431
  %2763 = vmatprep.subr.bf16.mxu0 %v2436
  %2764 = vmatpush1.bf16.msra.mxu0 %v2435
  %2765 = vmatprep.subr.bf16.mxu0 %v2440
  %2766 = vmatpush1.bf16.msra.mxu0 %v2439
  %2767 = vmatprep.subr.bf16.mxu0 %v2444
  %2768 = vmatpush1.bf16.msra.mxu0 %v2443
  %2769 = vmatprep.subr.bf16.mxu0 %v2448
  %2770 = vmatpush1.bf16.msra.mxu0 %v2447
  %2771 = vmatprep.subr.bf16.mxu0 %v2452
  %2772 = vmatpush1.bf16.msra.mxu0 %v2451
  %2773 = vmatprep.subr.bf16.mxu0 %v2456
  %2774 = vmatpush1.bf16.msra.mxu0 %v2455
  %2775 = vmatprep.subr.bf16.mxu0 %v2460
  %2776 = vmatpush1.bf16.msra.mxu0 %v2459
  %2777 = vmatprep.subr.bf16.mxu0 %v2464
  %2778 = vmatpush1.bf16.msra.mxu0 %v2463
  %2779 = vmatprep.subr.bf16.mxu0 %v2468
  %2780 = vmatpush1.bf16.msra.mxu0 %v2467
  %2781 = vmatprep.subr.bf16.mxu0 %v2472
  %2782 = vmatpush1.bf16.msra.mxu0 %v2471
  %2783 = vmatprep.subr.bf16.mxu0 %v2476
  %2784 = vmatpush1.bf16.msra.mxu0 %v2475
  %2785 = vmatprep.subr.bf16.mxu0 %v2480
  %2786 = vmatpush1.bf16.msra.mxu0 %v2479
  %2787 = vmatprep.mubr.bf16.mxu0 %v1880
  %2788 = vmatmul.mubr.bf16.gmra.mrb[0].mxu0 %v1879
  %v2789 = vpop.f32.mrb[0].mxu0
  %v2790 = vadd.f32 %v2024, %v2789
  %v2791 = vpop.f32.mrb[0].mxu0
  %v2792 = vadd.f32 %v2028, %v2791
  %v2793 = vpop.f32.mrb[0].mxu0
  %v2794 = vpop.f32.mrb[0].mxu0
  %2795 = vdwg.mxu0
  %2796 = vmatprep.subr.bf16.mxu0 %v2484
  %2797 = vmatpush1.bf16.msra.mxu0 %v2483
  %2798 = vmatprep.subr.bf16.mxu0 %v2488
  %2799 = vmatpush1.bf16.msra.mxu0 %v2487
  %2800 = vmatprep.subr.bf16.mxu0 %v2492
  %2801 = vmatpush1.bf16.msra.mxu0 %v2491
  %2802 = vmatprep.subr.bf16.mxu0 %v2496
  %2803 = vmatpush1.bf16.msra.mxu0 %v2495
  %2804 = vmatprep.subr.bf16.mxu0 %v2500
  %2805 = vmatpush1.bf16.msra.mxu0 %v2499
  %2806 = vmatprep.subr.bf16.mxu0 %v2504
  %2807 = vmatpush1.bf16.msra.mxu0 %v2503
  %2808 = vmatprep.subr.bf16.mxu0 %v2508
  %2809 = vmatpush1.bf16.msra.mxu0 %v2507
  %2810 = vmatprep.subr.bf16.mxu0 %v2512
  %2811 = vmatpush1.bf16.msra.mxu0 %v2511
  %2812 = vmatprep.subr.bf16.mxu0 %v2516
  %2813 = vmatpush1.bf16.msra.mxu0 %v2515
  %2814 = vmatprep.subr.bf16.mxu0 %v2520
  %2815 = vmatpush1.bf16.msra.mxu0 %v2519
  %2816 = vmatprep.subr.bf16.mxu0 %v2524
  %2817 = vmatpush1.bf16.msra.mxu0 %v2523
  %2818 = vmatprep.subr.bf16.mxu0 %v2528
  %2819 = vmatpush1.bf16.msra.mxu0 %v2527
  %2820 = vmatprep.subr.bf16.mxu0 %v2532
  %2821 = vmatpush1.bf16.msra.mxu0 %v2531
  %2822 = vmatprep.subr.bf16.mxu0 %v2536
  %2823 = vmatpush1.bf16.msra.mxu0 %v2535
  %2824 = vmatprep.subr.bf16.mxu0 %v2540
  %2825 = vmatpush1.bf16.msra.mxu0 %v2539
  %2826 = vmatprep.subr.bf16.mxu0 %v2544
  %2827 = vmatpush1.bf16.msra.mxu0 %v2543
  %2828 = vmatprep.mubr.bf16.mxu0 %v1882
  %2829 = vmatmul.mubr.bf16.gmra.mrb[0].mxu0 %v1881
  %v2830 = vpop.f32.mrb[0].mxu0
  %v2831 = vadd.f32 %v2790, %v2830
  %v2832 = vpop.f32.mrb[0].mxu0
  %v2833 = vadd.f32 %v2792, %v2832
  %v2834 = vpop.f32.mrb[0].mxu0
  %v2835 = vpop.f32.mrb[0].mxu0
  %2836 = vdwg.mxu0
  %v2837 = vmax.f32 %v2749, 0.0
  %v2838 = vmax.f32 %v2751, 0.0
  %v2839 = vmax.f32 %v2831, 0.0
  %v2840 = vmax.f32 %v2833, 0.0
  %v2841 = vpack.c.bf16 %v2837, %v2837
  %v2842 = vpack.c.bf16 %v2838, %v2838
  %v2843 = vpack.c.bf16 %v2839, %v2839
  %v2844 = vpack.c.bf16 %v2840, %v2840
  %v2845 = vld [vmem:[%s11] sm:$0xf]
  %v2846 = vld [vmem:[%s11 + $0x4] sm:$0xf]
  %v2847 = vld [vmem:[%s11 + $0x8] sm:$0xf]
  %v2848 = vld [vmem:[%s11 + $0xc] sm:$0xf]
  %v2849 = vld [vmem:[%s11 + $0x10] sm:$0xf]
  %v2850 = vld [vmem:[%s11 + $0x14] sm:$0xf]
  %v2851 = vld [vmem:[%s11 + $0x18] sm:$0xf]
  %v2852 = vld [vmem:[%s11 + $0x1c] sm:$0xf]
  %v2853 = vld [vmem:[%s11 + $0x20] sm:$0xf]
  %v2854 = vld [vmem:[%s11 + $0x24] sm:$0xf]
  %v2855 = vld [vmem:[%s11 + $0x28] sm:$0xf]
  %v2856 = vld [vmem:[%s11 + $0x2c] sm:$0xf]
  %v2857 = vld [vmem:[%s11 + $0x30] sm:$0xf]
  %v2858 = vld [vmem:[%s11 + $0x34] sm:$0xf]
  %v2859 = vld [vmem:[%s11 + $0x38] sm:$0xf]
  %v2860 = vld [vmem:[%s11 + $0x3c] sm:$0xf]
  %v2861 = vld [vmem:[%s11 + $0x40] sm:$0xf]
  %v2862 = vld [vmem:[%s11 + $0x44] sm:$0xf]
  %v2863 = vld [vmem:[%s11 + $0x48] sm:$0xf]
  %v2864 = vld [vmem:[%s11 + $0x4c] sm:$0xf]
  %v2865 = vld [vmem:[%s11 + $0x50] sm:$0xf]
  %v2866 = vld [vmem:[%s11 + $0x54] sm:$0xf]
  %v2867 = vld [vmem:[%s11 + $0x58] sm:$0xf]
  %v2868 = vld [vmem:[%s11 + $0x5c] sm:$0xf]
  %v2869 = vld [vmem:[%s11 + $0x60] sm:$0xf]
  %v2870 = vld [vmem:[%s11 + $0x64] sm:$0xf]
  %v2871 = vld [vmem:[%s11 + $0x68] sm:$0xf]
  %v2872 = vld [vmem:[%s11 + $0x6c] sm:$0xf]
  %v2873 = vld [vmem:[%s11 + $0x70] sm:$0xf]
  %v2874 = vld [vmem:[%s11 + $0x74] sm:$0xf]
  %v2875 = vld [vmem:[%s11 + $0x78] sm:$0xf]
  %v2876 = vld [vmem:[%s11 + $0x7c] sm:$0xf]
  %v2877 = vld [vmem:[%s11 + $0x80] sm:$0xf]
  %v2878 = vld [vmem:[%s11 + $0x84] sm:$0xf]
  %v2879 = vld [vmem:[%s11 + $0x88] sm:$0xf]
  %v2880 = vld [vmem:[%s11 + $0x8c] sm:$0xf]
  %v2881 = vld [vmem:[%s11 + $0x90] sm:$0xf]
  %v2882 = vld [vmem:[%s11 + $0x94] sm:$0xf]
  %v2883 = vld [vmem:[%s11 + $0x98] sm:$0xf]
  %v2884 = vld [vmem:[%s11 + $0x9c] sm:$0xf]
  %v2885 = vld [vmem:[%s11 + $0xa0] sm:$0xf]
  %v2886 = vld [vmem:[%s11 + $0xa4] sm:$0xf]
  %v2887 = vld [vmem:[%s11 + $0xa8] sm:$0xf]
  %v2888 = vld [vmem:[%s11 + $0xac] sm:$0xf]
  %v2889 = vld [vmem:[%s11 + $0xb0] sm:$0xf]
  %v2890 = vld [vmem:[%s11 + $0xb4] sm:$0xf]
  %v2891 = vld [vmem:[%s11 + $0xb8] sm:$0xf]
  %v2892 = vld [vmem:[%s11 + $0xbc] sm:$0xf]
  %v2893 = vld [vmem:[%s11 + $0xc0] sm:$0xf]
  %v2894 = vld [vmem:[%s11 + $0xc4] sm:$0xf]
  %v2895 = vld [vmem:[%s11 + $0xc8] sm:$0xf]
  %v2896 = vld [vmem:[%s11 + $0xcc] sm:$0xf]
  %v2897 = vld [vmem:[%s11 + $0xd0] sm:$0xf]
  %v2898 = vld [vmem:[%s11 + $0xd4] sm:$0xf]
  %v2899 = vld [vmem:[%s11 + $0xd8] sm:$0xf]
  %v2900 = vld [vmem:[%s11 + $0xdc] sm:$0xf]
  %v2901 = vld [vmem:[%s11 + $0xe0] sm:$0xf]
  %v2902 = vld [vmem:[%s11 + $0xe4] sm:$0xf]
  %v2903 = vld [vmem:[%s11 + $0xe8] sm:$0xf]
  %v2904 = vld [vmem:[%s11 + $0xec] sm:$0xf]
  %v2905 = vld [vmem:[%s11 + $0xf0] sm:$0xf]
  %v2906 = vld [vmem:[%s11 + $0xf4] sm:$0xf]
  %v2907 = vld [vmem:[%s11 + $0xf8] sm:$0xf]
  %v2908 = vld [vmem:[%s11 + $0xfc] sm:$0xf]
  %v2909 = vld [vmem:[%s12] sm:$0x1]
  %v2911 = vlaneseq
  %v2912 = vshrl.u32 %v2911, 7
  %v2913 = vsub.s32 0, %v2912
  %v2914 = vrot.slane %v2909, %v2913
  %v2980 = vunpack.c.l.b16 %v2845
  %v2981 = vunpack.c.l.b16 %v2846
  %v2982 = vunpack.c.l.b16 %v2847
  %v2983 = vunpack.c.l.b16 %v2848
  %v2984 = vunpack.c.l.b16 %v2849
  %v2985 = vunpack.c.l.b16 %v2850
  %v2986 = vunpack.c.l.b16 %v2851
  %v2987 = vunpack.c.l.b16 %v2852
  %v2988 = vunpack.c.l.b16 %v2853
  %v2989 = vunpack.c.l.b16 %v2854
  %v2990 = vunpack.c.l.b16 %v2855
  %v2991 = vunpack.c.l.b16 %v2856
  %v2992 = vunpack.c.l.b16 %v2857
  %v2993 = vunpack.c.l.b16 %v2858
  %v2994 = vunpack.c.l.b16 %v2859
  %v2995 = vunpack.c.l.b16 %v2860
  %v2996 = vunpack.c.l.b16 %v2861
  %v2997 = vunpack.c.l.b16 %v2862
  %v2998 = vunpack.c.l.b16 %v2863
  %v2999 = vunpack.c.l.b16 %v2864
  %v3000 = vunpack.c.l.b16 %v2865
  %v3001 = vunpack.c.l.b16 %v2866
  %v3002 = vunpack.c.l.b16 %v2867
  %v3003 = vunpack.c.l.b16 %v2868
  %v3004 = vunpack.c.l.b16 %v2869
  %v3005 = vunpack.c.l.b16 %v2870
  %v3006 = vunpack.c.l.b16 %v2871
  %v3007 = vunpack.c.l.b16 %v2872
  %v3008 = vunpack.c.l.b16 %v2873
  %v3009 = vunpack.c.l.b16 %v2874
  %v3010 = vunpack.c.l.b16 %v2875
  %v3011 = vunpack.c.l.b16 %v2876
  %v3012 = vunpack.c.l.b16 %v2877
  %v3013 = vunpack.c.l.b16 %v2878
  %v3014 = vunpack.c.l.b16 %v2879
  %v3015 = vunpack.c.l.b16 %v2880
  %v3016 = vunpack.c.l.b16 %v2881
  %v3017 = vunpack.c.l.b16 %v2882
  %v3018 = vunpack.c.l.b16 %v2883
  %v3019 = vunpack.c.l.b16 %v2884
  %v3020 = vunpack.c.l.b16 %v2885
  %v3021 = vunpack.c.l.b16 %v2886
  %v3022 = vunpack.c.l.b16 %v2887
  %v3023 = vunpack.c.l.b16 %v2888
  %v3024 = vunpack.c.l.b16 %v2889
  %v3025 = vunpack.c.l.b16 %v2890
  %v3026 = vunpack.c.l.b16 %v2891
  %v3027 = vunpack.c.l.b16 %v2892
  %v3028 = vunpack.c.l.b16 %v2893
  %v3029 = vunpack.c.l.b16 %v2894
  %v3030 = vunpack.c.l.b16 %v2895
  %v3031 = vunpack.c.l.b16 %v2896
  %v3032 = vunpack.c.l.b16 %v2897
  %v3033 = vunpack.c.l.b16 %v2898
  %v3034 = vunpack.c.l.b16 %v2899
  %v3035 = vunpack.c.l.b16 %v2900
  %v3036 = vunpack.c.l.b16 %v2901
  %v3037 = vunpack.c.l.b16 %v2902
  %v3038 = vunpack.c.l.b16 %v2903
  %v3039 = vunpack.c.l.b16 %v2904
  %v3040 = vunpack.c.l.b16 %v2905
  %v3041 = vunpack.c.l.b16 %v2906
  %v3042 = vunpack.c.l.b16 %v2907
  %v3043 = vunpack.c.l.b16 %v2908
  %v3044 = vpack.c.b16 %v2981, %v2980
  %v3045 = vpack.c.b16 %v2983, %v2982
  %v3046 = vpack.c.b16 %v2985, %v2984
  %v3047 = vpack.c.b16 %v2987, %v2986
  %v3048 = vpack.c.b16 %v2989, %v2988
  %v3049 = vpack.c.b16 %v2991, %v2990
  %v3050 = vpack.c.b16 %v2993, %v2992
  %v3051 = vpack.c.b16 %v2995, %v2994
  %v3052 = vpack.c.b16 %v2997, %v2996
  %v3053 = vpack.c.b16 %v2999, %v2998
  %v3054 = vpack.c.b16 %v3001, %v3000
  %v3055 = vpack.c.b16 %v3003, %v3002
  %v3056 = vpack.c.b16 %v3005, %v3004
  %v3057 = vpack.c.b16 %v3007, %v3006
  %v3058 = vpack.c.b16 %v3009, %v3008
  %v3059 = vpack.c.b16 %v3011, %v3010
  %v3060 = vpack.c.b16 %v3013, %v3012
  %v3061 = vpack.c.b16 %v3015, %v3014
  %v3062 = vpack.c.b16 %v3017, %v3016
  %v3063 = vpack.c.b16 %v3019, %v3018
  %v3064 = vpack.c.b16 %v3021, %v3020
  %v3065 = vpack.c.b16 %v3023, %v3022
  %v3066 = vpack.c.b16 %v3025, %v3024
  %v3067 = vpack.c.b16 %v3027, %v3026
  %v3068 = vpack.c.b16 %v3029, %v3028
  %v3069 = vpack.c.b16 %v3031, %v3030
  %v3070 = vpack.c.b16 %v3033, %v3032
  %v3071 = vpack.c.b16 %v3035, %v3034
  %v3072 = vpack.c.b16 %v3037, %v3036
  %v3073 = vpack.c.b16 %v3039, %v3038
  %v3074 = vpack.c.b16 %v3041, %v3040
  %v3075 = vpack.c.b16 %v3043, %v3042
  %3108 = vmatprep.subr.bf16.mxu0 0
  %3109 = vmatpush1.bf16.msra.mxu0 %v3044
  %3110 = vmatprep.subr.bf16.mxu0 0
  %3111 = vmatpush1.bf16.msra.mxu0 %v3045
  %3112 = vmatprep.subr.bf16.mxu0 0
  %3113 = vmatpush1.bf16.msra.mxu0 %v3046
  %3114 = vmatprep.subr.bf16.mxu0 0
  %3115 = vmatpush1.bf16.msra.mxu0 %v3047
  %3116 = vmatprep.subr.bf16.mxu0 0
  %3117 = vmatpush1.bf16.msra.mxu0 %v3048
  %3118 = vmatprep.subr.bf16.mxu0 0
  %3119 = vmatpush1.bf16.msra.mxu0 %v3049
  %3120 = vmatprep.subr.bf16.mxu0 0
  %3121 = vmatpush1.bf16.msra.mxu0 %v3050
  %3122 = vmatprep.subr.bf16.mxu0 0
  %3123 = vmatpush1.bf16.msra.mxu0 %v3051
  %3124 = vmatprep.subr.bf16.mxu0 0
  %3125 = vmatpush1.bf16.msra.mxu0 %v3052
  %3126 = vmatprep.subr.bf16.mxu0 0
  %3127 = vmatpush1.bf16.msra.mxu0 %v3053
  %3128 = vmatprep.subr.bf16.mxu0 0
  %3129 = vmatpush1.bf16.msra.mxu0 %v3054
  %3130 = vmatprep.subr.bf16.mxu0 0
  %3131 = vmatpush1.bf16.msra.mxu0 %v3055
  %3132 = vmatprep.subr.bf16.mxu0 0
  %3133 = vmatpush1.bf16.msra.mxu0 %v3056
  %3134 = vmatprep.subr.bf16.mxu0 0
  %3135 = vmatpush1.bf16.msra.mxu0 %v3057
  %3136 = vmatprep.subr.bf16.mxu0 0
  %3137 = vmatpush1.bf16.msra.mxu0 %v3058
  %3138 = vmatprep.subr.bf16.mxu0 0
  %3139 = vmatpush1.bf16.msra.mxu0 %v3059
  %3140 = vmatprep.mubr.bf16.mxu0 %v2842
  %3141 = vmatmul.mubr.bf16.gmra.mrb[0].mxu0 %v2841
  %v3142 = vpop.f32.mrb[0].mxu0
  %v3143 = vadd.f32 %v2914, %v3142
  %v3144 = vpop.f32.mrb[0].mxu0
  %v3145 = vpop.f32.mrb[0].mxu0
  %v3146 = vpop.f32.mrb[0].mxu0
  %3147 = vdwg.mxu0
  %3148 = vmatprep.subr.bf16.mxu0 0
  %3149 = vmatpush1.bf16.msra.mxu0 %v3060
  %3150 = vmatprep.subr.bf16.mxu0 0
  %3151 = vmatpush1.bf16.msra.mxu0 %v3061
  %3152 = vmatprep.subr.bf16.mxu0 0
  %3153 = vmatpush1.bf16.msra.mxu0 %v3062
  %3154 = vmatprep.subr.bf16.mxu0 0
  %3155 = vmatpush1.bf16.msra.mxu0 %v3063
  %3156 = vmatprep.subr.bf16.mxu0 0
  %3157 = vmatpush1.bf16.msra.mxu0 %v3064
  %3158 = vmatprep.subr.bf16.mxu0 0
  %3159 = vmatpush1.bf16.msra.mxu0 %v3065
  %3160 = vmatprep.subr.bf16.mxu0 0
  %3161 = vmatpush1.bf16.msra.mxu0 %v3066
  %3162 = vmatprep.subr.bf16.mxu0 0
  %3163 = vmatpush1.bf16.msra.mxu0 %v3067
  %3164 = vmatprep.subr.bf16.mxu0 0
  %3165 = vmatpush1.bf16.msra.mxu0 %v3068
  %3166 = vmatprep.subr.bf16.mxu0 0
  %3167 = vmatpush1.bf16.msra.mxu0 %v3069
  %3168 = vmatprep.subr.bf16.mxu0 0
  %3169 = vmatpush1.bf16.msra.mxu0 %v3070
  %3170 = vmatprep.subr.bf16.mxu0 0
  %3171 = vmatpush1.bf16.msra.mxu0 %v3071
  %3172 = vmatprep.subr.bf16.mxu0 0
  %3173 = vmatpush1.bf16.msra.mxu0 %v3072
  %3174 = vmatprep.subr.bf16.mxu0 0
  %3175 = vmatpush1.bf16.msra.mxu0 %v3073
  %3176 = vmatprep.subr.bf16.mxu0 0
  %3177 = vmatpush1.bf16.msra.mxu0 %v3074
  %3178 = vmatprep.subr.bf16.mxu0 0
  %3179 = vmatpush1.bf16.msra.mxu0 %v3075
  %3180 = vmatprep.mubr.bf16.mxu0 %v2844
  %3181 = vmatmul.mubr.bf16.gmra.mrb[0].mxu0 %v2843
  %v3182 = vpop.f32.mrb[0].mxu0
  %v3183 = vadd.f32 %v3143, %v3182
  %v3184 = vpop.f32.mrb[0].mxu0
  %v3185 = vpop.f32.mrb[0].mxu0
  %v3186 = vpop.f32.mrb[0].mxu0
  %3187 = vdwg.mxu0
  %vm3188 = vcmask 9216
  %v3189 = vsel %vm3188, %v3183, -inf
  %3190 = vmax.xlane.f32.xlu0 %v3189
  %v3191 = vpop.xlane.xlu0 %3190
  %v3192 = vsub.f32 %v3183, %v3191
  %v3193 = vmul.f32 %v3192, 1.442695
  %v3194 = vpow.pop %v3193
  %v3195 = vsel %vm3188, %v3194, 0.0
  %3196 = vadd.xlane.f32.xlu0 %v3195
  %v3197 = vpop.xlane.xlu0 %3196
  %v3198 = vrcp.pop %v3197
  %v3199 = vmul.f32 %v3194, %v3198
  %vm3200 = vcmask 15360
  %v3201 = vsel %vm3200, %v3199, %v3183
  %3202 = vst [vmem:[%s13] sm:$0x3] %v3201
  // Predicated region
  $region54: #{net_forward.1} parent=0 // pred_check
    _
  $region55: #{net_forward.1} parent=0 // pred_check_branch
    %3204 = sbr.rel (0) target = $region57
  $region56: #{net_forward.1} parent=0 // pred_region
    _
  $region57: #{net_forward.1} parent=0 // pred_fallthru
    _
  // Predicated region
  $region58: #{net_forward.1} parent=0 // pred_check
    _
  $region59: #{net_forward.1} parent=0 // pred_check_branch
    %3206 = sbr.rel (0) target = $region61
  $region60: #{net_forward.1} parent=0 // pred_region
    _
  $region61: #{net_forward.1} parent=0 // pred_fallthru
    _

</llo_original>
